<compile_context>
chip_gen: v7x
topology: tpu7x:2x2x1
jax: 0.10.0
libtpu: 0.0.40
codegen_flags: <defaults>
</compile_context>

<pallas_src>
import numpy as np

import jax
import jax.numpy as jnp
from jax.experimental import pallas as pl
from jax.experimental.pallas import tpu as pltpu

EPS = 1e-5


def _round_up(n, m):
    return ((n + m - 1) // m) * m


# ------------------------------ fused kernel --------------------------------

def _make_fused_kernel(*, c_in, c_out, n_phase, t_wide, shifts1, shifts2,
                       res_shift, margin, count1, count2):
    """Builds the whole-block kernel, specialized on static geometry.

    shifts1 / shifts2 / res_shift are static lane offsets into the flat padded
    activations; margin is the zero lead-in of the stage-2 buffer that encodes
    conv2's zero padding.
    """

    def kernel(xpf_ref, w1_ref, b1_ref, g1_ref, be1_ref,
               w2_ref, wr_ref, b2_ref, g2_ref, be2_ref, mask_ref,
               out_ref, zbuf_ref):
        mask = mask_ref[...]                                   # (1, t_wide)

        # ---- stage 1: ConvT1 via in-kernel tap gather + bias + ReLU --------
        w1 = w1_ref[...]                                       # (c_in, 9*c_in)
        acc1 = None
        for t, s in enumerate(shifts1):
            lhs = w1[:, t * c_in:(t + 1) * c_in].astype(jnp.bfloat16)
            rhs = xpf_ref[:, s:s + t_wide].astype(jnp.bfloat16)
            d = jnp.dot(lhs, rhs, preferred_element_type=jnp.float32)
            acc1 = d if acc1 is None else acc1 + d
        y1 = jnp.maximum(acc1 + b1_ref[...], 0.0)              # (c_in, t_wide)

        # ---- BatchNorm1: batch stats over valid lanes, centered variance ---
        inv1 = 1.0 / count1
        mean1 = jnp.sum(y1 * mask, axis=1, keepdims=True) * inv1
        d1 = (y1 - mean1) * mask
        var1 = jnp.sum(d1 * d1, axis=1, keepdims=True) * inv1
        scale1 = g1_ref[...] * jax.lax.rsqrt(var1 + EPS)
        shift1 = be1_ref[...] - mean1 * scale1
        z1 = (y1 * scale1 + shift1) * mask      # zero the padding-ring lanes

        # Stage-2 input buffer: zero margins == zero padding of z1 for conv2.
        zbuf_ref[...] = jnp.zeros(zbuf_ref.shape, zbuf_ref.dtype)
        zbuf_ref[:, margin:margin + t_wide] = z1

        # ---- stage 2: ConvT2 (4 phases packed on rows) + residual + ReLU ---
        wrb = wr_ref[...].astype(jnp.bfloat16)                 # (rows, c_in)
        xres = xpf_ref[:, res_shift:res_shift + t_wide].astype(jnp.bfloat16)
        acc2 = jnp.dot(wrb, xres, preferred_element_type=jnp.float32)
        w2 = w2_ref[...]                                       # (rows, 9*c_in)
        for t, s in enumerate(shifts2):
            lhs = w2[:, t * c_in:(t + 1) * c_in].astype(jnp.bfloat16)
            rhs = zbuf_ref[:, s:s + t_wide].astype(jnp.bfloat16)
            acc2 = acc2 + jnp.dot(lhs, rhs,
                                  preferred_element_type=jnp.float32)
        y2 = jnp.maximum(acc2 + b2_ref[...], 0.0)              # (rows, t_wide)

        # ---- BatchNorm2: per-channel stats pooled over the phases ----------
        inv2 = 1.0 / count2
        rowsum = jnp.sum(y2 * mask, axis=1, keepdims=True)     # (rows, 1)
        ch_sum = rowsum[0:c_out]
        for ph in range(1, n_phase):
            ch_sum = ch_sum + rowsum[ph * c_out:(ph + 1) * c_out]
        mean2 = ch_sum * inv2
        var_sum = None
        for ph in range(n_phase):
            d2 = (y2[ph * c_out:(ph + 1) * c_out] - mean2) * mask
            v = jnp.sum(d2 * d2, axis=1, keepdims=True)
            var_sum = v if var_sum is None else var_sum + v
        var2 = var_sum * inv2
        scale2 = g2_ref[...] * jax.lax.rsqrt(var2 + EPS)
        shift2 = be2_ref[...] - mean2 * scale2

        for ph in range(n_phase):
            out_ref[ph * c_out:(ph + 1) * c_out, :] = (
                y2[ph * c_out:(ph + 1) * c_out] * scale2 + shift2)

    return kernel


# --------------------------------- module -----------------------------------

class DeResBlock2DPallas:
    def __init__(self, out_channels, in_channels, is_conv_bias, kernel_size,
                 stride, key):
        k1 = kernel_size
        padding = kernel_size // 2
        if kernel_size % 2 == 0:
            k1 = kernel_size - 1
            padding -= 1
        self.k1, self.p1 = k1, k1 // 2
        self.k2, self.p2, self.stride = kernel_size, padding, stride
        self.in_channels, self.out_channels = in_channels, out_channels
        self.is_projection = (stride > 1) or (in_channels != out_channels)

        if stride not in (1, 2):
            raise NotImplementedError("stride must be 1 or 2")
        if stride == 1 and (self.is_projection or kernel_size % 2 == 0):
            # These configs are shape-inconsistent in the original PyTorch
            # module as well (out += residual would fail there).
            raise NotImplementedError("unsupported stride-1 configuration")

        ks = jax.random.split(key, 10)

        def w_init(k, shape):
            fan = shape[0] * shape[2] * shape[3]
            bound = 1.0 / (fan ** 0.5)
            return jax.random.uniform(k, shape, jnp.float32, -bound, bound)

        def b_init(k, n, fan):
            if not is_conv_bias:
                return jnp.zeros((n,), jnp.float32)
            bound = 1.0 / (fan ** 0.5)
            return jax.random.uniform(k, (n,), jnp.float32, -bound, bound)

        p = {}
        # ConvTranspose2d weights, PyTorch layout (in_channels, out_channels, kH, kW)
        p["w1"] = w_init(ks[0], (in_channels, in_channels, k1, k1))
        p["b1"] = b_init(ks[1], in_channels, in_channels * k1 * k1)
        p["w2"] = w_init(ks[2], (in_channels, out_channels,
                                 kernel_size, kernel_size))
        p["b2"] = b_init(ks[3], out_channels,
                         in_channels * kernel_size * kernel_size)
        if self.is_projection:
            p["wr"] = w_init(ks[4], (in_channels, out_channels, 2, 2))
            p["br"] = b_init(ks[5], out_channels, in_channels * 4)
        # BatchNorm affine params (deterministic, non-trivial values).
        p["g1"] = jax.random.uniform(ks[6], (in_channels,), jnp.float32, 0.5, 1.5)
        p["be1"] = jax.random.uniform(ks[7], (in_channels,), jnp.float32, -0.5, 0.5)
        p["g2"] = jax.random.uniform(ks[8], (out_channels,), jnp.float32, 0.5, 1.5)
        p["be2"] = jax.random.uniform(ks[9], (out_channels,), jnp.float32, -0.5, 0.5)
        self.params = p

        self._build_packed()
        self._fwd = jax.jit(self._forward)

    # -- weight re-packing (done once, on concrete params, outside the jit) --
    def _build_packed(self):
        p = self.params
        c_in, c_out = self.in_channels, self.out_channels
        k1, p1 = self.k1, self.p1
        k2, p2, s = self.k2, self.p2, self.stride

        w1 = np.asarray(p["w1"], np.float32)          # (c_in, c_in, k1, k1)
        w2 = np.asarray(p["w2"], np.float32)          # (c_in, c_out, k2, k2)

        # ConvT(k1, stride=1, p1) == plain conv with flipped kernel over the
        # input zero-padded by pad1 = k1-1-p1 on every side.
        self.pad1 = k1 - 1 - p1
        self.offs1 = [(a, b) for a in range(k1) for b in range(k1)]
        w1p = np.zeros((c_in, len(self.offs1) * c_in), np.float32)
        for t, (a, b) in enumerate(self.offs1):
            w1p[:, t * c_in:(t + 1) * c_in] = w1[:, :, k1 - 1 - a, k1 - 1 - b].T

        # ConvT2: sub-pixel (phase) decomposition for stride 2; group taps by
        # their input offset and pack all phases onto the LHS row axis.
        phases = ([(ry, rx) for ry in range(2) for rx in range(2)]
                  if s == 2 else [(0, 0)])
        self.phases, self.n_phase = phases, len(phases)
        offs2, entries = [], []
        for pi, (ry, rx) in enumerate(phases):
            for ky in range(k2):
                if s == 2 and (ry + p2 - ky) % 2 != 0:
                    continue
                oy = (ry + p2 - ky) // 2 if s == 2 else (p2 - ky)
                for kx in range(k2):
                    if s == 2 and (rx + p2 - kx) % 2 != 0:
                        continue
                    ox = (rx + p2 - kx) // 2 if s == 2 else (p2 - kx)
                    if (oy, ox) not in offs2:
                        offs2.append((oy, ox))
                    entries.append((pi, offs2.index((oy, ox)),
                                    w2[:, :, ky, kx].T))
        self.offs2 = offs2
        rows = self.n_phase * c_out
        w2p = np.zeros((rows, len(offs2) * c_in), np.float32)
        for pi, si, wm in entries:
            w2p[pi * c_out:(pi + 1) * c_out, si * c_in:(si + 1) * c_in] = wm

        if self.is_projection:
            wr = np.asarray(p["wr"], np.float32)      # (c_in, c_out, 2, 2)
            wrp = np.zeros((rows, c_in), np.float32)
            for pi, (ry, rx) in enumerate(phases):
                wrp[pi * c_out:(pi + 1) * c_out, :] = wr[:, :, ry, rx].T
            b2row = np.tile(np.asarray(p["b2"], np.float32)
                            + np.asarray(p["br"], np.float32), self.n_phase)
        else:
            wrp = np.eye(c_out, c_in, dtype=np.float32)   # identity residual
            b2row = np.asarray(p["b2"], np.float32)

        def col(a, n):
            return jnp.asarray(np.asarray(a, np.float32).reshape(n, 1))

        self.packed = {
            "w1p": jnp.asarray(w1p), "w2p": jnp.asarray(w2p),
            "wrp": jnp.asarray(wrp),
            "b1": col(p["b1"], c_in), "b2p": jnp.asarray(b2row.reshape(rows, 1)),
            "g1": col(p["g1"], c_in), "be1": col(p["be1"], c_in),
            "g2": col(p["g2"], c_out), "be2": col(p["be2"], c_out),
        }

    def __call__(self, x_nchw):
        return self._fwd(self.packed, x_nchw)

    def _forward(self, pk, x_nchw):
        n, c_in, h, w = x_nchw.shape
        c_out, n_phase, pad1 = self.out_channels, self.n_phase, self.pad1
        hp, wp = h + 2 * pad1, w + 2 * pad1
        t_wide = n * hp * wp
        rows = n_phase * c_out

        # Static lane offsets for the in-kernel tap gathers.
        shifts1 = [a * wp + b for (a, b) in self.offs1]
        omin = min(min(oy, ox) for (oy, ox) in self.offs2)
        omax = max(max(oy, ox) for (oy, ox) in self.offs2)
        margin = max(0, -omin) * (wp + 1)
        shifts2 = [margin + oy * wp + ox for (oy, ox) in self.offs2]
        res_shift = pad1 * (wp + 1)

        lx = _round_up(max(t_wide + max(shifts1), t_wide + res_shift), 128)
        zlen = _round_up(t_wide + margin + max(0, omax) * (wp + 1), 128)

        # Lane-dense flat layout of the zero-padded input (channel-major).
        xq = jnp.transpose(x_nchw.astype(jnp.float32), (1, 0, 2, 3))
        xp = jnp.pad(xq, ((0, 0), (0, 0), (pad1, pad1), (pad1, pad1)))
        xpf = jnp.pad(xp.reshape(c_in, t_wide), ((0, 0), (0, lx - t_wide)))

        # 0/1 mask of valid (non padding-ring) lanes of the wide grid.
        mm = np.zeros((n, hp, wp), np.float32)
        mm[:, :h, :w] = 1.0
        mask = jnp.asarray(mm.reshape(1, t_wide))

        count1 = float(n * h * w)
        count2 = float(n_phase * n * h * w)

        kernel = _make_fused_kernel(
            c_in=c_in, c_out=c_out, n_phase=n_phase, t_wide=t_wide,
            shifts1=tuple(shifts1), shifts2=tuple(shifts2),
            res_shift=res_shift, margin=margin,
            count1=count1, count2=count2)

        flops = 2 * t_wide * c_in * (c_in * len(shifts1)
                                     + rows * (len(shifts2) + 1))
        bytes_acc = 4 * (xpf.size + mask.size + rows * t_wide
                         + sum(int(np.prod(v.shape)) for v in pk.values()))

        vmem_spec = pl.BlockSpec(memory_space=pltpu.MemorySpace.VMEM)
        out_wide = pl.pallas_call(
            kernel,
            out_shape=jax.ShapeDtypeStruct((rows, t_wide), jnp.float32),
            in_specs=[vmem_spec] * 11,
            out_specs=vmem_spec,
            scratch_shapes=[pltpu.VMEM((c_in, zlen), jnp.float32)],
            # ~0.4 MiB working set: far below the v7x 64 MiB (v5e/v6e 128 MiB)
            # physical VMEM; 32 MiB scoped limit is safe on all generations.
            compiler_params=pltpu.CompilerParams(
                vmem_limit_bytes=32 * 1024 * 1024),
            cost_estimate=pl.CostEstimate(
                flops=flops, transcendentals=2 * (c_in + c_out),
                bytes_accessed=bytes_acc),
        )(xpf, pk["w1p"], pk["b1"], pk["g1"], pk["be1"],
          pk["w2p"], pk["wrp"], pk["b2p"], pk["g2"], pk["be2"], mask)

        if self.stride == 2:
            # De-interleave phases: (ry,rx,co,n,Y,X) -> (n,co,2Y+ry,2X+rx).
            o = out_wide.reshape(2, 2, c_out, n, hp, wp)[:, :, :, :, :h, :w]
            o = jnp.transpose(o, (3, 2, 4, 0, 5, 1))
            return o.reshape(n, c_out, 2 * h, 2 * w)
        o = out_wide.reshape(c_out, n, hp, wp)[:, :, :h, :w]
        return jnp.transpose(o, (1, 0, 2, 3))


# ------------------------- pure-JAX reference check --------------------------

def _bf16(a):
    # The Pallas kernel feeds the MXU bf16 operands with f32 accumulation; the
    # reference rounds its conv operands the same way so the check stays tight.
    return a.astype(jnp.bfloat16).astype(jnp.float32)


def _ref_conv_transpose(x_nchw, w_t, bias, stride, padding):
    c_in, c_out, kh, kw = w_t.shape
    w_conv = jnp.transpose(w_t[:, :, ::-1, ::-1], (1, 0, 2, 3))  # (Cout,Cin,kH,kW)
    out = jax.lax.conv_general_dilated(
        _bf16(x_nchw), _bf16(w_conv), window_strides=(1, 1),
        padding=[(kh - 1 - padding, kh - 1 - padding),
                 (kw - 1 - padding, kw - 1 - padding)],
        lhs_dilation=(stride, stride),
        dimension_numbers=("NCHW", "OIHW", "NCHW"),
        precision=jax.lax.Precision.HIGHEST)
    return out + bias.reshape(1, c_out, 1, 1)


def _ref_bn(x_nchw, gamma, beta):
    mean = x_nchw.mean(axis=(0, 2, 3), keepdims=True)
    var = ((x_nchw - mean) ** 2).mean(axis=(0, 2, 3), keepdims=True)
    return ((x_nchw - mean) * jax.lax.rsqrt(var + EPS)
            * gamma.reshape(1, -1, 1, 1) + beta.reshape(1, -1, 1, 1))


def reference_forward(blk, x_nchw):
    p = blk.params
    out = _ref_conv_transpose(x_nchw, p["w1"], p["b1"], 1, blk.p1)
    out = jnp.maximum(out, 0.0)
    out = _ref_bn(out, p["g1"], p["be1"])
    out = _ref_conv_transpose(out, p["w2"], p["b2"], blk.stride, blk.p2)
    if blk.is_projection:
        residual = _ref_conv_transpose(x_nchw, p["wr"], p["br"], blk.stride, 0)
    else:
        residual = x_nchw
    out = jnp.maximum(out + residual, 0.0)
    return _ref_bn(out, p["g2"], p["be2"])


# ----------------------------------- main ------------------------------------

if __name__ == "__main__":
    key = jax.random.PRNGKey(0)
    k_x, k_p = jax.random.split(key)

    # DeResBlock2D(out_channels=8, in_channels=4, is_conv_bias=True,
    #              kernel_size=4, stride=2)  — upsamples 16x16 -> 32x32.
    N, C_IN, H, W = 2, 4, 16, 16
    C_OUT, KSIZE, STRIDE = 8, 4, 2

    x = jax.random.normal(k_x, (N, C_IN, H, W), jnp.float32)
    block = DeResBlock2DPallas(C_OUT, C_IN, True, KSIZE, STRIDE, k_p)

    out = jax.block_until_ready(block(x))
    assert out.shape == (N, C_OUT, 2 * H, 2 * W), out.shape

    ref = reference_forward(block, x)
    max_err = float(jnp.max(jnp.abs(out - ref)))
    assert jnp.allclose(out, ref, atol=1e-2, rtol=1e-2), max_err

    print("KERNEL_OK")
</pallas_src>

<mosaic_0001>
module attributes {stable_mosaic.version = 11 : i64} {
  func.func @kernel(%arg0: memref<4x768xf32, #tpu.memory_space<vmem>>, %arg1: memref<4x36xf32, #tpu.memory_space<vmem>>, %arg2: memref<4x1xf32, #tpu.memory_space<vmem>>, %arg3: memref<4x1xf32, #tpu.memory_space<vmem>>, %arg4: memref<4x1xf32, #tpu.memory_space<vmem>>, %arg5: memref<32x36xf32, #tpu.memory_space<vmem>>, %arg6: memref<32x4xf32, #tpu.memory_space<vmem>>, %arg7: memref<32x1xf32, #tpu.memory_space<vmem>>, %arg8: memref<8x1xf32, #tpu.memory_space<vmem>>, %arg9: memref<8x1xf32, #tpu.memory_space<vmem>>, %arg10: memref<1x648xf32, #tpu.memory_space<vmem>>, %arg11: memref<32x648xf32, #tpu.memory_space<vmem>>, %arg12: memref<4x768xf32, #tpu.memory_space<vmem>>) attributes {dimension_semantics = [], scalar_prefetch = 0 : i64, scratch_operands = 1 : i64, tpu.core_type = #tpu.core_type<tc>} {
    %c0 = arith.constant 0 : index
    %c0_0 = arith.constant 0 : index
    %0 = vector.load %arg10[%c0, %c0_0] : memref<1x648xf32, #tpu.memory_space<vmem>>, vector<1x648xf32>
    %c0_1 = arith.constant 0 : index
    %c0_2 = arith.constant 0 : index
    %1 = vector.load %arg1[%c0_1, %c0_2] : memref<4x36xf32, #tpu.memory_space<vmem>>, vector<4x36xf32>
    %2 = vector.extract_strided_slice %1 {offsets = [0, 0], sizes = [4, 4], strides = [1, 1]} : vector<4x36xf32> to vector<4x4xf32>
    %3 = arith.truncf %2 : vector<4x4xf32> to vector<4x4xbf16>
    %c0_3 = arith.constant 0 : index
    %c0_4 = arith.constant 0 : index
    %4 = vector.load %arg0[%c0_3, %c0_4] : memref<4x768xf32, #tpu.memory_space<vmem>>, vector<4x648xf32>
    %5 = arith.truncf %4 : vector<4x648xf32> to vector<4x648xbf16>
    %cst = arith.constant dense<0.000000e+00> : vector<4x648xf32>
    %6 = tpu.matmul %3, %5, %cst {dimension_numbers = #tpu.dot_dimension_numbers<[1], [0], [0], [1], [0, 0, 1, 1], [], []>} : vector<4x4xbf16>, vector<4x648xbf16>, vector<4x648xf32> -> vector<4x648xf32>
    %7 = vector.extract_strided_slice %1 {offsets = [0, 4], sizes = [4, 4], strides = [1, 1]} : vector<4x36xf32> to vector<4x4xf32>
    %8 = arith.truncf %7 : vector<4x4xf32> to vector<4x4xbf16>
    %c0_5 = arith.constant 0 : index
    %c1 = arith.constant 1 : index
    %9 = vector.load %arg0[%c0_5, %c1] : memref<4x768xf32, #tpu.memory_space<vmem>>, vector<4x648xf32>
    %10 = arith.truncf %9 : vector<4x648xf32> to vector<4x648xbf16>
    %cst_6 = arith.constant dense<0.000000e+00> : vector<4x648xf32>
    %11 = tpu.matmul %8, %10, %cst_6 {dimension_numbers = #tpu.dot_dimension_numbers<[1], [0], [0], [1], [0, 0, 1, 1], [], []>} : vector<4x4xbf16>, vector<4x648xbf16>, vector<4x648xf32> -> vector<4x648xf32>
    %12 = arith.addf %6, %11 : vector<4x648xf32>
    %13 = vector.extract_strided_slice %1 {offsets = [0, 8], sizes = [4, 4], strides = [1, 1]} : vector<4x36xf32> to vector<4x4xf32>
    %14 = arith.truncf %13 : vector<4x4xf32> to vector<4x4xbf16>
    %c0_7 = arith.constant 0 : index
    %c2 = arith.constant 2 : index
    %15 = vector.load %arg0[%c0_7, %c2] : memref<4x768xf32, #tpu.memory_space<vmem>>, vector<4x648xf32>
    %16 = arith.truncf %15 : vector<4x648xf32> to vector<4x648xbf16>
    %cst_8 = arith.constant dense<0.000000e+00> : vector<4x648xf32>
    %17 = tpu.matmul %14, %16, %cst_8 {dimension_numbers = #tpu.dot_dimension_numbers<[1], [0], [0], [1], [0, 0, 1, 1], [], []>} : vector<4x4xbf16>, vector<4x648xbf16>, vector<4x648xf32> -> vector<4x648xf32>
    %18 = arith.addf %12, %17 : vector<4x648xf32>
    %19 = vector.extract_strided_slice %1 {offsets = [0, 12], sizes = [4, 4], strides = [1, 1]} : vector<4x36xf32> to vector<4x4xf32>
    %20 = arith.truncf %19 : vector<4x4xf32> to vector<4x4xbf16>
    %c0_9 = arith.constant 0 : index
    %c18 = arith.constant 18 : index
    %21 = vector.load %arg0[%c0_9, %c18] : memref<4x768xf32, #tpu.memory_space<vmem>>, vector<4x648xf32>
    %22 = arith.truncf %21 : vector<4x648xf32> to vector<4x648xbf16>
    %cst_10 = arith.constant dense<0.000000e+00> : vector<4x648xf32>
    %23 = tpu.matmul %20, %22, %cst_10 {dimension_numbers = #tpu.dot_dimension_numbers<[1], [0], [0], [1], [0, 0, 1, 1], [], []>} : vector<4x4xbf16>, vector<4x648xbf16>, vector<4x648xf32> -> vector<4x648xf32>
    %24 = arith.addf %18, %23 : vector<4x648xf32>
    %25 = vector.extract_strided_slice %1 {offsets = [0, 16], sizes = [4, 4], strides = [1, 1]} : vector<4x36xf32> to vector<4x4xf32>
    %26 = arith.truncf %25 : vector<4x4xf32> to vector<4x4xbf16>
    %c0_11 = arith.constant 0 : index
    %c19 = arith.constant 19 : index
    %27 = vector.load %arg0[%c0_11, %c19] : memref<4x768xf32, #tpu.memory_space<vmem>>, vector<4x648xf32>
    %28 = arith.truncf %27 : vector<4x648xf32> to vector<4x648xbf16>
    %cst_12 = arith.constant dense<0.000000e+00> : vector<4x648xf32>
    %29 = tpu.matmul %26, %28, %cst_12 {dimension_numbers = #tpu.dot_dimension_numbers<[1], [0], [0], [1], [0, 0, 1, 1], [], []>} : vector<4x4xbf16>, vector<4x648xbf16>, vector<4x648xf32> -> vector<4x648xf32>
    %30 = arith.addf %24, %29 : vector<4x648xf32>
    %31 = vector.extract_strided_slice %1 {offsets = [0, 20], sizes = [4, 4], strides = [1, 1]} : vector<4x36xf32> to vector<4x4xf32>
    %32 = arith.truncf %31 : vector<4x4xf32> to vector<4x4xbf16>
    %c0_13 = arith.constant 0 : index
    %c20 = arith.constant 20 : index
    %33 = vector.load %arg0[%c0_13, %c20] : memref<4x768xf32, #tpu.memory_space<vmem>>, vector<4x648xf32>
    %34 = arith.truncf %33 : vector<4x648xf32> to vector<4x648xbf16>
    %cst_14 = arith.constant dense<0.000000e+00> : vector<4x648xf32>
    %35 = tpu.matmul %32, %34, %cst_14 {dimension_numbers = #tpu.dot_dimension_numbers<[1], [0], [0], [1], [0, 0, 1, 1], [], []>} : vector<4x4xbf16>, vector<4x648xbf16>, vector<4x648xf32> -> vector<4x648xf32>
    %36 = arith.addf %30, %35 : vector<4x648xf32>
    %37 = vector.extract_strided_slice %1 {offsets = [0, 24], sizes = [4, 4], strides = [1, 1]} : vector<4x36xf32> to vector<4x4xf32>
    %38 = arith.truncf %37 : vector<4x4xf32> to vector<4x4xbf16>
    %c0_15 = arith.constant 0 : index
    %c36 = arith.constant 36 : index
    %39 = vector.load %arg0[%c0_15, %c36] : memref<4x768xf32, #tpu.memory_space<vmem>>, vector<4x648xf32>
    %40 = arith.truncf %39 : vector<4x648xf32> to vector<4x648xbf16>
    %cst_16 = arith.constant dense<0.000000e+00> : vector<4x648xf32>
    %41 = tpu.matmul %38, %40, %cst_16 {dimension_numbers = #tpu.dot_dimension_numbers<[1], [0], [0], [1], [0, 0, 1, 1], [], []>} : vector<4x4xbf16>, vector<4x648xbf16>, vector<4x648xf32> -> vector<4x648xf32>
    %42 = arith.addf %36, %41 : vector<4x648xf32>
    %43 = vector.extract_strided_slice %1 {offsets = [0, 28], sizes = [4, 4], strides = [1, 1]} : vector<4x36xf32> to vector<4x4xf32>
    %44 = arith.truncf %43 : vector<4x4xf32> to vector<4x4xbf16>
    %c0_17 = arith.constant 0 : index
    %c37 = arith.constant 37 : index
    %45 = vector.load %arg0[%c0_17, %c37] : memref<4x768xf32, #tpu.memory_space<vmem>>, vector<4x648xf32>
    %46 = arith.truncf %45 : vector<4x648xf32> to vector<4x648xbf16>
    %cst_18 = arith.constant dense<0.000000e+00> : vector<4x648xf32>
    %47 = tpu.matmul %44, %46, %cst_18 {dimension_numbers = #tpu.dot_dimension_numbers<[1], [0], [0], [1], [0, 0, 1, 1], [], []>} : vector<4x4xbf16>, vector<4x648xbf16>, vector<4x648xf32> -> vector<4x648xf32>
    %48 = arith.addf %42, %47 : vector<4x648xf32>
    %49 = vector.extract_strided_slice %1 {offsets = [0, 32], sizes = [4, 4], strides = [1, 1]} : vector<4x36xf32> to vector<4x4xf32>
    %50 = arith.truncf %49 : vector<4x4xf32> to vector<4x4xbf16>
    %c0_19 = arith.constant 0 : index
    %c38 = arith.constant 38 : index
    %51 = vector.load %arg0[%c0_19, %c38] : memref<4x768xf32, #tpu.memory_space<vmem>>, vector<4x648xf32>
    %52 = arith.truncf %51 : vector<4x648xf32> to vector<4x648xbf16>
    %cst_20 = arith.constant dense<0.000000e+00> : vector<4x648xf32>
    %53 = tpu.matmul %50, %52, %cst_20 {dimension_numbers = #tpu.dot_dimension_numbers<[1], [0], [0], [1], [0, 0, 1, 1], [], []>} : vector<4x4xbf16>, vector<4x648xbf16>, vector<4x648xf32> -> vector<4x648xf32>
    %54 = arith.addf %48, %53 : vector<4x648xf32>
    %c0_21 = arith.constant 0 : index
    %c0_22 = arith.constant 0 : index
    %55 = vector.load %arg2[%c0_21, %c0_22] : memref<4x1xf32, #tpu.memory_space<vmem>>, vector<4x1xf32>
    %56 = vector.broadcast %55 : vector<4x1xf32> to vector<4x648xf32>
    %57 = arith.addf %54, %56 : vector<4x648xf32>
    %cst_23 = arith.constant 0.000000e+00 : f32
    %58 = vector.broadcast %cst_23 : f32 to vector<4x648xf32>
    %59 = arith.maximumf %57, %58 : vector<4x648xf32>
    %60 = vector.broadcast %0 : vector<1x648xf32> to vector<4x648xf32>
    %61 = arith.mulf %59, %60 : vector<4x648xf32>
    %cst_24 = arith.constant dense<0.000000e+00> : vector<4xf32>
    %62 = vector.multi_reduction <add>, %61, %cst_24 [1] : vector<4x648xf32> to vector<4xf32>
    %63 = vector.shape_cast %62 : vector<4xf32> to vector<4x1xf32>
    %cst_25 = arith.constant 0.001953125 : f32
    %64 = vector.broadcast %cst_25 : f32 to vector<4x1xf32>
    %65 = arith.mulf %63, %64 : vector<4x1xf32>
    %66 = vector.broadcast %65 : vector<4x1xf32> to vector<4x648xf32>
    %67 = arith.subf %59, %66 : vector<4x648xf32>
    %68 = vector.broadcast %0 : vector<1x648xf32> to vector<4x648xf32>
    %69 = arith.mulf %67, %68 : vector<4x648xf32>
    %70 = arith.mulf %69, %69 : vector<4x648xf32>
    %cst_26 = arith.constant dense<0.000000e+00> : vector<4xf32>
    %71 = vector.multi_reduction <add>, %70, %cst_26 [1] : vector<4x648xf32> to vector<4xf32>
    %72 = vector.shape_cast %71 : vector<4xf32> to vector<4x1xf32>
    %cst_27 = arith.constant 0.001953125 : f32
    %73 = vector.broadcast %cst_27 : f32 to vector<4x1xf32>
    %74 = arith.mulf %72, %73 : vector<4x1xf32>
    %c0_28 = arith.constant 0 : index
    %c0_29 = arith.constant 0 : index
    %75 = vector.load %arg3[%c0_28, %c0_29] : memref<4x1xf32, #tpu.memory_space<vmem>>, vector<4x1xf32>
    %cst_30 = arith.constant 9.99999974E-6 : f32
    %76 = vector.broadcast %cst_30 : f32 to vector<4x1xf32>
    %77 = arith.addf %74, %76 : vector<4x1xf32>
    %78 = math.rsqrt %77 : vector<4x1xf32>
    %79 = arith.mulf %75, %78 : vector<4x1xf32>
    %c0_31 = arith.constant 0 : index
    %c0_32 = arith.constant 0 : index
    %80 = vector.load %arg4[%c0_31, %c0_32] : memref<4x1xf32, #tpu.memory_space<vmem>>, vector<4x1xf32>
    %81 = arith.mulf %65, %79 : vector<4x1xf32>
    %82 = arith.subf %80, %81 : vector<4x1xf32>
    %83 = vector.broadcast %79 : vector<4x1xf32> to vector<4x648xf32>
    %84 = arith.mulf %59, %83 : vector<4x648xf32>
    %85 = vector.broadcast %82 : vector<4x1xf32> to vector<4x648xf32>
    %86 = arith.addf %84, %85 : vector<4x648xf32>
    %87 = vector.broadcast %0 : vector<1x648xf32> to vector<4x648xf32>
    %88 = arith.mulf %86, %87 : vector<4x648xf32>
    %cst_33 = arith.constant 0.000000e+00 : f32
    %89 = vector.broadcast %cst_33 : f32 to vector<4x768xf32>
    %c0_34 = arith.constant 0 : index
    %c0_35 = arith.constant 0 : index
    %90 = vector.load %arg12[%c0_34, %c0_35] : memref<4x768xf32, #tpu.memory_space<vmem>>, vector<4x768xf32>
    tpu.vector_store %arg12[%c0_34, %c0_35], %89 {strides = array<i32>} : memref<4x768xf32, #tpu.memory_space<vmem>>, vector<4x768xf32>,
    %c0_36 = arith.constant 0 : index
    %c19_37 = arith.constant 19 : index
    %91 = vector.load %arg12[%c0_36, %c19_37] : memref<4x768xf32, #tpu.memory_space<vmem>>, vector<4x648xf32>
    tpu.vector_store %arg12[%c0_36, %c19_37], %88 {strides = array<i32>} : memref<4x768xf32, #tpu.memory_space<vmem>>, vector<4x648xf32>,
    %c0_38 = arith.constant 0 : index
    %c0_39 = arith.constant 0 : index
    %92 = vector.load %arg6[%c0_38, %c0_39] : memref<32x4xf32, #tpu.memory_space<vmem>>, vector<32x4xf32>
    %93 = arith.truncf %92 : vector<32x4xf32> to vector<32x4xbf16>
    %c0_40 = arith.constant 0 : index
    %c19_41 = arith.constant 19 : index
    %94 = vector.load %arg0[%c0_40, %c19_41] : memref<4x768xf32, #tpu.memory_space<vmem>>, vector<4x648xf32>
    %95 = arith.truncf %94 : vector<4x648xf32> to vector<4x648xbf16>
    %cst_42 = arith.constant dense<0.000000e+00> : vector<32x648xf32>
    %96 = tpu.matmul %93, %95, %cst_42 {dimension_numbers = #tpu.dot_dimension_numbers<[1], [0], [0], [1], [0, 0, 1, 1], [], []>} : vector<32x4xbf16>, vector<4x648xbf16>, vector<32x648xf32> -> vector<32x648xf32>
    %c0_43 = arith.constant 0 : index
    %c0_44 = arith.constant 0 : index
    %97 = vector.load %arg5[%c0_43, %c0_44] : memref<32x36xf32, #tpu.memory_space<vmem>>, vector<32x36xf32>
    %98 = vector.extract_strided_slice %97 {offsets = [0, 0], sizes = [32, 4], strides = [1, 1]} : vector<32x36xf32> to vector<32x4xf32>
    %99 = arith.truncf %98 : vector<32x4xf32> to vector<32x4xbf16>
    %c0_45 = arith.constant 0 : index
    %c19_46 = arith.constant 19 : index
    %100 = vector.load %arg12[%c0_45, %c19_46] : memref<4x768xf32, #tpu.memory_space<vmem>>, vector<4x648xf32>
    %101 = arith.truncf %100 : vector<4x648xf32> to vector<4x648xbf16>
    %cst_47 = arith.constant dense<0.000000e+00> : vector<32x648xf32>
    %102 = tpu.matmul %99, %101, %cst_47 {dimension_numbers = #tpu.dot_dimension_numbers<[1], [0], [0], [1], [0, 0, 1, 1], [], []>} : vector<32x4xbf16>, vector<4x648xbf16>, vector<32x648xf32> -> vector<32x648xf32>
    %103 = arith.addf %96, %102 : vector<32x648xf32>
    %104 = vector.extract_strided_slice %97 {offsets = [0, 4], sizes = [32, 4], strides = [1, 1]} : vector<32x36xf32> to vector<32x4xf32>
    %105 = arith.truncf %104 : vector<32x4xf32> to vector<32x4xbf16>
    %c0_48 = arith.constant 0 : index
    %c18_49 = arith.constant 18 : index
    %106 = vector.load %arg12[%c0_48, %c18_49] : memref<4x768xf32, #tpu.memory_space<vmem>>, vector<4x648xf32>
    %107 = arith.truncf %106 : vector<4x648xf32> to vector<4x648xbf16>
    %cst_50 = arith.constant dense<0.000000e+00> : vector<32x648xf32>
    %108 = tpu.matmul %105, %107, %cst_50 {dimension_numbers = #tpu.dot_dimension_numbers<[1], [0], [0], [1], [0, 0, 1, 1], [], []>} : vector<32x4xbf16>, vector<4x648xbf16>, vector<32x648xf32> -> vector<32x648xf32>
    %109 = arith.addf %103, %108 : vector<32x648xf32>
    %110 = vector.extract_strided_slice %97 {offsets = [0, 8], sizes = [32, 4], strides = [1, 1]} : vector<32x36xf32> to vector<32x4xf32>
    %111 = arith.truncf %110 : vector<32x4xf32> to vector<32x4xbf16>
    %c0_51 = arith.constant 0 : index
    %c1_52 = arith.constant 1 : index
    %112 = vector.load %arg12[%c0_51, %c1_52] : memref<4x768xf32, #tpu.memory_space<vmem>>, vector<4x648xf32>
    %113 = arith.truncf %112 : vector<4x648xf32> to vector<4x648xbf16>
    %cst_53 = arith.constant dense<0.000000e+00> : vector<32x648xf32>
    %114 = tpu.matmul %111, %113, %cst_53 {dimension_numbers = #tpu.dot_dimension_numbers<[1], [0], [0], [1], [0, 0, 1, 1], [], []>} : vector<32x4xbf16>, vector<4x648xbf16>, vector<32x648xf32> -> vector<32x648xf32>
    %115 = arith.addf %109, %114 : vector<32x648xf32>
    %116 = vector.extract_strided_slice %97 {offsets = [0, 12], sizes = [32, 4], strides = [1, 1]} : vector<32x36xf32> to vector<32x4xf32>
    %117 = arith.truncf %116 : vector<32x4xf32> to vector<32x4xbf16>
    %c0_54 = arith.constant 0 : index
    %c0_55 = arith.constant 0 : index
    %118 = vector.load %arg12[%c0_54, %c0_55] : memref<4x768xf32, #tpu.memory_space<vmem>>, vector<4x648xf32>
    %119 = arith.truncf %118 : vector<4x648xf32> to vector<4x648xbf16>
    %cst_56 = arith.constant dense<0.000000e+00> : vector<32x648xf32>
    %120 = tpu.matmul %117, %119, %cst_56 {dimension_numbers = #tpu.dot_dimension_numbers<[1], [0], [0], [1], [0, 0, 1, 1], [], []>} : vector<32x4xbf16>, vector<4x648xbf16>, vector<32x648xf32> -> vector<32x648xf32>
    %121 = arith.addf %115, %120 : vector<32x648xf32>
    %122 = vector.extract_strided_slice %97 {offsets = [0, 16], sizes = [32, 4], strides = [1, 1]} : vector<32x36xf32> to vector<32x4xf32>
    %123 = arith.truncf %122 : vector<32x4xf32> to vector<32x4xbf16>
    %c0_57 = arith.constant 0 : index
    %c20_58 = arith.constant 20 : index
    %124 = vector.load %arg12[%c0_57, %c20_58] : memref<4x768xf32, #tpu.memory_space<vmem>>, vector<4x648xf32>
    %125 = arith.truncf %124 : vector<4x648xf32> to vector<4x648xbf16>
    %cst_59 = arith.constant dense<0.000000e+00> : vector<32x648xf32>
    %126 = tpu.matmul %123, %125, %cst_59 {dimension_numbers = #tpu.dot_dimension_numbers<[1], [0], [0], [1], [0, 0, 1, 1], [], []>} : vector<32x4xbf16>, vector<4x648xbf16>, vector<32x648xf32> -> vector<32x648xf32>
    %127 = arith.addf %121, %126 : vector<32x648xf32>
    %128 = vector.extract_strided_slice %97 {offsets = [0, 20], sizes = [32, 4], strides = [1, 1]} : vector<32x36xf32> to vector<32x4xf32>
    %129 = arith.truncf %128 : vector<32x4xf32> to vector<32x4xbf16>
    %c0_60 = arith.constant 0 : index
    %c2_61 = arith.constant 2 : index
    %130 = vector.load %arg12[%c0_60, %c2_61] : memref<4x768xf32, #tpu.memory_space<vmem>>, vector<4x648xf32>
    %131 = arith.truncf %130 : vector<4x648xf32> to vector<4x648xbf16>
    %cst_62 = arith.constant dense<0.000000e+00> : vector<32x648xf32>
    %132 = tpu.matmul %129, %131, %cst_62 {dimension_numbers = #tpu.dot_dimension_numbers<[1], [0], [0], [1], [0, 0, 1, 1], [], []>} : vector<32x4xbf16>, vector<4x648xbf16>, vector<32x648xf32> -> vector<32x648xf32>
    %133 = arith.addf %127, %132 : vector<32x648xf32>
    %134 = vector.extract_strided_slice %97 {offsets = [0, 24], sizes = [32, 4], strides = [1, 1]} : vector<32x36xf32> to vector<32x4xf32>
    %135 = arith.truncf %134 : vector<32x4xf32> to vector<32x4xbf16>
    %c0_63 = arith.constant 0 : index
    %c37_64 = arith.constant 37 : index
    %136 = vector.load %arg12[%c0_63, %c37_64] : memref<4x768xf32, #tpu.memory_space<vmem>>, vector<4x648xf32>
    %137 = arith.truncf %136 : vector<4x648xf32> to vector<4x648xbf16>
    %cst_65 = arith.constant dense<0.000000e+00> : vector<32x648xf32>
    %138 = tpu.matmul %135, %137, %cst_65 {dimension_numbers = #tpu.dot_dimension_numbers<[1], [0], [0], [1], [0, 0, 1, 1], [], []>} : vector<32x4xbf16>, vector<4x648xbf16>, vector<32x648xf32> -> vector<32x648xf32>
    %139 = arith.addf %133, %138 : vector<32x648xf32>
    %140 = vector.extract_strided_slice %97 {offsets = [0, 28], sizes = [32, 4], strides = [1, 1]} : vector<32x36xf32> to vector<32x4xf32>
    %141 = arith.truncf %140 : vector<32x4xf32> to vector<32x4xbf16>
    %c0_66 = arith.constant 0 : index
    %c36_67 = arith.constant 36 : index
    %142 = vector.load %arg12[%c0_66, %c36_67] : memref<4x768xf32, #tpu.memory_space<vmem>>, vector<4x648xf32>
    %143 = arith.truncf %142 : vector<4x648xf32> to vector<4x648xbf16>
    %cst_68 = arith.constant dense<0.000000e+00> : vector<32x648xf32>
    %144 = tpu.matmul %141, %143, %cst_68 {dimension_numbers = #tpu.dot_dimension_numbers<[1], [0], [0], [1], [0, 0, 1, 1], [], []>} : vector<32x4xbf16>, vector<4x648xbf16>, vector<32x648xf32> -> vector<32x648xf32>
    %145 = arith.addf %139, %144 : vector<32x648xf32>
    %146 = vector.extract_strided_slice %97 {offsets = [0, 32], sizes = [32, 4], strides = [1, 1]} : vector<32x36xf32> to vector<32x4xf32>
    %147 = arith.truncf %146 : vector<32x4xf32> to vector<32x4xbf16>
    %c0_69 = arith.constant 0 : index
    %c38_70 = arith.constant 38 : index
    %148 = vector.load %arg12[%c0_69, %c38_70] : memref<4x768xf32, #tpu.memory_space<vmem>>, vector<4x648xf32>
    %149 = arith.truncf %148 : vector<4x648xf32> to vector<4x648xbf16>
    %cst_71 = arith.constant dense<0.000000e+00> : vector<32x648xf32>
    %150 = tpu.matmul %147, %149, %cst_71 {dimension_numbers = #tpu.dot_dimension_numbers<[1], [0], [0], [1], [0, 0, 1, 1], [], []>} : vector<32x4xbf16>, vector<4x648xbf16>, vector<32x648xf32> -> vector<32x648xf32>
    %151 = arith.addf %145, %150 : vector<32x648xf32>
    %c0_72 = arith.constant 0 : index
    %c0_73 = arith.constant 0 : index
    %152 = vector.load %arg7[%c0_72, %c0_73] : memref<32x1xf32, #tpu.memory_space<vmem>>, vector<32x1xf32>
    %153 = vector.broadcast %152 : vector<32x1xf32> to vector<32x648xf32>
    %154 = arith.addf %151, %153 : vector<32x648xf32>
    %cst_74 = arith.constant 0.000000e+00 : f32
    %155 = vector.broadcast %cst_74 : f32 to vector<32x648xf32>
    %156 = arith.maximumf %154, %155 : vector<32x648xf32>
    %157 = vector.broadcast %0 : vector<1x648xf32> to vector<32x648xf32>
    %158 = arith.mulf %156, %157 : vector<32x648xf32>
    %cst_75 = arith.constant dense<0.000000e+00> : vector<32xf32>
    %159 = vector.multi_reduction <add>, %158, %cst_75 [1] : vector<32x648xf32> to vector<32xf32>
    %160 = vector.shape_cast %159 : vector<32xf32> to vector<32x1xf32>
    %161 = vector.extract_strided_slice %160 {offsets = [0, 0], sizes = [8, 1], strides = [1, 1]} : vector<32x1xf32> to vector<8x1xf32>
    %162 = vector.extract_strided_slice %160 {offsets = [8, 0], sizes = [8, 1], strides = [1, 1]} : vector<32x1xf32> to vector<8x1xf32>
    %163 = arith.addf %161, %162 : vector<8x1xf32>
    %164 = vector.extract_strided_slice %160 {offsets = [16, 0], sizes = [8, 1], strides = [1, 1]} : vector<32x1xf32> to vector<8x1xf32>
    %165 = arith.addf %163, %164 : vector<8x1xf32>
    %166 = vector.extract_strided_slice %160 {offsets = [24, 0], sizes = [8, 1], strides = [1, 1]} : vector<32x1xf32> to vector<8x1xf32>
    %167 = arith.addf %165, %166 : vector<8x1xf32>
    %cst_76 = arith.constant 4.8828125E-4 : f32
    %168 = vector.broadcast %cst_76 : f32 to vector<8x1xf32>
    %169 = arith.mulf %167, %168 : vector<8x1xf32>
    %170 = vector.extract_strided_slice %156 {offsets = [0, 0], sizes = [8, 648], strides = [1, 1]} : vector<32x648xf32> to vector<8x648xf32>
    %171 = vector.broadcast %169 : vector<8x1xf32> to vector<8x648xf32>
    %172 = arith.subf %170, %171 : vector<8x648xf32>
    %173 = vector.broadcast %0 : vector<1x648xf32> to vector<8x648xf32>
    %174 = arith.mulf %172, %173 : vector<8x648xf32>
    %175 = arith.mulf %174, %174 : vector<8x648xf32>
    %cst_77 = arith.constant dense<0.000000e+00> : vector<8xf32>
    %176 = vector.multi_reduction <add>, %175, %cst_77 [1] : vector<8x648xf32> to vector<8xf32>
    %177 = vector.shape_cast %176 : vector<8xf32> to vector<8x1xf32>
    %178 = vector.extract_strided_slice %156 {offsets = [8, 0], sizes = [8, 648], strides = [1, 1]} : vector<32x648xf32> to vector<8x648xf32>
    %179 = vector.broadcast %169 : vector<8x1xf32> to vector<8x648xf32>
    %180 = arith.subf %178, %179 : vector<8x648xf32>
    %181 = vector.broadcast %0 : vector<1x648xf32> to vector<8x648xf32>
    %182 = arith.mulf %180, %181 : vector<8x648xf32>
    %183 = arith.mulf %182, %182 : vector<8x648xf32>
    %cst_78 = arith.constant dense<0.000000e+00> : vector<8xf32>
    %184 = vector.multi_reduction <add>, %183, %cst_78 [1] : vector<8x648xf32> to vector<8xf32>
    %185 = vector.shape_cast %184 : vector<8xf32> to vector<8x1xf32>
    %186 = arith.addf %177, %185 : vector<8x1xf32>
    %187 = vector.extract_strided_slice %156 {offsets = [16, 0], sizes = [8, 648], strides = [1, 1]} : vector<32x648xf32> to vector<8x648xf32>
    %188 = vector.broadcast %169 : vector<8x1xf32> to vector<8x648xf32>
    %189 = arith.subf %187, %188 : vector<8x648xf32>
    %190 = vector.broadcast %0 : vector<1x648xf32> to vector<8x648xf32>
    %191 = arith.mulf %189, %190 : vector<8x648xf32>
    %192 = arith.mulf %191, %191 : vector<8x648xf32>
    %cst_79 = arith.constant dense<0.000000e+00> : vector<8xf32>
    %193 = vector.multi_reduction <add>, %192, %cst_79 [1] : vector<8x648xf32> to vector<8xf32>
    %194 = vector.shape_cast %193 : vector<8xf32> to vector<8x1xf32>
    %195 = arith.addf %186, %194 : vector<8x1xf32>
    %196 = vector.extract_strided_slice %156 {offsets = [24, 0], sizes = [8, 648], strides = [1, 1]} : vector<32x648xf32> to vector<8x648xf32>
    %197 = vector.broadcast %169 : vector<8x1xf32> to vector<8x648xf32>
    %198 = arith.subf %196, %197 : vector<8x648xf32>
    %199 = vector.broadcast %0 : vector<1x648xf32> to vector<8x648xf32>
    %200 = arith.mulf %198, %199 : vector<8x648xf32>
    %201 = arith.mulf %200, %200 : vector<8x648xf32>
    %cst_80 = arith.constant dense<0.000000e+00> : vector<8xf32>
    %202 = vector.multi_reduction <add>, %201, %cst_80 [1] : vector<8x648xf32> to vector<8xf32>
    %203 = vector.shape_cast %202 : vector<8xf32> to vector<8x1xf32>
    %204 = arith.addf %195, %203 : vector<8x1xf32>
    %cst_81 = arith.constant 4.8828125E-4 : f32
    %205 = vector.broadcast %cst_81 : f32 to vector<8x1xf32>
    %206 = arith.mulf %204, %205 : vector<8x1xf32>
    %c0_82 = arith.constant 0 : index
    %c0_83 = arith.constant 0 : index
    %207 = vector.load %arg8[%c0_82, %c0_83] : memref<8x1xf32, #tpu.memory_space<vmem>>, vector<8x1xf32>
    %cst_84 = arith.constant 9.99999974E-6 : f32
    %208 = vector.broadcast %cst_84 : f32 to vector<8x1xf32>
    %209 = arith.addf %206, %208 : vector<8x1xf32>
    %210 = math.rsqrt %209 : vector<8x1xf32>
    %211 = arith.mulf %207, %210 : vector<8x1xf32>
    %c0_85 = arith.constant 0 : index
    %c0_86 = arith.constant 0 : index
    %212 = vector.load %arg9[%c0_85, %c0_86] : memref<8x1xf32, #tpu.memory_space<vmem>>, vector<8x1xf32>
    %213 = arith.mulf %169, %211 : vector<8x1xf32>
    %214 = arith.subf %212, %213 : vector<8x1xf32>
    %215 = vector.extract_strided_slice %156 {offsets = [0, 0], sizes = [8, 648], strides = [1, 1]} : vector<32x648xf32> to vector<8x648xf32>
    %216 = vector.broadcast %211 : vector<8x1xf32> to vector<8x648xf32>
    %217 = arith.mulf %215, %216 : vector<8x648xf32>
    %218 = vector.broadcast %214 : vector<8x1xf32> to vector<8x648xf32>
    %219 = arith.addf %217, %218 : vector<8x648xf32>
    %c0_87 = arith.constant 0 : index
    %c0_88 = arith.constant 0 : index
    %220 = vector.load %arg11[%c0_87, %c0_88] : memref<32x648xf32, #tpu.memory_space<vmem>>, vector<8x648xf32>
    tpu.vector_store %arg11[%c0_87, %c0_88], %219 {strides = array<i32>} : memref<32x648xf32, #tpu.memory_space<vmem>>, vector<8x648xf32>,
    %221 = vector.extract_strided_slice %156 {offsets = [8, 0], sizes = [8, 648], strides = [1, 1]} : vector<32x648xf32> to vector<8x648xf32>
    %222 = vector.broadcast %211 : vector<8x1xf32> to vector<8x648xf32>
    %223 = arith.mulf %221, %222 : vector<8x648xf32>
    %224 = vector.broadcast %214 : vector<8x1xf32> to vector<8x648xf32>
    %225 = arith.addf %223, %224 : vector<8x648xf32>
    %c8 = arith.constant 8 : index
    %c0_89 = arith.constant 0 : index
    %226 = vector.load %arg11[%c8, %c0_89] : memref<32x648xf32, #tpu.memory_space<vmem>>, vector<8x648xf32>
    tpu.vector_store %arg11[%c8, %c0_89], %225 {strides = array<i32>} : memref<32x648xf32, #tpu.memory_space<vmem>>, vector<8x648xf32>,
    %227 = vector.extract_strided_slice %156 {offsets = [16, 0], sizes = [8, 648], strides = [1, 1]} : vector<32x648xf32> to vector<8x648xf32>
    %228 = vector.broadcast %211 : vector<8x1xf32> to vector<8x648xf32>
    %229 = arith.mulf %227, %228 : vector<8x648xf32>
    %230 = vector.broadcast %214 : vector<8x1xf32> to vector<8x648xf32>
    %231 = arith.addf %229, %230 : vector<8x648xf32>
    %c16 = arith.constant 16 : index
    %c0_90 = arith.constant 0 : index
    %232 = vector.load %arg11[%c16, %c0_90] : memref<32x648xf32, #tpu.memory_space<vmem>>, vector<8x648xf32>
    tpu.vector_store %arg11[%c16, %c0_90], %231 {strides = array<i32>} : memref<32x648xf32, #tpu.memory_space<vmem>>, vector<8x648xf32>,
    %233 = vector.extract_strided_slice %156 {offsets = [24, 0], sizes = [8, 648], strides = [1, 1]} : vector<32x648xf32> to vector<8x648xf32>
    %234 = vector.broadcast %211 : vector<8x1xf32> to vector<8x648xf32>
    %235 = arith.mulf %233, %234 : vector<8x648xf32>
    %236 = vector.broadcast %214 : vector<8x1xf32> to vector<8x648xf32>
    %237 = arith.addf %235, %236 : vector<8x648xf32>
    %c24 = arith.constant 24 : index
    %c0_91 = arith.constant 0 : index
    %238 = vector.load %arg11[%c24, %c0_91] : memref<32x648xf32, #tpu.memory_space<vmem>>, vector<8x648xf32>
    tpu.vector_store %arg11[%c24, %c0_91], %237 {strides = array<i32>} : memref<32x648xf32, #tpu.memory_space<vmem>>, vector<8x648xf32>,
    return
  }
}

</mosaic_0001>

<llo_original>
// kernel: _forward.1
$region0: #{_forward.1}
  #allocation0 [shape = 'u32[]', space=smem, size = 0x4, offset = 0x4, fixed_abs, tag = 'smem constant byte address 0x4 - core index']
  #allocation1 [shape = 'u32[144,128]{1,0:T(1,128)}', space=vmem, size = 0x12000, scoped, tag = 'internal scratch']
  #allocation2 [shape = 'f32[4,768]{1,0:T(4,128)}', space=vmem, size = 0x3000, scoped, tag = 'scratch operand']
  %s0 = inlined_call_operand.vmem [shape: f32[4,768], index: 0, kind: input, shape index: {}]
  %s1 = inlined_call_operand.vmem [shape: f32[4,36], index: 1, kind: input, shape index: {}]
  %s2 = inlined_call_operand.vmem [shape: f32[4,1], index: 2, kind: input, shape index: {}]
  %s3 = inlined_call_operand.vmem [shape: f32[4,1], index: 3, kind: input, shape index: {}]
  %s4 = inlined_call_operand.vmem [shape: f32[4,1], index: 4, kind: input, shape index: {}]
  %s5 = inlined_call_operand.vmem [shape: f32[32,36], index: 5, kind: input, shape index: {}]
  %s6 = inlined_call_operand.vmem [shape: f32[32,4], index: 6, kind: input, shape index: {}]
  %s7 = inlined_call_operand.vmem [shape: f32[32,1], index: 7, kind: input, shape index: {}]
  %s8 = inlined_call_operand.vmem [shape: f32[8,1], index: 8, kind: input, shape index: {}]
  %s9 = inlined_call_operand.vmem [shape: f32[8,1], index: 9, kind: input, shape index: {}]
  %s10 = inlined_call_operand.vmem [shape: f32[1,648], index: 10, kind: input, shape index: {}]
  %s11 = inlined_call_operand.vmem [shape: f32[32,648], index: 11, kind: output, shape index: {}]
  %s12 = sld [smem:[#allocation0]]
  $region54: #{_forward.1} parent=0
    _
  %s14 = ssub.s32 1, %s12
  %s15 = scalar_select 0, %s14, %s12
  // Predicated region
  $region2: #{_forward.1} parent=0 // pred_check
    _
  $region3: #{_forward.1} parent=0 // pred_check_branch
    %17 = sbr.rel (0) target = $region5
  $region4: #{_forward.1} parent=0 // pred_region
    _
  $region5: #{_forward.1} parent=0 // pred_fallthru
    _
  // Predicated region
  $region6: #{_forward.1} parent=0 // pred_check
    _
  $region7: #{_forward.1} parent=0 // pred_check_branch
    %19 = sbr.rel (0) target = $region9
  $region8: #{_forward.1} parent=0 // pred_region
    _
  $region9: #{_forward.1} parent=0 // pred_fallthru
    _
  // Predicated region
  $region10: #{_forward.1} parent=0 // pred_check
    _
  $region11: #{_forward.1} parent=0 // pred_check_branch
    %21 = sbr.rel (0) target = $region13
  $region12: #{_forward.1} parent=0 // pred_region
    _
  $region13: #{_forward.1} parent=0 // pred_fallthru
    _
  // Predicated region
  $region14: #{_forward.1} parent=0 // pred_check
    _
  $region15: #{_forward.1} parent=0 // pred_check_branch
    %23 = sbr.rel (0) target = $region17
  $region16: #{_forward.1} parent=0 // pred_region
    _
  $region17: #{_forward.1} parent=0 // pred_fallthru
    _
  // Predicated region
  $region18: #{_forward.1} parent=0 // pred_check
    _
  $region19: #{_forward.1} parent=0 // pred_check_branch
    %25 = sbr.rel (0) target = $region21
  $region20: #{_forward.1} parent=0 // pred_region
    _
  $region21: #{_forward.1} parent=0 // pred_fallthru
    _
  // Predicated region
  $region22: #{_forward.1} parent=0 // pred_check
    _
  $region23: #{_forward.1} parent=0 // pred_check_branch
    %27 = sbr.rel (0) target = $region25
  $region24: #{_forward.1} parent=0 // pred_region
    _
  $region25: #{_forward.1} parent=0 // pred_fallthru
    _
  // Predicated region
  $region26: #{_forward.1} parent=0 // pred_check
    _
  $region27: #{_forward.1} parent=0 // pred_check_branch
    %29 = sbr.rel (0) target = $region29
  $region28: #{_forward.1} parent=0 // pred_region
    _
  $region29: #{_forward.1} parent=0 // pred_fallthru
    _
  // Predicated region
  $region30: #{_forward.1} parent=0 // pred_check
    _
  $region31: #{_forward.1} parent=0 // pred_check_branch
    %31 = sbr.rel (0) target = $region33
  $region32: #{_forward.1} parent=0 // pred_region
    _
  $region33: #{_forward.1} parent=0 // pred_fallthru
    _
  // Predicated region
  $region34: #{_forward.1} parent=0 // pred_check
    _
  $region35: #{_forward.1} parent=0 // pred_check_branch
    %33 = sbr.rel (0) target = $region37
  $region36: #{_forward.1} parent=0 // pred_region
    _
  $region37: #{_forward.1} parent=0 // pred_fallthru
    _
  // Predicated region
  $region38: #{_forward.1} parent=0 // pred_check
    _
  $region39: #{_forward.1} parent=0 // pred_check_branch
    %35 = sbr.rel (0) target = $region41
  $region40: #{_forward.1} parent=0 // pred_region
    _
  $region41: #{_forward.1} parent=0 // pred_fallthru
    _
  // Predicated region
  $region42: #{_forward.1} parent=0 // pred_check
    _
  $region43: #{_forward.1} parent=0 // pred_check_branch
    %37 = sbr.rel (0) target = $region45
  $region44: #{_forward.1} parent=0 // pred_region
    _
  $region45: #{_forward.1} parent=0 // pred_fallthru
    _
  %v39 = vld [vmem:[%s10] sm:$0x3f]
  %v40 = vld [vmem:[%s1] sm:$0xf]
  %v41 = vpack.c.bf16 %v40, %v40
  %v42 = vld [vmem:[%s0] sm:$0xff]
  %v43 = vld [vmem:[%s0 + $0x8] sm:$0xff]
  %v44 = vld [vmem:[%s0 + $0x10] sm:$0xff]
  %v48 = vcombine.high %v42, %v42
  %v49 = vcombine.high %v43, %v43
  %v50 = vcombine.high %v44, %v44
  %v54 = vpack.c.bf16 %v42, %v42
  %v55 = vpack.c.bf16 %v48, %v48
  %v56 = vpack.c.bf16 %v43, %v43
  %v57 = vpack.c.bf16 %v49, %v49
  %v58 = vpack.c.bf16 %v44, %v44
  %v59 = vpack.c.bf16 %v50, %v50
  %61 = vrot.lane.b32.xlu0 %v41, 124
  %v62 = vpop.permute.xlu0 %61
  %69 = vrot.lane.b32.xlu0 %v54, 127
  %v70 = vpop.permute.xlu0 %69
  %71 = vrot.lane.b32.xlu0 %v55, 127
  %v72 = vpop.permute.xlu0 %71
  %73 = vrot.lane.b32.xlu0 %v56, 127
  %v74 = vpop.permute.xlu0 %73
  %75 = vrot.lane.b32.xlu0 %v57, 127
  %v76 = vpop.permute.xlu0 %75
  %77 = vrot.lane.b32.xlu0 %v58, 127
  %v78 = vpop.permute.xlu0 %77
  %79 = vrot.lane.b32.xlu0 %v59, 127
  %v80 = vpop.permute.xlu0 %79
  %vm81 = vcmask 1039360
  %v82 = vsel %vm81, %v70, %v72
  %v83 = vsel %vm81, %v72, %v74
  %v84 = vsel %vm81, %v74, %v76
  %v85 = vsel %vm81, %v76, %v78
  %v86 = vsel %vm81, %v78, %v80
  %vm87 = vcmask 31744
  %v89 = vsel %vm87, %v62, 0
  %vm91 = vcmask 1041408
  %v93 = vsel %vm91, %v82, 0
  %v96 = vsel %vm91, %v83, 0
  %v99 = vsel %vm91, %v84, 0
  %v102 = vsel %vm91, %v85, 0
  %v105 = vsel %vm91, %v86, 0
  %v108 = vsel %vm91, %v80, 0
  %110 = vmatprep.subr.bf16.mxu0 %v96
  %111 = vmatpush1.bf16.msra.mxu0 %v93
  %112 = vmatprep.subr.bf16.mxu0 0
  %113 = vmatpush1.bf16.msra.mxu0 0
  %114 = vmatprep.subr.bf16.mxu0 0
  %115 = vmatpush1.bf16.msra.mxu0 0
  %116 = vmatprep.subr.bf16.mxu0 0
  %117 = vmatpush1.bf16.msra.mxu0 0
  %118 = vmatprep.subr.bf16.mxu0 0
  %119 = vmatpush1.bf16.msra.mxu0 0
  %120 = vmatprep.subr.bf16.mxu0 0
  %121 = vmatpush1.bf16.msra.mxu0 0
  %122 = vmatprep.subr.bf16.mxu0 0
  %123 = vmatpush1.bf16.msra.mxu0 0
  %124 = vmatprep.subr.bf16.mxu0 0
  %125 = vmatpush1.bf16.msra.mxu0 0
  %126 = vmatprep.subr.bf16.mxu0 0
  %127 = vmatpush1.bf16.msra.mxu0 0
  %128 = vmatprep.subr.bf16.mxu0 0
  %129 = vmatpush1.bf16.msra.mxu0 0
  %130 = vmatprep.subr.bf16.mxu0 0
  %131 = vmatpush1.bf16.msra.mxu0 0
  %132 = vmatprep.subr.bf16.mxu0 0
  %133 = vmatpush1.bf16.msra.mxu0 0
  %134 = vmatprep.subr.bf16.mxu0 0
  %135 = vmatpush1.bf16.msra.mxu0 0
  %136 = vmatprep.subr.bf16.mxu0 0
  %137 = vmatpush1.bf16.msra.mxu0 0
  %138 = vmatprep.subr.bf16.mxu0 0
  %139 = vmatpush1.bf16.msra.mxu0 0
  %140 = vmatprep.subr.bf16.mxu0 0
  %141 = vmatpush1.bf16.msra.mxu0 0
  %142 = vmatprep.mubr.bf16.mxu0 0
  %143 = vmatmul.mubr.bf16.gmra.mrb[0].mxu0 %v89
  %v144 = vpop.f32.mrb[0].mxu0
  %v145 = vadd.f32 0.0, %v144
  %v146 = vpop.f32.mrb[0].mxu0
  %v147 = vadd.f32 0.0, %v146
  %v148 = vpop.f32.mrb[0].mxu0
  %v149 = vpop.f32.mrb[0].mxu0
  %150 = vdwg.mxu0
  %151 = vmatprep.subr.bf16.mxu0 %v102
  %152 = vmatpush1.bf16.msra.mxu0 %v99
  %153 = vmatprep.subr.bf16.mxu0 0
  %154 = vmatpush1.bf16.msra.mxu0 0
  %155 = vmatprep.subr.bf16.mxu0 0
  %156 = vmatpush1.bf16.msra.mxu0 0
  %157 = vmatprep.subr.bf16.mxu0 0
  %158 = vmatpush1.bf16.msra.mxu0 0
  %159 = vmatprep.subr.bf16.mxu0 0
  %160 = vmatpush1.bf16.msra.mxu0 0
  %161 = vmatprep.subr.bf16.mxu0 0
  %162 = vmatpush1.bf16.msra.mxu0 0
  %163 = vmatprep.subr.bf16.mxu0 0
  %164 = vmatpush1.bf16.msra.mxu0 0
  %165 = vmatprep.subr.bf16.mxu0 0
  %166 = vmatpush1.bf16.msra.mxu0 0
  %167 = vmatprep.subr.bf16.mxu0 0
  %168 = vmatpush1.bf16.msra.mxu0 0
  %169 = vmatprep.subr.bf16.mxu0 0
  %170 = vmatpush1.bf16.msra.mxu0 0
  %171 = vmatprep.subr.bf16.mxu0 0
  %172 = vmatpush1.bf16.msra.mxu0 0
  %173 = vmatprep.subr.bf16.mxu0 0
  %174 = vmatpush1.bf16.msra.mxu0 0
  %175 = vmatprep.subr.bf16.mxu0 0
  %176 = vmatpush1.bf16.msra.mxu0 0
  %177 = vmatprep.subr.bf16.mxu0 0
  %178 = vmatpush1.bf16.msra.mxu0 0
  %179 = vmatprep.subr.bf16.mxu0 0
  %180 = vmatpush1.bf16.msra.mxu0 0
  %181 = vmatprep.subr.bf16.mxu0 0
  %182 = vmatpush1.bf16.msra.mxu0 0
  %183 = vmatprep.mubr.bf16.mxu0 0
  %184 = vmatmul.mubr.bf16.gmra.mrb[0].mxu0 %v89
  %v185 = vpop.f32.mrb[0].mxu0
  %v186 = vadd.f32 0.0, %v185
  %v187 = vpop.f32.mrb[0].mxu0
  %v188 = vadd.f32 0.0, %v187
  %v189 = vpop.f32.mrb[0].mxu0
  %v190 = vpop.f32.mrb[0].mxu0
  %191 = vdwg.mxu0
  %192 = vmatprep.subr.bf16.mxu0 %v108
  %193 = vmatpush1.bf16.msra.mxu0 %v105
  %194 = vmatprep.subr.bf16.mxu0 0
  %195 = vmatpush1.bf16.msra.mxu0 0
  %196 = vmatprep.subr.bf16.mxu0 0
  %197 = vmatpush1.bf16.msra.mxu0 0
  %198 = vmatprep.subr.bf16.mxu0 0
  %199 = vmatpush1.bf16.msra.mxu0 0
  %200 = vmatprep.subr.bf16.mxu0 0
  %201 = vmatpush1.bf16.msra.mxu0 0
  %202 = vmatprep.subr.bf16.mxu0 0
  %203 = vmatpush1.bf16.msra.mxu0 0
  %204 = vmatprep.subr.bf16.mxu0 0
  %205 = vmatpush1.bf16.msra.mxu0 0
  %206 = vmatprep.subr.bf16.mxu0 0
  %207 = vmatpush1.bf16.msra.mxu0 0
  %208 = vmatprep.subr.bf16.mxu0 0
  %209 = vmatpush1.bf16.msra.mxu0 0
  %210 = vmatprep.subr.bf16.mxu0 0
  %211 = vmatpush1.bf16.msra.mxu0 0
  %212 = vmatprep.subr.bf16.mxu0 0
  %213 = vmatpush1.bf16.msra.mxu0 0
  %214 = vmatprep.subr.bf16.mxu0 0
  %215 = vmatpush1.bf16.msra.mxu0 0
  %216 = vmatprep.subr.bf16.mxu0 0
  %217 = vmatpush1.bf16.msra.mxu0 0
  %218 = vmatprep.subr.bf16.mxu0 0
  %219 = vmatpush1.bf16.msra.mxu0 0
  %220 = vmatprep.subr.bf16.mxu0 0
  %221 = vmatpush1.bf16.msra.mxu0 0
  %222 = vmatprep.subr.bf16.mxu0 0
  %223 = vmatpush1.bf16.msra.mxu0 0
  %224 = vmatprep.mubr.bf16.mxu0 0
  %225 = vmatmul.mubr.bf16.gmra.mrb[0].mxu0 %v89
  %v226 = vpop.f32.mrb[0].mxu0
  %v227 = vadd.f32 0.0, %v226
  %v228 = vpop.f32.mrb[0].mxu0
  %v229 = vadd.f32 0.0, %v228
  %v230 = vpop.f32.mrb[0].mxu0
  %v231 = vpop.f32.mrb[0].mxu0
  %232 = vdwg.mxu0
  %v234 = vsel %vm87, %v41, 0
  %v237 = vsel %vm91, %v54, 0
  %v240 = vsel %vm91, %v55, 0
  %v243 = vsel %vm91, %v56, 0
  %v246 = vsel %vm91, %v57, 0
  %v249 = vsel %vm91, %v58, 0
  %v252 = vsel %vm91, %v59, 0
  %254 = vmatprep.subr.bf16.mxu0 %v240
  %255 = vmatpush1.bf16.msra.mxu0 %v237
  %256 = vmatprep.subr.bf16.mxu0 0
  %257 = vmatpush1.bf16.msra.mxu0 0
  %258 = vmatprep.subr.bf16.mxu0 0
  %259 = vmatpush1.bf16.msra.mxu0 0
  %260 = vmatprep.subr.bf16.mxu0 0
  %261 = vmatpush1.bf16.msra.mxu0 0
  %262 = vmatprep.subr.bf16.mxu0 0
  %263 = vmatpush1.bf16.msra.mxu0 0
  %264 = vmatprep.subr.bf16.mxu0 0
  %265 = vmatpush1.bf16.msra.mxu0 0
  %266 = vmatprep.subr.bf16.mxu0 0
  %267 = vmatpush1.bf16.msra.mxu0 0
  %268 = vmatprep.subr.bf16.mxu0 0
  %269 = vmatpush1.bf16.msra.mxu0 0
  %270 = vmatprep.subr.bf16.mxu0 0
  %271 = vmatpush1.bf16.msra.mxu0 0
  %272 = vmatprep.subr.bf16.mxu0 0
  %273 = vmatpush1.bf16.msra.mxu0 0
  %274 = vmatprep.subr.bf16.mxu0 0
  %275 = vmatpush1.bf16.msra.mxu0 0
  %276 = vmatprep.subr.bf16.mxu0 0
  %277 = vmatpush1.bf16.msra.mxu0 0
  %278 = vmatprep.subr.bf16.mxu0 0
  %279 = vmatpush1.bf16.msra.mxu0 0
  %280 = vmatprep.subr.bf16.mxu0 0
  %281 = vmatpush1.bf16.msra.mxu0 0
  %282 = vmatprep.subr.bf16.mxu0 0
  %283 = vmatpush1.bf16.msra.mxu0 0
  %284 = vmatprep.subr.bf16.mxu0 0
  %285 = vmatpush1.bf16.msra.mxu0 0
  %286 = vmatprep.mubr.bf16.mxu0 0
  %287 = vmatmul.mubr.bf16.gmra.mrb[0].mxu0 %v234
  %v288 = vpop.f32.mrb[0].mxu0
  %v289 = vadd.f32 %v145, %v288
  %v290 = vpop.f32.mrb[0].mxu0
  %v291 = vadd.f32 %v147, %v290
  %v292 = vpop.f32.mrb[0].mxu0
  %v293 = vpop.f32.mrb[0].mxu0
  %294 = vdwg.mxu0
  %295 = vmatprep.subr.bf16.mxu0 %v246
  %296 = vmatpush1.bf16.msra.mxu0 %v243
  %297 = vmatprep.subr.bf16.mxu0 0
  %298 = vmatpush1.bf16.msra.mxu0 0
  %299 = vmatprep.subr.bf16.mxu0 0
  %300 = vmatpush1.bf16.msra.mxu0 0
  %301 = vmatprep.subr.bf16.mxu0 0
  %302 = vmatpush1.bf16.msra.mxu0 0
  %303 = vmatprep.subr.bf16.mxu0 0
  %304 = vmatpush1.bf16.msra.mxu0 0
  %305 = vmatprep.subr.bf16.mxu0 0
  %306 = vmatpush1.bf16.msra.mxu0 0
  %307 = vmatprep.subr.bf16.mxu0 0
  %308 = vmatpush1.bf16.msra.mxu0 0
  %309 = vmatprep.subr.bf16.mxu0 0
  %310 = vmatpush1.bf16.msra.mxu0 0
  %311 = vmatprep.subr.bf16.mxu0 0
  %312 = vmatpush1.bf16.msra.mxu0 0
  %313 = vmatprep.subr.bf16.mxu0 0
  %314 = vmatpush1.bf16.msra.mxu0 0
  %315 = vmatprep.subr.bf16.mxu0 0
  %316 = vmatpush1.bf16.msra.mxu0 0
  %317 = vmatprep.subr.bf16.mxu0 0
  %318 = vmatpush1.bf16.msra.mxu0 0
  %319 = vmatprep.subr.bf16.mxu0 0
  %320 = vmatpush1.bf16.msra.mxu0 0
  %321 = vmatprep.subr.bf16.mxu0 0
  %322 = vmatpush1.bf16.msra.mxu0 0
  %323 = vmatprep.subr.bf16.mxu0 0
  %324 = vmatpush1.bf16.msra.mxu0 0
  %325 = vmatprep.subr.bf16.mxu0 0
  %326 = vmatpush1.bf16.msra.mxu0 0
  %327 = vmatprep.mubr.bf16.mxu0 0
  %328 = vmatmul.mubr.bf16.gmra.mrb[0].mxu0 %v234
  %v329 = vpop.f32.mrb[0].mxu0
  %v330 = vadd.f32 %v186, %v329
  %v331 = vpop.f32.mrb[0].mxu0
  %v332 = vadd.f32 %v188, %v331
  %v333 = vpop.f32.mrb[0].mxu0
  %v334 = vpop.f32.mrb[0].mxu0
  %335 = vdwg.mxu0
  %336 = vmatprep.subr.bf16.mxu0 %v252
  %337 = vmatpush1.bf16.msra.mxu0 %v249
  %338 = vmatprep.subr.bf16.mxu0 0
  %339 = vmatpush1.bf16.msra.mxu0 0
  %340 = vmatprep.subr.bf16.mxu0 0
  %341 = vmatpush1.bf16.msra.mxu0 0
  %342 = vmatprep.subr.bf16.mxu0 0
  %343 = vmatpush1.bf16.msra.mxu0 0
  %344 = vmatprep.subr.bf16.mxu0 0
  %345 = vmatpush1.bf16.msra.mxu0 0
  %346 = vmatprep.subr.bf16.mxu0 0
  %347 = vmatpush1.bf16.msra.mxu0 0
  %348 = vmatprep.subr.bf16.mxu0 0
  %349 = vmatpush1.bf16.msra.mxu0 0
  %350 = vmatprep.subr.bf16.mxu0 0
  %351 = vmatpush1.bf16.msra.mxu0 0
  %352 = vmatprep.subr.bf16.mxu0 0
  %353 = vmatpush1.bf16.msra.mxu0 0
  %354 = vmatprep.subr.bf16.mxu0 0
  %355 = vmatpush1.bf16.msra.mxu0 0
  %356 = vmatprep.subr.bf16.mxu0 0
  %357 = vmatpush1.bf16.msra.mxu0 0
  %358 = vmatprep.subr.bf16.mxu0 0
  %359 = vmatpush1.bf16.msra.mxu0 0
  %360 = vmatprep.subr.bf16.mxu0 0
  %361 = vmatpush1.bf16.msra.mxu0 0
  %362 = vmatprep.subr.bf16.mxu0 0
  %363 = vmatpush1.bf16.msra.mxu0 0
  %364 = vmatprep.subr.bf16.mxu0 0
  %365 = vmatpush1.bf16.msra.mxu0 0
  %366 = vmatprep.subr.bf16.mxu0 0
  %367 = vmatpush1.bf16.msra.mxu0 0
  %368 = vmatprep.mubr.bf16.mxu0 0
  %369 = vmatmul.mubr.bf16.gmra.mrb[0].mxu0 %v234
  %v370 = vpop.f32.mrb[0].mxu0
  %v371 = vadd.f32 %v227, %v370
  %v372 = vpop.f32.mrb[0].mxu0
  %v373 = vadd.f32 %v229, %v372
  %v374 = vpop.f32.mrb[0].mxu0
  %v375 = vpop.f32.mrb[0].mxu0
  %376 = vdwg.mxu0
  %v377 = vld [vmem:[%s0] sm:$0xff]
  %v378 = vld [vmem:[%s0 + $0x8] sm:$0xff]
  %v379 = vld [vmem:[%s0 + $0x10] sm:$0xff]
  %v383 = vcombine.high %v377, %v377
  %v384 = vcombine.high %v378, %v378
  %v385 = vcombine.high %v379, %v379
  %v389 = vpack.c.bf16 %v377, %v377
  %v390 = vpack.c.bf16 %v383, %v383
  %v391 = vpack.c.bf16 %v378, %v378
  %v392 = vpack.c.bf16 %v384, %v384
  %v393 = vpack.c.bf16 %v379, %v379
  %v394 = vpack.c.bf16 %v385, %v385
  %395 = vrot.lane.b32.xlu0 %v41, 120
  %v396 = vpop.permute.xlu0 %395
  %403 = vrot.lane.b32.xlu0 %v389, 126
  %v404 = vpop.permute.xlu0 %403
  %405 = vrot.lane.b32.xlu0 %v390, 126
  %v406 = vpop.permute.xlu0 %405
  %407 = vrot.lane.b32.xlu0 %v391, 126
  %v408 = vpop.permute.xlu0 %407
  %409 = vrot.lane.b32.xlu0 %v392, 126
  %v410 = vpop.permute.xlu0 %409
  %411 = vrot.lane.b32.xlu0 %v393, 126
  %v412 = vpop.permute.xlu0 %411
  %413 = vrot.lane.b32.xlu0 %v394, 126
  %v414 = vpop.permute.xlu0 %413
  %vm415 = vcmask 1031168
  %v416 = vsel %vm415, %v404, %v406
  %v417 = vsel %vm415, %v406, %v408
  %v418 = vsel %vm415, %v408, %v410
  %v419 = vsel %vm415, %v410, %v412
  %v420 = vsel %vm415, %v412, %v414
  %v422 = vsel %vm87, %v396, 0
  %v425 = vsel %vm91, %v416, 0
  %v428 = vsel %vm91, %v417, 0
  %v431 = vsel %vm91, %v418, 0
  %v434 = vsel %vm91, %v419, 0
  %v437 = vsel %vm91, %v420, 0
  %v440 = vsel %vm91, %v414, 0
  %442 = vmatprep.subr.bf16.mxu0 %v428
  %443 = vmatpush1.bf16.msra.mxu0 %v425
  %444 = vmatprep.subr.bf16.mxu0 0
  %445 = vmatpush1.bf16.msra.mxu0 0
  %446 = vmatprep.subr.bf16.mxu0 0
  %447 = vmatpush1.bf16.msra.mxu0 0
  %448 = vmatprep.subr.bf16.mxu0 0
  %449 = vmatpush1.bf16.msra.mxu0 0
  %450 = vmatprep.subr.bf16.mxu0 0
  %451 = vmatpush1.bf16.msra.mxu0 0
  %452 = vmatprep.subr.bf16.mxu0 0
  %453 = vmatpush1.bf16.msra.mxu0 0
  %454 = vmatprep.subr.bf16.mxu0 0
  %455 = vmatpush1.bf16.msra.mxu0 0
  %456 = vmatprep.subr.bf16.mxu0 0
  %457 = vmatpush1.bf16.msra.mxu0 0
  %458 = vmatprep.subr.bf16.mxu0 0
  %459 = vmatpush1.bf16.msra.mxu0 0
  %460 = vmatprep.subr.bf16.mxu0 0
  %461 = vmatpush1.bf16.msra.mxu0 0
  %462 = vmatprep.subr.bf16.mxu0 0
  %463 = vmatpush1.bf16.msra.mxu0 0
  %464 = vmatprep.subr.bf16.mxu0 0
  %465 = vmatpush1.bf16.msra.mxu0 0
  %466 = vmatprep.subr.bf16.mxu0 0
  %467 = vmatpush1.bf16.msra.mxu0 0
  %468 = vmatprep.subr.bf16.mxu0 0
  %469 = vmatpush1.bf16.msra.mxu0 0
  %470 = vmatprep.subr.bf16.mxu0 0
  %471 = vmatpush1.bf16.msra.mxu0 0
  %472 = vmatprep.subr.bf16.mxu0 0
  %473 = vmatpush1.bf16.msra.mxu0 0
  %474 = vmatprep.mubr.bf16.mxu0 0
  %475 = vmatmul.mubr.bf16.gmra.mrb[0].mxu0 %v422
  %v476 = vpop.f32.mrb[0].mxu0
  %v477 = vadd.f32 0.0, %v476
  %v478 = vpop.f32.mrb[0].mxu0
  %v479 = vadd.f32 0.0, %v478
  %v480 = vpop.f32.mrb[0].mxu0
  %v481 = vpop.f32.mrb[0].mxu0
  %482 = vdwg.mxu0
  %483 = vmatprep.subr.bf16.mxu0 %v434
  %484 = vmatpush1.bf16.msra.mxu0 %v431
  %485 = vmatprep.subr.bf16.mxu0 0
  %486 = vmatpush1.bf16.msra.mxu0 0
  %487 = vmatprep.subr.bf16.mxu0 0
  %488 = vmatpush1.bf16.msra.mxu0 0
  %489 = vmatprep.subr.bf16.mxu0 0
  %490 = vmatpush1.bf16.msra.mxu0 0
  %491 = vmatprep.subr.bf16.mxu0 0
  %492 = vmatpush1.bf16.msra.mxu0 0
  %493 = vmatprep.subr.bf16.mxu0 0
  %494 = vmatpush1.bf16.msra.mxu0 0
  %495 = vmatprep.subr.bf16.mxu0 0
  %496 = vmatpush1.bf16.msra.mxu0 0
  %497 = vmatprep.subr.bf16.mxu0 0
  %498 = vmatpush1.bf16.msra.mxu0 0
  %499 = vmatprep.subr.bf16.mxu0 0
  %500 = vmatpush1.bf16.msra.mxu0 0
  %501 = vmatprep.subr.bf16.mxu0 0
  %502 = vmatpush1.bf16.msra.mxu0 0
  %503 = vmatprep.subr.bf16.mxu0 0
  %504 = vmatpush1.bf16.msra.mxu0 0
  %505 = vmatprep.subr.bf16.mxu0 0
  %506 = vmatpush1.bf16.msra.mxu0 0
  %507 = vmatprep.subr.bf16.mxu0 0
  %508 = vmatpush1.bf16.msra.mxu0 0
  %509 = vmatprep.subr.bf16.mxu0 0
  %510 = vmatpush1.bf16.msra.mxu0 0
  %511 = vmatprep.subr.bf16.mxu0 0
  %512 = vmatpush1.bf16.msra.mxu0 0
  %513 = vmatprep.subr.bf16.mxu0 0
  %514 = vmatpush1.bf16.msra.mxu0 0
  %515 = vmatprep.mubr.bf16.mxu0 0
  %516 = vmatmul.mubr.bf16.gmra.mrb[0].mxu0 %v422
  %v517 = vpop.f32.mrb[0].mxu0
  %v518 = vadd.f32 0.0, %v517
  %v519 = vpop.f32.mrb[0].mxu0
  %v520 = vadd.f32 0.0, %v519
  %v521 = vpop.f32.mrb[0].mxu0
  %v522 = vpop.f32.mrb[0].mxu0
  %523 = vdwg.mxu0
  %524 = vmatprep.subr.bf16.mxu0 %v440
  %525 = vmatpush1.bf16.msra.mxu0 %v437
  %526 = vmatprep.subr.bf16.mxu0 0
  %527 = vmatpush1.bf16.msra.mxu0 0
  %528 = vmatprep.subr.bf16.mxu0 0
  %529 = vmatpush1.bf16.msra.mxu0 0
  %530 = vmatprep.subr.bf16.mxu0 0
  %531 = vmatpush1.bf16.msra.mxu0 0
  %532 = vmatprep.subr.bf16.mxu0 0
  %533 = vmatpush1.bf16.msra.mxu0 0
  %534 = vmatprep.subr.bf16.mxu0 0
  %535 = vmatpush1.bf16.msra.mxu0 0
  %536 = vmatprep.subr.bf16.mxu0 0
  %537 = vmatpush1.bf16.msra.mxu0 0
  %538 = vmatprep.subr.bf16.mxu0 0
  %539 = vmatpush1.bf16.msra.mxu0 0
  %540 = vmatprep.subr.bf16.mxu0 0
  %541 = vmatpush1.bf16.msra.mxu0 0
  %542 = vmatprep.subr.bf16.mxu0 0
  %543 = vmatpush1.bf16.msra.mxu0 0
  %544 = vmatprep.subr.bf16.mxu0 0
  %545 = vmatpush1.bf16.msra.mxu0 0
  %546 = vmatprep.subr.bf16.mxu0 0
  %547 = vmatpush1.bf16.msra.mxu0 0
  %548 = vmatprep.subr.bf16.mxu0 0
  %549 = vmatpush1.bf16.msra.mxu0 0
  %550 = vmatprep.subr.bf16.mxu0 0
  %551 = vmatpush1.bf16.msra.mxu0 0
  %552 = vmatprep.subr.bf16.mxu0 0
  %553 = vmatpush1.bf16.msra.mxu0 0
  %554 = vmatprep.subr.bf16.mxu0 0
  %555 = vmatpush1.bf16.msra.mxu0 0
  %556 = vmatprep.mubr.bf16.mxu0 0
  %557 = vmatmul.mubr.bf16.gmra.mrb[0].mxu0 %v422
  %v558 = vpop.f32.mrb[0].mxu0
  %v559 = vadd.f32 0.0, %v558
  %v560 = vpop.f32.mrb[0].mxu0
  %v561 = vadd.f32 0.0, %v560
  %v562 = vpop.f32.mrb[0].mxu0
  %v563 = vpop.f32.mrb[0].mxu0
  %564 = vdwg.mxu0
  %v565 = vadd.f32 %v289, %v477
  %v566 = vadd.f32 %v291, %v479
  %v567 = vadd.f32 %v330, %v518
  %v568 = vadd.f32 %v332, %v520
  %v569 = vadd.f32 %v371, %v559
  %v570 = vadd.f32 %v373, %v561
  %v571 = vld [vmem:[%s0] sm:$0xff]
  %v572 = vld [vmem:[%s0 + $0x8] sm:$0xff]
  %v573 = vld [vmem:[%s0 + $0x10] sm:$0xff]
  %v577 = vcombine.high %v571, %v571
  %v578 = vcombine.high %v572, %v572
  %v579 = vcombine.high %v573, %v573
  %v583 = vpack.c.bf16 %v571, %v571
  %v584 = vpack.c.bf16 %v577, %v577
  %v585 = vpack.c.bf16 %v572, %v572
  %v586 = vpack.c.bf16 %v578, %v578
  %v587 = vpack.c.bf16 %v573, %v573
  %v588 = vpack.c.bf16 %v579, %v579
  %589 = vrot.lane.b32.xlu0 %v41, 116
  %v590 = vpop.permute.xlu0 %589
  %597 = vrot.lane.b32.xlu0 %v583, 110
  %v598 = vpop.permute.xlu0 %597
  %599 = vrot.lane.b32.xlu0 %v584, 110
  %v600 = vpop.permute.xlu0 %599
  %601 = vrot.lane.b32.xlu0 %v585, 110
  %v602 = vpop.permute.xlu0 %601
  %603 = vrot.lane.b32.xlu0 %v586, 110
  %v604 = vpop.permute.xlu0 %603
  %605 = vrot.lane.b32.xlu0 %v587, 110
  %v606 = vpop.permute.xlu0 %605
  %607 = vrot.lane.b32.xlu0 %v588, 110
  %v608 = vpop.permute.xlu0 %607
  %vm609 = vcmask 900096
  %v610 = vsel %vm609, %v598, %v600
  %v611 = vsel %vm609, %v600, %v602
  %v612 = vsel %vm609, %v602, %v604
  %v613 = vsel %vm609, %v604, %v606
  %v614 = vsel %vm609, %v606, %v608
  %v616 = vsel %vm87, %v590, 0
  %v619 = vsel %vm91, %v610, 0
  %v622 = vsel %vm91, %v611, 0
  %v625 = vsel %vm91, %v612, 0
  %v628 = vsel %vm91, %v613, 0
  %v631 = vsel %vm91, %v614, 0
  %v634 = vsel %vm91, %v608, 0
  %636 = vmatprep.subr.bf16.mxu0 %v622
  %637 = vmatpush1.bf16.msra.mxu0 %v619
  %638 = vmatprep.subr.bf16.mxu0 0
  %639 = vmatpush1.bf16.msra.mxu0 0
  %640 = vmatprep.subr.bf16.mxu0 0
  %641 = vmatpush1.bf16.msra.mxu0 0
  %642 = vmatprep.subr.bf16.mxu0 0
  %643 = vmatpush1.bf16.msra.mxu0 0
  %644 = vmatprep.subr.bf16.mxu0 0
  %645 = vmatpush1.bf16.msra.mxu0 0
  %646 = vmatprep.subr.bf16.mxu0 0
  %647 = vmatpush1.bf16.msra.mxu0 0
  %648 = vmatprep.subr.bf16.mxu0 0
  %649 = vmatpush1.bf16.msra.mxu0 0
  %650 = vmatprep.subr.bf16.mxu0 0
  %651 = vmatpush1.bf16.msra.mxu0 0
  %652 = vmatprep.subr.bf16.mxu0 0
  %653 = vmatpush1.bf16.msra.mxu0 0
  %654 = vmatprep.subr.bf16.mxu0 0
  %655 = vmatpush1.bf16.msra.mxu0 0
  %656 = vmatprep.subr.bf16.mxu0 0
  %657 = vmatpush1.bf16.msra.mxu0 0
  %658 = vmatprep.subr.bf16.mxu0 0
  %659 = vmatpush1.bf16.msra.mxu0 0
  %660 = vmatprep.subr.bf16.mxu0 0
  %661 = vmatpush1.bf16.msra.mxu0 0
  %662 = vmatprep.subr.bf16.mxu0 0
  %663 = vmatpush1.bf16.msra.mxu0 0
  %664 = vmatprep.subr.bf16.mxu0 0
  %665 = vmatpush1.bf16.msra.mxu0 0
  %666 = vmatprep.subr.bf16.mxu0 0
  %667 = vmatpush1.bf16.msra.mxu0 0
  %668 = vmatprep.mubr.bf16.mxu0 0
  %669 = vmatmul.mubr.bf16.gmra.mrb[0].mxu0 %v616
  %v670 = vpop.f32.mrb[0].mxu0
  %v671 = vadd.f32 0.0, %v670
  %v672 = vpop.f32.mrb[0].mxu0
  %v673 = vadd.f32 0.0, %v672
  %v674 = vpop.f32.mrb[0].mxu0
  %v675 = vpop.f32.mrb[0].mxu0
  %676 = vdwg.mxu0
  %677 = vmatprep.subr.bf16.mxu0 %v628
  %678 = vmatpush1.bf16.msra.mxu0 %v625
  %679 = vmatprep.subr.bf16.mxu0 0
  %680 = vmatpush1.bf16.msra.mxu0 0
  %681 = vmatprep.subr.bf16.mxu0 0
  %682 = vmatpush1.bf16.msra.mxu0 0
  %683 = vmatprep.subr.bf16.mxu0 0
  %684 = vmatpush1.bf16.msra.mxu0 0
  %685 = vmatprep.subr.bf16.mxu0 0
  %686 = vmatpush1.bf16.msra.mxu0 0
  %687 = vmatprep.subr.bf16.mxu0 0
  %688 = vmatpush1.bf16.msra.mxu0 0
  %689 = vmatprep.subr.bf16.mxu0 0
  %690 = vmatpush1.bf16.msra.mxu0 0
  %691 = vmatprep.subr.bf16.mxu0 0
  %692 = vmatpush1.bf16.msra.mxu0 0
  %693 = vmatprep.subr.bf16.mxu0 0
  %694 = vmatpush1.bf16.msra.mxu0 0
  %695 = vmatprep.subr.bf16.mxu0 0
  %696 = vmatpush1.bf16.msra.mxu0 0
  %697 = vmatprep.subr.bf16.mxu0 0
  %698 = vmatpush1.bf16.msra.mxu0 0
  %699 = vmatprep.subr.bf16.mxu0 0
  %700 = vmatpush1.bf16.msra.mxu0 0
  %701 = vmatprep.subr.bf16.mxu0 0
  %702 = vmatpush1.bf16.msra.mxu0 0
  %703 = vmatprep.subr.bf16.mxu0 0
  %704 = vmatpush1.bf16.msra.mxu0 0
  %705 = vmatprep.subr.bf16.mxu0 0
  %706 = vmatpush1.bf16.msra.mxu0 0
  %707 = vmatprep.subr.bf16.mxu0 0
  %708 = vmatpush1.bf16.msra.mxu0 0
  %709 = vmatprep.mubr.bf16.mxu0 0
  %710 = vmatmul.mubr.bf16.gmra.mrb[0].mxu0 %v616
  %v711 = vpop.f32.mrb[0].mxu0
  %v712 = vadd.f32 0.0, %v711
  %v713 = vpop.f32.mrb[0].mxu0
  %v714 = vadd.f32 0.0, %v713
  %v715 = vpop.f32.mrb[0].mxu0
  %v716 = vpop.f32.mrb[0].mxu0
  %717 = vdwg.mxu0
  %718 = vmatprep.subr.bf16.mxu0 %v634
  %719 = vmatpush1.bf16.msra.mxu0 %v631
  %720 = vmatprep.subr.bf16.mxu0 0
  %721 = vmatpush1.bf16.msra.mxu0 0
  %722 = vmatprep.subr.bf16.mxu0 0
  %723 = vmatpush1.bf16.msra.mxu0 0
  %724 = vmatprep.subr.bf16.mxu0 0
  %725 = vmatpush1.bf16.msra.mxu0 0
  %726 = vmatprep.subr.bf16.mxu0 0
  %727 = vmatpush1.bf16.msra.mxu0 0
  %728 = vmatprep.subr.bf16.mxu0 0
  %729 = vmatpush1.bf16.msra.mxu0 0
  %730 = vmatprep.subr.bf16.mxu0 0
  %731 = vmatpush1.bf16.msra.mxu0 0
  %732 = vmatprep.subr.bf16.mxu0 0
  %733 = vmatpush1.bf16.msra.mxu0 0
  %734 = vmatprep.subr.bf16.mxu0 0
  %735 = vmatpush1.bf16.msra.mxu0 0
  %736 = vmatprep.subr.bf16.mxu0 0
  %737 = vmatpush1.bf16.msra.mxu0 0
  %738 = vmatprep.subr.bf16.mxu0 0
  %739 = vmatpush1.bf16.msra.mxu0 0
  %740 = vmatprep.subr.bf16.mxu0 0
  %741 = vmatpush1.bf16.msra.mxu0 0
  %742 = vmatprep.subr.bf16.mxu0 0
  %743 = vmatpush1.bf16.msra.mxu0 0
  %744 = vmatprep.subr.bf16.mxu0 0
  %745 = vmatpush1.bf16.msra.mxu0 0
  %746 = vmatprep.subr.bf16.mxu0 0
  %747 = vmatpush1.bf16.msra.mxu0 0
  %748 = vmatprep.subr.bf16.mxu0 0
  %749 = vmatpush1.bf16.msra.mxu0 0
  %750 = vmatprep.mubr.bf16.mxu0 0
  %751 = vmatmul.mubr.bf16.gmra.mrb[0].mxu0 %v616
  %v752 = vpop.f32.mrb[0].mxu0
  %v753 = vadd.f32 0.0, %v752
  %v754 = vpop.f32.mrb[0].mxu0
  %v755 = vadd.f32 0.0, %v754
  %v756 = vpop.f32.mrb[0].mxu0
  %v757 = vpop.f32.mrb[0].mxu0
  %758 = vdwg.mxu0
  %v759 = vadd.f32 %v565, %v671
  %v760 = vadd.f32 %v566, %v673
  %v761 = vadd.f32 %v567, %v712
  %v762 = vadd.f32 %v568, %v714
  %v763 = vadd.f32 %v569, %v753
  %v764 = vadd.f32 %v570, %v755
  %v765 = vld [vmem:[%s0] sm:$0xff]
  %v766 = vld [vmem:[%s0 + $0x8] sm:$0xff]
  %v767 = vld [vmem:[%s0 + $0x10] sm:$0xff]
  %v771 = vcombine.high %v765, %v765
  %v772 = vcombine.high %v766, %v766
  %v773 = vcombine.high %v767, %v767
  %v777 = vpack.c.bf16 %v765, %v765
  %v778 = vpack.c.bf16 %v771, %v771
  %v779 = vpack.c.bf16 %v766, %v766
  %v780 = vpack.c.bf16 %v772, %v772
  %v781 = vpack.c.bf16 %v767, %v767
  %v782 = vpack.c.bf16 %v773, %v773
  %783 = vrot.lane.b32.xlu0 %v41, 112
  %v784 = vpop.permute.xlu0 %783
  %791 = vrot.lane.b32.xlu0 %v777, 109
  %v792 = vpop.permute.xlu0 %791
  %793 = vrot.lane.b32.xlu0 %v778, 109
  %v794 = vpop.permute.xlu0 %793
  %795 = vrot.lane.b32.xlu0 %v779, 109
  %v796 = vpop.permute.xlu0 %795
  %797 = vrot.lane.b32.xlu0 %v780, 109
  %v798 = vpop.permute.xlu0 %797
  %799 = vrot.lane.b32.xlu0 %v781, 109
  %v800 = vpop.permute.xlu0 %799
  %801 = vrot.lane.b32.xlu0 %v782, 109
  %v802 = vpop.permute.xlu0 %801
  %vm803 = vcmask 891904
  %v804 = vsel %vm803, %v792, %v794
  %v805 = vsel %vm803, %v794, %v796
  %v806 = vsel %vm803, %v796, %v798
  %v807 = vsel %vm803, %v798, %v800
  %v808 = vsel %vm803, %v800, %v802
  %v810 = vsel %vm87, %v784, 0
  %v813 = vsel %vm91, %v804, 0
  %v816 = vsel %vm91, %v805, 0
  %v819 = vsel %vm91, %v806, 0
  %v822 = vsel %vm91, %v807, 0
  %v825 = vsel %vm91, %v808, 0
  %v828 = vsel %vm91, %v802, 0
  %830 = vmatprep.subr.bf16.mxu0 %v816
  %831 = vmatpush1.bf16.msra.mxu0 %v813
  %832 = vmatprep.subr.bf16.mxu0 0
  %833 = vmatpush1.bf16.msra.mxu0 0
  %834 = vmatprep.subr.bf16.mxu0 0
  %835 = vmatpush1.bf16.msra.mxu0 0
  %836 = vmatprep.subr.bf16.mxu0 0
  %837 = vmatpush1.bf16.msra.mxu0 0
  %838 = vmatprep.subr.bf16.mxu0 0
  %839 = vmatpush1.bf16.msra.mxu0 0
  %840 = vmatprep.subr.bf16.mxu0 0
  %841 = vmatpush1.bf16.msra.mxu0 0
  %842 = vmatprep.subr.bf16.mxu0 0
  %843 = vmatpush1.bf16.msra.mxu0 0
  %844 = vmatprep.subr.bf16.mxu0 0
  %845 = vmatpush1.bf16.msra.mxu0 0
  %846 = vmatprep.subr.bf16.mxu0 0
  %847 = vmatpush1.bf16.msra.mxu0 0
  %848 = vmatprep.subr.bf16.mxu0 0
  %849 = vmatpush1.bf16.msra.mxu0 0
  %850 = vmatprep.subr.bf16.mxu0 0
  %851 = vmatpush1.bf16.msra.mxu0 0
  %852 = vmatprep.subr.bf16.mxu0 0
  %853 = vmatpush1.bf16.msra.mxu0 0
  %854 = vmatprep.subr.bf16.mxu0 0
  %855 = vmatpush1.bf16.msra.mxu0 0
  %856 = vmatprep.subr.bf16.mxu0 0
  %857 = vmatpush1.bf16.msra.mxu0 0
  %858 = vmatprep.subr.bf16.mxu0 0
  %859 = vmatpush1.bf16.msra.mxu0 0
  %860 = vmatprep.subr.bf16.mxu0 0
  %861 = vmatpush1.bf16.msra.mxu0 0
  %862 = vmatprep.mubr.bf16.mxu0 0
  %863 = vmatmul.mubr.bf16.gmra.mrb[0].mxu0 %v810
  %v864 = vpop.f32.mrb[0].mxu0
  %v865 = vadd.f32 0.0, %v864
  %v866 = vpop.f32.mrb[0].mxu0
  %v867 = vadd.f32 0.0, %v866
  %v868 = vpop.f32.mrb[0].mxu0
  %v869 = vpop.f32.mrb[0].mxu0
  %870 = vdwg.mxu0
  %871 = vmatprep.subr.bf16.mxu0 %v822
  %872 = vmatpush1.bf16.msra.mxu0 %v819
  %873 = vmatprep.subr.bf16.mxu0 0
  %874 = vmatpush1.bf16.msra.mxu0 0
  %875 = vmatprep.subr.bf16.mxu0 0
  %876 = vmatpush1.bf16.msra.mxu0 0
  %877 = vmatprep.subr.bf16.mxu0 0
  %878 = vmatpush1.bf16.msra.mxu0 0
  %879 = vmatprep.subr.bf16.mxu0 0
  %880 = vmatpush1.bf16.msra.mxu0 0
  %881 = vmatprep.subr.bf16.mxu0 0
  %882 = vmatpush1.bf16.msra.mxu0 0
  %883 = vmatprep.subr.bf16.mxu0 0
  %884 = vmatpush1.bf16.msra.mxu0 0
  %885 = vmatprep.subr.bf16.mxu0 0
  %886 = vmatpush1.bf16.msra.mxu0 0
  %887 = vmatprep.subr.bf16.mxu0 0
  %888 = vmatpush1.bf16.msra.mxu0 0
  %889 = vmatprep.subr.bf16.mxu0 0
  %890 = vmatpush1.bf16.msra.mxu0 0
  %891 = vmatprep.subr.bf16.mxu0 0
  %892 = vmatpush1.bf16.msra.mxu0 0
  %893 = vmatprep.subr.bf16.mxu0 0
  %894 = vmatpush1.bf16.msra.mxu0 0
  %895 = vmatprep.subr.bf16.mxu0 0
  %896 = vmatpush1.bf16.msra.mxu0 0
  %897 = vmatprep.subr.bf16.mxu0 0
  %898 = vmatpush1.bf16.msra.mxu0 0
  %899 = vmatprep.subr.bf16.mxu0 0
  %900 = vmatpush1.bf16.msra.mxu0 0
  %901 = vmatprep.subr.bf16.mxu0 0
  %902 = vmatpush1.bf16.msra.mxu0 0
  %903 = vmatprep.mubr.bf16.mxu0 0
  %904 = vmatmul.mubr.bf16.gmra.mrb[0].mxu0 %v810
  %v905 = vpop.f32.mrb[0].mxu0
  %v906 = vadd.f32 0.0, %v905
  %v907 = vpop.f32.mrb[0].mxu0
  %v908 = vadd.f32 0.0, %v907
  %v909 = vpop.f32.mrb[0].mxu0
  %v910 = vpop.f32.mrb[0].mxu0
  %911 = vdwg.mxu0
  %912 = vmatprep.subr.bf16.mxu0 %v828
  %913 = vmatpush1.bf16.msra.mxu0 %v825
  %914 = vmatprep.subr.bf16.mxu0 0
  %915 = vmatpush1.bf16.msra.mxu0 0
  %916 = vmatprep.subr.bf16.mxu0 0
  %917 = vmatpush1.bf16.msra.mxu0 0
  %918 = vmatprep.subr.bf16.mxu0 0
  %919 = vmatpush1.bf16.msra.mxu0 0
  %920 = vmatprep.subr.bf16.mxu0 0
  %921 = vmatpush1.bf16.msra.mxu0 0
  %922 = vmatprep.subr.bf16.mxu0 0
  %923 = vmatpush1.bf16.msra.mxu0 0
  %924 = vmatprep.subr.bf16.mxu0 0
  %925 = vmatpush1.bf16.msra.mxu0 0
  %926 = vmatprep.subr.bf16.mxu0 0
  %927 = vmatpush1.bf16.msra.mxu0 0
  %928 = vmatprep.subr.bf16.mxu0 0
  %929 = vmatpush1.bf16.msra.mxu0 0
  %930 = vmatprep.subr.bf16.mxu0 0
  %931 = vmatpush1.bf16.msra.mxu0 0
  %932 = vmatprep.subr.bf16.mxu0 0
  %933 = vmatpush1.bf16.msra.mxu0 0
  %934 = vmatprep.subr.bf16.mxu0 0
  %935 = vmatpush1.bf16.msra.mxu0 0
  %936 = vmatprep.subr.bf16.mxu0 0
  %937 = vmatpush1.bf16.msra.mxu0 0
  %938 = vmatprep.subr.bf16.mxu0 0
  %939 = vmatpush1.bf16.msra.mxu0 0
  %940 = vmatprep.subr.bf16.mxu0 0
  %941 = vmatpush1.bf16.msra.mxu0 0
  %942 = vmatprep.subr.bf16.mxu0 0
  %943 = vmatpush1.bf16.msra.mxu0 0
  %944 = vmatprep.mubr.bf16.mxu0 0
  %945 = vmatmul.mubr.bf16.gmra.mrb[0].mxu0 %v810
  %v946 = vpop.f32.mrb[0].mxu0
  %v947 = vadd.f32 0.0, %v946
  %v948 = vpop.f32.mrb[0].mxu0
  %v949 = vadd.f32 0.0, %v948
  %v950 = vpop.f32.mrb[0].mxu0
  %v951 = vpop.f32.mrb[0].mxu0
  %952 = vdwg.mxu0
  %v953 = vadd.f32 %v759, %v865
  %v954 = vadd.f32 %v760, %v867
  %v955 = vadd.f32 %v761, %v906
  %v956 = vadd.f32 %v762, %v908
  %v957 = vadd.f32 %v763, %v947
  %v958 = vadd.f32 %v764, %v949
  %v959 = vld [vmem:[%s0] sm:$0xff]
  %v960 = vld [vmem:[%s0 + $0x8] sm:$0xff]
  %v961 = vld [vmem:[%s0 + $0x10] sm:$0xff]
  %v965 = vcombine.high %v959, %v959
  %v966 = vcombine.high %v960, %v960
  %v967 = vcombine.high %v961, %v961
  %v971 = vpack.c.bf16 %v959, %v959
  %v972 = vpack.c.bf16 %v965, %v965
  %v973 = vpack.c.bf16 %v960, %v960
  %v974 = vpack.c.bf16 %v966, %v966
  %v975 = vpack.c.bf16 %v961, %v961
  %v976 = vpack.c.bf16 %v967, %v967
  %977 = vrot.lane.b32.xlu0 %v41, 108
  %v978 = vpop.permute.xlu0 %977
  %985 = vrot.lane.b32.xlu0 %v971, 108
  %v986 = vpop.permute.xlu0 %985
  %987 = vrot.lane.b32.xlu0 %v972, 108
  %v988 = vpop.permute.xlu0 %987
  %989 = vrot.lane.b32.xlu0 %v973, 108
  %v990 = vpop.permute.xlu0 %989
  %991 = vrot.lane.b32.xlu0 %v974, 108
  %v992 = vpop.permute.xlu0 %991
  %993 = vrot.lane.b32.xlu0 %v975, 108
  %v994 = vpop.permute.xlu0 %993
  %995 = vrot.lane.b32.xlu0 %v976, 108
  %v996 = vpop.permute.xlu0 %995
  %vm997 = vcmask 883712
  %v998 = vsel %vm997, %v986, %v988
  %v999 = vsel %vm997, %v988, %v990
  %v1000 = vsel %vm997, %v990, %v992
  %v1001 = vsel %vm997, %v992, %v994
  %v1002 = vsel %vm997, %v994, %v996
  %v1004 = vsel %vm87, %v978, 0
  %v1007 = vsel %vm91, %v998, 0
  %v1010 = vsel %vm91, %v999, 0
  %v1013 = vsel %vm91, %v1000, 0
  %v1016 = vsel %vm91, %v1001, 0
  %v1019 = vsel %vm91, %v1002, 0
  %v1022 = vsel %vm91, %v996, 0
  %1024 = vmatprep.subr.bf16.mxu0 %v1010
  %1025 = vmatpush1.bf16.msra.mxu0 %v1007
  %1026 = vmatprep.subr.bf16.mxu0 0
  %1027 = vmatpush1.bf16.msra.mxu0 0
  %1028 = vmatprep.subr.bf16.mxu0 0
  %1029 = vmatpush1.bf16.msra.mxu0 0
  %1030 = vmatprep.subr.bf16.mxu0 0
  %1031 = vmatpush1.bf16.msra.mxu0 0
  %1032 = vmatprep.subr.bf16.mxu0 0
  %1033 = vmatpush1.bf16.msra.mxu0 0
  %1034 = vmatprep.subr.bf16.mxu0 0
  %1035 = vmatpush1.bf16.msra.mxu0 0
  %1036 = vmatprep.subr.bf16.mxu0 0
  %1037 = vmatpush1.bf16.msra.mxu0 0
  %1038 = vmatprep.subr.bf16.mxu0 0
  %1039 = vmatpush1.bf16.msra.mxu0 0
  %1040 = vmatprep.subr.bf16.mxu0 0
  %1041 = vmatpush1.bf16.msra.mxu0 0
  %1042 = vmatprep.subr.bf16.mxu0 0
  %1043 = vmatpush1.bf16.msra.mxu0 0
  %1044 = vmatprep.subr.bf16.mxu0 0
  %1045 = vmatpush1.bf16.msra.mxu0 0
  %1046 = vmatprep.subr.bf16.mxu0 0
  %1047 = vmatpush1.bf16.msra.mxu0 0
  %1048 = vmatprep.subr.bf16.mxu0 0
  %1049 = vmatpush1.bf16.msra.mxu0 0
  %1050 = vmatprep.subr.bf16.mxu0 0
  %1051 = vmatpush1.bf16.msra.mxu0 0
  %1052 = vmatprep.subr.bf16.mxu0 0
  %1053 = vmatpush1.bf16.msra.mxu0 0
  %1054 = vmatprep.subr.bf16.mxu0 0
  %1055 = vmatpush1.bf16.msra.mxu0 0
  %1056 = vmatprep.mubr.bf16.mxu0 0
  %1057 = vmatmul.mubr.bf16.gmra.mrb[0].mxu0 %v1004
  %v1058 = vpop.f32.mrb[0].mxu0
  %v1059 = vadd.f32 0.0, %v1058
  %v1060 = vpop.f32.mrb[0].mxu0
  %v1061 = vadd.f32 0.0, %v1060
  %v1062 = vpop.f32.mrb[0].mxu0
  %v1063 = vpop.f32.mrb[0].mxu0
  %1064 = vdwg.mxu0
  %1065 = vmatprep.subr.bf16.mxu0 %v1016
  %1066 = vmatpush1.bf16.msra.mxu0 %v1013
  %1067 = vmatprep.subr.bf16.mxu0 0
  %1068 = vmatpush1.bf16.msra.mxu0 0
  %1069 = vmatprep.subr.bf16.mxu0 0
  %1070 = vmatpush1.bf16.msra.mxu0 0
  %1071 = vmatprep.subr.bf16.mxu0 0
  %1072 = vmatpush1.bf16.msra.mxu0 0
  %1073 = vmatprep.subr.bf16.mxu0 0
  %1074 = vmatpush1.bf16.msra.mxu0 0
  %1075 = vmatprep.subr.bf16.mxu0 0
  %1076 = vmatpush1.bf16.msra.mxu0 0
  %1077 = vmatprep.subr.bf16.mxu0 0
  %1078 = vmatpush1.bf16.msra.mxu0 0
  %1079 = vmatprep.subr.bf16.mxu0 0
  %1080 = vmatpush1.bf16.msra.mxu0 0
  %1081 = vmatprep.subr.bf16.mxu0 0
  %1082 = vmatpush1.bf16.msra.mxu0 0
  %1083 = vmatprep.subr.bf16.mxu0 0
  %1084 = vmatpush1.bf16.msra.mxu0 0
  %1085 = vmatprep.subr.bf16.mxu0 0
  %1086 = vmatpush1.bf16.msra.mxu0 0
  %1087 = vmatprep.subr.bf16.mxu0 0
  %1088 = vmatpush1.bf16.msra.mxu0 0
  %1089 = vmatprep.subr.bf16.mxu0 0
  %1090 = vmatpush1.bf16.msra.mxu0 0
  %1091 = vmatprep.subr.bf16.mxu0 0
  %1092 = vmatpush1.bf16.msra.mxu0 0
  %1093 = vmatprep.subr.bf16.mxu0 0
  %1094 = vmatpush1.bf16.msra.mxu0 0
  %1095 = vmatprep.subr.bf16.mxu0 0
  %1096 = vmatpush1.bf16.msra.mxu0 0
  %1097 = vmatprep.mubr.bf16.mxu0 0
  %1098 = vmatmul.mubr.bf16.gmra.mrb[0].mxu0 %v1004
  %v1099 = vpop.f32.mrb[0].mxu0
  %v1100 = vadd.f32 0.0, %v1099
  %v1101 = vpop.f32.mrb[0].mxu0
  %v1102 = vadd.f32 0.0, %v1101
  %v1103 = vpop.f32.mrb[0].mxu0
  %v1104 = vpop.f32.mrb[0].mxu0
  %1105 = vdwg.mxu0
  %1106 = vmatprep.subr.bf16.mxu0 %v1022
  %1107 = vmatpush1.bf16.msra.mxu0 %v1019
  %1108 = vmatprep.subr.bf16.mxu0 0
  %1109 = vmatpush1.bf16.msra.mxu0 0
  %1110 = vmatprep.subr.bf16.mxu0 0
  %1111 = vmatpush1.bf16.msra.mxu0 0
  %1112 = vmatprep.subr.bf16.mxu0 0
  %1113 = vmatpush1.bf16.msra.mxu0 0
  %1114 = vmatprep.subr.bf16.mxu0 0
  %1115 = vmatpush1.bf16.msra.mxu0 0
  %1116 = vmatprep.subr.bf16.mxu0 0
  %1117 = vmatpush1.bf16.msra.mxu0 0
  %1118 = vmatprep.subr.bf16.mxu0 0
  %1119 = vmatpush1.bf16.msra.mxu0 0
  %1120 = vmatprep.subr.bf16.mxu0 0
  %1121 = vmatpush1.bf16.msra.mxu0 0
  %1122 = vmatprep.subr.bf16.mxu0 0
  %1123 = vmatpush1.bf16.msra.mxu0 0
  %1124 = vmatprep.subr.bf16.mxu0 0
  %1125 = vmatpush1.bf16.msra.mxu0 0
  %1126 = vmatprep.subr.bf16.mxu0 0
  %1127 = vmatpush1.bf16.msra.mxu0 0
  %1128 = vmatprep.subr.bf16.mxu0 0
  %1129 = vmatpush1.bf16.msra.mxu0 0
  %1130 = vmatprep.subr.bf16.mxu0 0
  %1131 = vmatpush1.bf16.msra.mxu0 0
  %1132 = vmatprep.subr.bf16.mxu0 0
  %1133 = vmatpush1.bf16.msra.mxu0 0
  %1134 = vmatprep.subr.bf16.mxu0 0
  %1135 = vmatpush1.bf16.msra.mxu0 0
  %1136 = vmatprep.subr.bf16.mxu0 0
  %1137 = vmatpush1.bf16.msra.mxu0 0
  %1138 = vmatprep.mubr.bf16.mxu0 0
  %1139 = vmatmul.mubr.bf16.gmra.mrb[0].mxu0 %v1004
  %v1140 = vpop.f32.mrb[0].mxu0
  %v1141 = vadd.f32 0.0, %v1140
  %v1142 = vpop.f32.mrb[0].mxu0
  %v1143 = vadd.f32 0.0, %v1142
  %v1144 = vpop.f32.mrb[0].mxu0
  %v1145 = vpop.f32.mrb[0].mxu0
  %1146 = vdwg.mxu0
  %v1147 = vadd.f32 %v953, %v1059
  %v1148 = vadd.f32 %v954, %v1061
  %v1149 = vadd.f32 %v955, %v1100
  %v1150 = vadd.f32 %v956, %v1102
  %v1151 = vadd.f32 %v957, %v1141
  %v1152 = vadd.f32 %v958, %v1143
  %v1153 = vld [vmem:[%s0] sm:$0xff]
  %v1154 = vld [vmem:[%s0 + $0x8] sm:$0xff]
  %v1155 = vld [vmem:[%s0 + $0x10] sm:$0xff]
  %v1159 = vcombine.high %v1153, %v1153
  %v1160 = vcombine.high %v1154, %v1154
  %v1161 = vcombine.high %v1155, %v1155
  %v1165 = vpack.c.bf16 %v1153, %v1153
  %v1166 = vpack.c.bf16 %v1159, %v1159
  %v1167 = vpack.c.bf16 %v1154, %v1154
  %v1168 = vpack.c.bf16 %v1160, %v1160
  %v1169 = vpack.c.bf16 %v1155, %v1155
  %v1170 = vpack.c.bf16 %v1161, %v1161
  %1171 = vrot.lane.b32.xlu0 %v41, 104
  %v1172 = vpop.permute.xlu0 %1171
  %1179 = vrot.lane.b32.xlu0 %v1165, 92
  %v1180 = vpop.permute.xlu0 %1179
  %1181 = vrot.lane.b32.xlu0 %v1166, 92
  %v1182 = vpop.permute.xlu0 %1181
  %1183 = vrot.lane.b32.xlu0 %v1167, 92
  %v1184 = vpop.permute.xlu0 %1183
  %1185 = vrot.lane.b32.xlu0 %v1168, 92
  %v1186 = vpop.permute.xlu0 %1185
  %1187 = vrot.lane.b32.xlu0 %v1169, 92
  %v1188 = vpop.permute.xlu0 %1187
  %1189 = vrot.lane.b32.xlu0 %v1170, 92
  %v1190 = vpop.permute.xlu0 %1189
  %vm1191 = vcmask 752640
  %v1192 = vsel %vm1191, %v1180, %v1182
  %v1193 = vsel %vm1191, %v1182, %v1184
  %v1194 = vsel %vm1191, %v1184, %v1186
  %v1195 = vsel %vm1191, %v1186, %v1188
  %v1196 = vsel %vm1191, %v1188, %v1190
  %v1198 = vsel %vm87, %v1172, 0
  %v1201 = vsel %vm91, %v1192, 0
  %v1204 = vsel %vm91, %v1193, 0
  %v1207 = vsel %vm91, %v1194, 0
  %v1210 = vsel %vm91, %v1195, 0
  %v1213 = vsel %vm91, %v1196, 0
  %v1216 = vsel %vm91, %v1190, 0
  %1218 = vmatprep.subr.bf16.mxu0 %v1204
  %1219 = vmatpush1.bf16.msra.mxu0 %v1201
  %1220 = vmatprep.subr.bf16.mxu0 0
  %1221 = vmatpush1.bf16.msra.mxu0 0
  %1222 = vmatprep.subr.bf16.mxu0 0
  %1223 = vmatpush1.bf16.msra.mxu0 0
  %1224 = vmatprep.subr.bf16.mxu0 0
  %1225 = vmatpush1.bf16.msra.mxu0 0
  %1226 = vmatprep.subr.bf16.mxu0 0
  %1227 = vmatpush1.bf16.msra.mxu0 0
  %1228 = vmatprep.subr.bf16.mxu0 0
  %1229 = vmatpush1.bf16.msra.mxu0 0
  %1230 = vmatprep.subr.bf16.mxu0 0
  %1231 = vmatpush1.bf16.msra.mxu0 0
  %1232 = vmatprep.subr.bf16.mxu0 0
  %1233 = vmatpush1.bf16.msra.mxu0 0
  %1234 = vmatprep.subr.bf16.mxu0 0
  %1235 = vmatpush1.bf16.msra.mxu0 0
  %1236 = vmatprep.subr.bf16.mxu0 0
  %1237 = vmatpush1.bf16.msra.mxu0 0
  %1238 = vmatprep.subr.bf16.mxu0 0
  %1239 = vmatpush1.bf16.msra.mxu0 0
  %1240 = vmatprep.subr.bf16.mxu0 0
  %1241 = vmatpush1.bf16.msra.mxu0 0
  %1242 = vmatprep.subr.bf16.mxu0 0
  %1243 = vmatpush1.bf16.msra.mxu0 0
  %1244 = vmatprep.subr.bf16.mxu0 0
  %1245 = vmatpush1.bf16.msra.mxu0 0
  %1246 = vmatprep.subr.bf16.mxu0 0
  %1247 = vmatpush1.bf16.msra.mxu0 0
  %1248 = vmatprep.subr.bf16.mxu0 0
  %1249 = vmatpush1.bf16.msra.mxu0 0
  %1250 = vmatprep.mubr.bf16.mxu0 0
  %1251 = vmatmul.mubr.bf16.gmra.mrb[0].mxu0 %v1198
  %v1252 = vpop.f32.mrb[0].mxu0
  %v1253 = vadd.f32 0.0, %v1252
  %v1254 = vpop.f32.mrb[0].mxu0
  %v1255 = vadd.f32 0.0, %v1254
  %v1256 = vpop.f32.mrb[0].mxu0
  %v1257 = vpop.f32.mrb[0].mxu0
  %1258 = vdwg.mxu0
  %1259 = vmatprep.subr.bf16.mxu0 %v1210
  %1260 = vmatpush1.bf16.msra.mxu0 %v1207
  %1261 = vmatprep.subr.bf16.mxu0 0
  %1262 = vmatpush1.bf16.msra.mxu0 0
  %1263 = vmatprep.subr.bf16.mxu0 0
  %1264 = vmatpush1.bf16.msra.mxu0 0
  %1265 = vmatprep.subr.bf16.mxu0 0
  %1266 = vmatpush1.bf16.msra.mxu0 0
  %1267 = vmatprep.subr.bf16.mxu0 0
  %1268 = vmatpush1.bf16.msra.mxu0 0
  %1269 = vmatprep.subr.bf16.mxu0 0
  %1270 = vmatpush1.bf16.msra.mxu0 0
  %1271 = vmatprep.subr.bf16.mxu0 0
  %1272 = vmatpush1.bf16.msra.mxu0 0
  %1273 = vmatprep.subr.bf16.mxu0 0
  %1274 = vmatpush1.bf16.msra.mxu0 0
  %1275 = vmatprep.subr.bf16.mxu0 0
  %1276 = vmatpush1.bf16.msra.mxu0 0
  %1277 = vmatprep.subr.bf16.mxu0 0
  %1278 = vmatpush1.bf16.msra.mxu0 0
  %1279 = vmatprep.subr.bf16.mxu0 0
  %1280 = vmatpush1.bf16.msra.mxu0 0
  %1281 = vmatprep.subr.bf16.mxu0 0
  %1282 = vmatpush1.bf16.msra.mxu0 0
  %1283 = vmatprep.subr.bf16.mxu0 0
  %1284 = vmatpush1.bf16.msra.mxu0 0
  %1285 = vmatprep.subr.bf16.mxu0 0
  %1286 = vmatpush1.bf16.msra.mxu0 0
  %1287 = vmatprep.subr.bf16.mxu0 0
  %1288 = vmatpush1.bf16.msra.mxu0 0
  %1289 = vmatprep.subr.bf16.mxu0 0
  %1290 = vmatpush1.bf16.msra.mxu0 0
  %1291 = vmatprep.mubr.bf16.mxu0 0
  %1292 = vmatmul.mubr.bf16.gmra.mrb[0].mxu0 %v1198
  %v1293 = vpop.f32.mrb[0].mxu0
  %v1294 = vadd.f32 0.0, %v1293
  %v1295 = vpop.f32.mrb[0].mxu0
  %v1296 = vadd.f32 0.0, %v1295
  %v1297 = vpop.f32.mrb[0].mxu0
  %v1298 = vpop.f32.mrb[0].mxu0
  %1299 = vdwg.mxu0
  %1300 = vmatprep.subr.bf16.mxu0 %v1216
  %1301 = vmatpush1.bf16.msra.mxu0 %v1213
  %1302 = vmatprep.subr.bf16.mxu0 0
  %1303 = vmatpush1.bf16.msra.mxu0 0
  %1304 = vmatprep.subr.bf16.mxu0 0
  %1305 = vmatpush1.bf16.msra.mxu0 0
  %1306 = vmatprep.subr.bf16.mxu0 0
  %1307 = vmatpush1.bf16.msra.mxu0 0
  %1308 = vmatprep.subr.bf16.mxu0 0
  %1309 = vmatpush1.bf16.msra.mxu0 0
  %1310 = vmatprep.subr.bf16.mxu0 0
  %1311 = vmatpush1.bf16.msra.mxu0 0
  %1312 = vmatprep.subr.bf16.mxu0 0
  %1313 = vmatpush1.bf16.msra.mxu0 0
  %1314 = vmatprep.subr.bf16.mxu0 0
  %1315 = vmatpush1.bf16.msra.mxu0 0
  %1316 = vmatprep.subr.bf16.mxu0 0
  %1317 = vmatpush1.bf16.msra.mxu0 0
  %1318 = vmatprep.subr.bf16.mxu0 0
  %1319 = vmatpush1.bf16.msra.mxu0 0
  %1320 = vmatprep.subr.bf16.mxu0 0
  %1321 = vmatpush1.bf16.msra.mxu0 0
  %1322 = vmatprep.subr.bf16.mxu0 0
  %1323 = vmatpush1.bf16.msra.mxu0 0
  %1324 = vmatprep.subr.bf16.mxu0 0
  %1325 = vmatpush1.bf16.msra.mxu0 0
  %1326 = vmatprep.subr.bf16.mxu0 0
  %1327 = vmatpush1.bf16.msra.mxu0 0
  %1328 = vmatprep.subr.bf16.mxu0 0
  %1329 = vmatpush1.bf16.msra.mxu0 0
  %1330 = vmatprep.subr.bf16.mxu0 0
  %1331 = vmatpush1.bf16.msra.mxu0 0
  %1332 = vmatprep.mubr.bf16.mxu0 0
  %1333 = vmatmul.mubr.bf16.gmra.mrb[0].mxu0 %v1198
  %v1334 = vpop.f32.mrb[0].mxu0
  %v1335 = vadd.f32 0.0, %v1334
  %v1336 = vpop.f32.mrb[0].mxu0
  %v1337 = vadd.f32 0.0, %v1336
  %v1338 = vpop.f32.mrb[0].mxu0
  %v1339 = vpop.f32.mrb[0].mxu0
  %1340 = vdwg.mxu0
  %v1341 = vadd.f32 %v1147, %v1253
  %v1342 = vadd.f32 %v1148, %v1255
  %v1343 = vadd.f32 %v1149, %v1294
  %v1344 = vadd.f32 %v1150, %v1296
  %v1345 = vadd.f32 %v1151, %v1335
  %v1346 = vadd.f32 %v1152, %v1337
  %v1347 = vld [vmem:[%s0] sm:$0xff]
  %v1348 = vld [vmem:[%s0 + $0x8] sm:$0xff]
  %v1349 = vld [vmem:[%s0 + $0x10] sm:$0xff]
  %v1353 = vcombine.high %v1347, %v1347
  %v1354 = vcombine.high %v1348, %v1348
  %v1355 = vcombine.high %v1349, %v1349
  %v1359 = vpack.c.bf16 %v1347, %v1347
  %v1360 = vpack.c.bf16 %v1353, %v1353
  %v1361 = vpack.c.bf16 %v1348, %v1348
  %v1362 = vpack.c.bf16 %v1354, %v1354
  %v1363 = vpack.c.bf16 %v1349, %v1349
  %v1364 = vpack.c.bf16 %v1355, %v1355
  %1365 = vrot.lane.b32.xlu0 %v41, 100
  %v1366 = vpop.permute.xlu0 %1365
  %1373 = vrot.lane.b32.xlu0 %v1359, 91
  %v1374 = vpop.permute.xlu0 %1373
  %1375 = vrot.lane.b32.xlu0 %v1360, 91
  %v1376 = vpop.permute.xlu0 %1375
  %1377 = vrot.lane.b32.xlu0 %v1361, 91
  %v1378 = vpop.permute.xlu0 %1377
  %1379 = vrot.lane.b32.xlu0 %v1362, 91
  %v1380 = vpop.permute.xlu0 %1379
  %1381 = vrot.lane.b32.xlu0 %v1363, 91
  %v1382 = vpop.permute.xlu0 %1381
  %1383 = vrot.lane.b32.xlu0 %v1364, 91
  %v1384 = vpop.permute.xlu0 %1383
  %vm1385 = vcmask 744448
  %v1386 = vsel %vm1385, %v1374, %v1376
  %v1387 = vsel %vm1385, %v1376, %v1378
  %v1388 = vsel %vm1385, %v1378, %v1380
  %v1389 = vsel %vm1385, %v1380, %v1382
  %v1390 = vsel %vm1385, %v1382, %v1384
  %v1392 = vsel %vm87, %v1366, 0
  %v1395 = vsel %vm91, %v1386, 0
  %v1398 = vsel %vm91, %v1387, 0
  %v1401 = vsel %vm91, %v1388, 0
  %v1404 = vsel %vm91, %v1389, 0
  %v1407 = vsel %vm91, %v1390, 0
  %v1410 = vsel %vm91, %v1384, 0
  %1412 = vmatprep.subr.bf16.mxu0 %v1398
  %1413 = vmatpush1.bf16.msra.mxu0 %v1395
  %1414 = vmatprep.subr.bf16.mxu0 0
  %1415 = vmatpush1.bf16.msra.mxu0 0
  %1416 = vmatprep.subr.bf16.mxu0 0
  %1417 = vmatpush1.bf16.msra.mxu0 0
  %1418 = vmatprep.subr.bf16.mxu0 0
  %1419 = vmatpush1.bf16.msra.mxu0 0
  %1420 = vmatprep.subr.bf16.mxu0 0
  %1421 = vmatpush1.bf16.msra.mxu0 0
  %1422 = vmatprep.subr.bf16.mxu0 0
  %1423 = vmatpush1.bf16.msra.mxu0 0
  %1424 = vmatprep.subr.bf16.mxu0 0
  %1425 = vmatpush1.bf16.msra.mxu0 0
  %1426 = vmatprep.subr.bf16.mxu0 0
  %1427 = vmatpush1.bf16.msra.mxu0 0
  %1428 = vmatprep.subr.bf16.mxu0 0
  %1429 = vmatpush1.bf16.msra.mxu0 0
  %1430 = vmatprep.subr.bf16.mxu0 0
  %1431 = vmatpush1.bf16.msra.mxu0 0
  %1432 = vmatprep.subr.bf16.mxu0 0
  %1433 = vmatpush1.bf16.msra.mxu0 0
  %1434 = vmatprep.subr.bf16.mxu0 0
  %1435 = vmatpush1.bf16.msra.mxu0 0
  %1436 = vmatprep.subr.bf16.mxu0 0
  %1437 = vmatpush1.bf16.msra.mxu0 0
  %1438 = vmatprep.subr.bf16.mxu0 0
  %1439 = vmatpush1.bf16.msra.mxu0 0
  %1440 = vmatprep.subr.bf16.mxu0 0
  %1441 = vmatpush1.bf16.msra.mxu0 0
  %1442 = vmatprep.subr.bf16.mxu0 0
  %1443 = vmatpush1.bf16.msra.mxu0 0
  %1444 = vmatprep.mubr.bf16.mxu0 0
  %1445 = vmatmul.mubr.bf16.gmra.mrb[0].mxu0 %v1392
  %v1446 = vpop.f32.mrb[0].mxu0
  %v1447 = vadd.f32 0.0, %v1446
  %v1448 = vpop.f32.mrb[0].mxu0
  %v1449 = vadd.f32 0.0, %v1448
  %v1450 = vpop.f32.mrb[0].mxu0
  %v1451 = vpop.f32.mrb[0].mxu0
  %1452 = vdwg.mxu0
  %1453 = vmatprep.subr.bf16.mxu0 %v1404
  %1454 = vmatpush1.bf16.msra.mxu0 %v1401
  %1455 = vmatprep.subr.bf16.mxu0 0
  %1456 = vmatpush1.bf16.msra.mxu0 0
  %1457 = vmatprep.subr.bf16.mxu0 0
  %1458 = vmatpush1.bf16.msra.mxu0 0
  %1459 = vmatprep.subr.bf16.mxu0 0
  %1460 = vmatpush1.bf16.msra.mxu0 0
  %1461 = vmatprep.subr.bf16.mxu0 0
  %1462 = vmatpush1.bf16.msra.mxu0 0
  %1463 = vmatprep.subr.bf16.mxu0 0
  %1464 = vmatpush1.bf16.msra.mxu0 0
  %1465 = vmatprep.subr.bf16.mxu0 0
  %1466 = vmatpush1.bf16.msra.mxu0 0
  %1467 = vmatprep.subr.bf16.mxu0 0
  %1468 = vmatpush1.bf16.msra.mxu0 0
  %1469 = vmatprep.subr.bf16.mxu0 0
  %1470 = vmatpush1.bf16.msra.mxu0 0
  %1471 = vmatprep.subr.bf16.mxu0 0
  %1472 = vmatpush1.bf16.msra.mxu0 0
  %1473 = vmatprep.subr.bf16.mxu0 0
  %1474 = vmatpush1.bf16.msra.mxu0 0
  %1475 = vmatprep.subr.bf16.mxu0 0
  %1476 = vmatpush1.bf16.msra.mxu0 0
  %1477 = vmatprep.subr.bf16.mxu0 0
  %1478 = vmatpush1.bf16.msra.mxu0 0
  %1479 = vmatprep.subr.bf16.mxu0 0
  %1480 = vmatpush1.bf16.msra.mxu0 0
  %1481 = vmatprep.subr.bf16.mxu0 0
  %1482 = vmatpush1.bf16.msra.mxu0 0
  %1483 = vmatprep.subr.bf16.mxu0 0
  %1484 = vmatpush1.bf16.msra.mxu0 0
  %1485 = vmatprep.mubr.bf16.mxu0 0
  %1486 = vmatmul.mubr.bf16.gmra.mrb[0].mxu0 %v1392
  %v1487 = vpop.f32.mrb[0].mxu0
  %v1488 = vadd.f32 0.0, %v1487
  %v1489 = vpop.f32.mrb[0].mxu0
  %v1490 = vadd.f32 0.0, %v1489
  %v1491 = vpop.f32.mrb[0].mxu0
  %v1492 = vpop.f32.mrb[0].mxu0
  %1493 = vdwg.mxu0
  %1494 = vmatprep.subr.bf16.mxu0 %v1410
  %1495 = vmatpush1.bf16.msra.mxu0 %v1407
  %1496 = vmatprep.subr.bf16.mxu0 0
  %1497 = vmatpush1.bf16.msra.mxu0 0
  %1498 = vmatprep.subr.bf16.mxu0 0
  %1499 = vmatpush1.bf16.msra.mxu0 0
  %1500 = vmatprep.subr.bf16.mxu0 0
  %1501 = vmatpush1.bf16.msra.mxu0 0
  %1502 = vmatprep.subr.bf16.mxu0 0
  %1503 = vmatpush1.bf16.msra.mxu0 0
  %1504 = vmatprep.subr.bf16.mxu0 0
  %1505 = vmatpush1.bf16.msra.mxu0 0
  %1506 = vmatprep.subr.bf16.mxu0 0
  %1507 = vmatpush1.bf16.msra.mxu0 0
  %1508 = vmatprep.subr.bf16.mxu0 0
  %1509 = vmatpush1.bf16.msra.mxu0 0
  %1510 = vmatprep.subr.bf16.mxu0 0
  %1511 = vmatpush1.bf16.msra.mxu0 0
  %1512 = vmatprep.subr.bf16.mxu0 0
  %1513 = vmatpush1.bf16.msra.mxu0 0
  %1514 = vmatprep.subr.bf16.mxu0 0
  %1515 = vmatpush1.bf16.msra.mxu0 0
  %1516 = vmatprep.subr.bf16.mxu0 0
  %1517 = vmatpush1.bf16.msra.mxu0 0
  %1518 = vmatprep.subr.bf16.mxu0 0
  %1519 = vmatpush1.bf16.msra.mxu0 0
  %1520 = vmatprep.subr.bf16.mxu0 0
  %1521 = vmatpush1.bf16.msra.mxu0 0
  %1522 = vmatprep.subr.bf16.mxu0 0
  %1523 = vmatpush1.bf16.msra.mxu0 0
  %1524 = vmatprep.subr.bf16.mxu0 0
  %1525 = vmatpush1.bf16.msra.mxu0 0
  %1526 = vmatprep.mubr.bf16.mxu0 0
  %1527 = vmatmul.mubr.bf16.gmra.mrb[0].mxu0 %v1392
  %v1528 = vpop.f32.mrb[0].mxu0
  %v1529 = vadd.f32 0.0, %v1528
  %v1530 = vpop.f32.mrb[0].mxu0
  %v1531 = vadd.f32 0.0, %v1530
  %v1532 = vpop.f32.mrb[0].mxu0
  %v1533 = vpop.f32.mrb[0].mxu0
  %1534 = vdwg.mxu0
  %v1535 = vadd.f32 %v1341, %v1447
  %v1536 = vadd.f32 %v1342, %v1449
  %v1537 = vadd.f32 %v1343, %v1488
  %v1538 = vadd.f32 %v1344, %v1490
  %v1539 = vadd.f32 %v1345, %v1529
  %v1540 = vadd.f32 %v1346, %v1531
  %v1541 = vld [vmem:[%s0] sm:$0xff]
  %v1542 = vld [vmem:[%s0 + $0x8] sm:$0xff]
  %v1543 = vld [vmem:[%s0 + $0x10] sm:$0xff]
  %v1547 = vcombine.high %v1541, %v1541
  %v1548 = vcombine.high %v1542, %v1542
  %v1549 = vcombine.high %v1543, %v1543
  %v1553 = vpack.c.bf16 %v1541, %v1541
  %v1554 = vpack.c.bf16 %v1547, %v1547
  %v1555 = vpack.c.bf16 %v1542, %v1542
  %v1556 = vpack.c.bf16 %v1548, %v1548
  %v1557 = vpack.c.bf16 %v1543, %v1543
  %v1558 = vpack.c.bf16 %v1549, %v1549
  %1559 = vrot.lane.b32.xlu0 %v41, 96
  %v1560 = vpop.permute.xlu0 %1559
  %1567 = vrot.lane.b32.xlu0 %v1553, 90
  %v1568 = vpop.permute.xlu0 %1567
  %1569 = vrot.lane.b32.xlu0 %v1554, 90
  %v1570 = vpop.permute.xlu0 %1569
  %1571 = vrot.lane.b32.xlu0 %v1555, 90
  %v1572 = vpop.permute.xlu0 %1571
  %1573 = vrot.lane.b32.xlu0 %v1556, 90
  %v1574 = vpop.permute.xlu0 %1573
  %1575 = vrot.lane.b32.xlu0 %v1557, 90
  %v1576 = vpop.permute.xlu0 %1575
  %1577 = vrot.lane.b32.xlu0 %v1558, 90
  %v1578 = vpop.permute.xlu0 %1577
  %vm1579 = vcmask 736256
  %v1580 = vsel %vm1579, %v1568, %v1570
  %v1581 = vsel %vm1579, %v1570, %v1572
  %v1582 = vsel %vm1579, %v1572, %v1574
  %v1583 = vsel %vm1579, %v1574, %v1576
  %v1584 = vsel %vm1579, %v1576, %v1578
  %v1586 = vsel %vm87, %v1560, 0
  %v1589 = vsel %vm91, %v1580, 0
  %v1592 = vsel %vm91, %v1581, 0
  %v1595 = vsel %vm91, %v1582, 0
  %v1598 = vsel %vm91, %v1583, 0
  %v1601 = vsel %vm91, %v1584, 0
  %v1604 = vsel %vm91, %v1578, 0
  %1606 = vmatprep.subr.bf16.mxu0 %v1592
  %1607 = vmatpush1.bf16.msra.mxu0 %v1589
  %1608 = vmatprep.subr.bf16.mxu0 0
  %1609 = vmatpush1.bf16.msra.mxu0 0
  %1610 = vmatprep.subr.bf16.mxu0 0
  %1611 = vmatpush1.bf16.msra.mxu0 0
  %1612 = vmatprep.subr.bf16.mxu0 0
  %1613 = vmatpush1.bf16.msra.mxu0 0
  %1614 = vmatprep.subr.bf16.mxu0 0
  %1615 = vmatpush1.bf16.msra.mxu0 0
  %1616 = vmatprep.subr.bf16.mxu0 0
  %1617 = vmatpush1.bf16.msra.mxu0 0
  %1618 = vmatprep.subr.bf16.mxu0 0
  %1619 = vmatpush1.bf16.msra.mxu0 0
  %1620 = vmatprep.subr.bf16.mxu0 0
  %1621 = vmatpush1.bf16.msra.mxu0 0
  %1622 = vmatprep.subr.bf16.mxu0 0
  %1623 = vmatpush1.bf16.msra.mxu0 0
  %1624 = vmatprep.subr.bf16.mxu0 0
  %1625 = vmatpush1.bf16.msra.mxu0 0
  %1626 = vmatprep.subr.bf16.mxu0 0
  %1627 = vmatpush1.bf16.msra.mxu0 0
  %1628 = vmatprep.subr.bf16.mxu0 0
  %1629 = vmatpush1.bf16.msra.mxu0 0
  %1630 = vmatprep.subr.bf16.mxu0 0
  %1631 = vmatpush1.bf16.msra.mxu0 0
  %1632 = vmatprep.subr.bf16.mxu0 0
  %1633 = vmatpush1.bf16.msra.mxu0 0
  %1634 = vmatprep.subr.bf16.mxu0 0
  %1635 = vmatpush1.bf16.msra.mxu0 0
  %1636 = vmatprep.subr.bf16.mxu0 0
  %1637 = vmatpush1.bf16.msra.mxu0 0
  %1638 = vmatprep.mubr.bf16.mxu0 0
  %1639 = vmatmul.mubr.bf16.gmra.mrb[0].mxu0 %v1586
  %v1640 = vpop.f32.mrb[0].mxu0
  %v1641 = vadd.f32 0.0, %v1640
  %v1642 = vpop.f32.mrb[0].mxu0
  %v1643 = vadd.f32 0.0, %v1642
  %v1644 = vpop.f32.mrb[0].mxu0
  %v1645 = vpop.f32.mrb[0].mxu0
  %1646 = vdwg.mxu0
  %1647 = vmatprep.subr.bf16.mxu0 %v1598
  %1648 = vmatpush1.bf16.msra.mxu0 %v1595
  %1649 = vmatprep.subr.bf16.mxu0 0
  %1650 = vmatpush1.bf16.msra.mxu0 0
  %1651 = vmatprep.subr.bf16.mxu0 0
  %1652 = vmatpush1.bf16.msra.mxu0 0
  %1653 = vmatprep.subr.bf16.mxu0 0
  %1654 = vmatpush1.bf16.msra.mxu0 0
  %1655 = vmatprep.subr.bf16.mxu0 0
  %1656 = vmatpush1.bf16.msra.mxu0 0
  %1657 = vmatprep.subr.bf16.mxu0 0
  %1658 = vmatpush1.bf16.msra.mxu0 0
  %1659 = vmatprep.subr.bf16.mxu0 0
  %1660 = vmatpush1.bf16.msra.mxu0 0
  %1661 = vmatprep.subr.bf16.mxu0 0
  %1662 = vmatpush1.bf16.msra.mxu0 0
  %1663 = vmatprep.subr.bf16.mxu0 0
  %1664 = vmatpush1.bf16.msra.mxu0 0
  %1665 = vmatprep.subr.bf16.mxu0 0
  %1666 = vmatpush1.bf16.msra.mxu0 0
  %1667 = vmatprep.subr.bf16.mxu0 0
  %1668 = vmatpush1.bf16.msra.mxu0 0
  %1669 = vmatprep.subr.bf16.mxu0 0
  %1670 = vmatpush1.bf16.msra.mxu0 0
  %1671 = vmatprep.subr.bf16.mxu0 0
  %1672 = vmatpush1.bf16.msra.mxu0 0
  %1673 = vmatprep.subr.bf16.mxu0 0
  %1674 = vmatpush1.bf16.msra.mxu0 0
  %1675 = vmatprep.subr.bf16.mxu0 0
  %1676 = vmatpush1.bf16.msra.mxu0 0
  %1677 = vmatprep.subr.bf16.mxu0 0
  %1678 = vmatpush1.bf16.msra.mxu0 0
  %1679 = vmatprep.mubr.bf16.mxu0 0
  %1680 = vmatmul.mubr.bf16.gmra.mrb[0].mxu0 %v1586
  %v1681 = vpop.f32.mrb[0].mxu0
  %v1682 = vadd.f32 0.0, %v1681
  %v1683 = vpop.f32.mrb[0].mxu0
  %v1684 = vadd.f32 0.0, %v1683
  %v1685 = vpop.f32.mrb[0].mxu0
  %v1686 = vpop.f32.mrb[0].mxu0
  %1687 = vdwg.mxu0
  %1688 = vmatprep.subr.bf16.mxu0 %v1604
  %1689 = vmatpush1.bf16.msra.mxu0 %v1601
  %1690 = vmatprep.subr.bf16.mxu0 0
  %1691 = vmatpush1.bf16.msra.mxu0 0
  %1692 = vmatprep.subr.bf16.mxu0 0
  %1693 = vmatpush1.bf16.msra.mxu0 0
  %1694 = vmatprep.subr.bf16.mxu0 0
  %1695 = vmatpush1.bf16.msra.mxu0 0
  %1696 = vmatprep.subr.bf16.mxu0 0
  %1697 = vmatpush1.bf16.msra.mxu0 0
  %1698 = vmatprep.subr.bf16.mxu0 0
  %1699 = vmatpush1.bf16.msra.mxu0 0
  %1700 = vmatprep.subr.bf16.mxu0 0
  %1701 = vmatpush1.bf16.msra.mxu0 0
  %1702 = vmatprep.subr.bf16.mxu0 0
  %1703 = vmatpush1.bf16.msra.mxu0 0
  %1704 = vmatprep.subr.bf16.mxu0 0
  %1705 = vmatpush1.bf16.msra.mxu0 0
  %1706 = vmatprep.subr.bf16.mxu0 0
  %1707 = vmatpush1.bf16.msra.mxu0 0
  %1708 = vmatprep.subr.bf16.mxu0 0
  %1709 = vmatpush1.bf16.msra.mxu0 0
  %1710 = vmatprep.subr.bf16.mxu0 0
  %1711 = vmatpush1.bf16.msra.mxu0 0
  %1712 = vmatprep.subr.bf16.mxu0 0
  %1713 = vmatpush1.bf16.msra.mxu0 0
  %1714 = vmatprep.subr.bf16.mxu0 0
  %1715 = vmatpush1.bf16.msra.mxu0 0
  %1716 = vmatprep.subr.bf16.mxu0 0
  %1717 = vmatpush1.bf16.msra.mxu0 0
  %1718 = vmatprep.subr.bf16.mxu0 0
  %1719 = vmatpush1.bf16.msra.mxu0 0
  %1720 = vmatprep.mubr.bf16.mxu0 0
  %1721 = vmatmul.mubr.bf16.gmra.mrb[0].mxu0 %v1586
  %v1722 = vpop.f32.mrb[0].mxu0
  %v1723 = vadd.f32 0.0, %v1722
  %v1724 = vpop.f32.mrb[0].mxu0
  %v1725 = vadd.f32 0.0, %v1724
  %v1726 = vpop.f32.mrb[0].mxu0
  %v1727 = vpop.f32.mrb[0].mxu0
  %1728 = vdwg.mxu0
  %v1729 = vadd.f32 %v1535, %v1641
  %v1730 = vadd.f32 %v1536, %v1643
  %v1731 = vadd.f32 %v1537, %v1682
  %v1732 = vadd.f32 %v1538, %v1684
  %v1733 = vadd.f32 %v1539, %v1723
  %v1734 = vadd.f32 %v1540, %v1725
  %v1735 = vld [vmem:[%s2] sm:$0xf]
  %1737 = vset.pattern.permute.xlu0 0
  %1738 = vperm.xlu0 %1737, %v1735
  %v1739 = vpop.permute.xlu0 %1738
  %v1741 = vadd.f32 %v1729, %v1739
  %v1742 = vadd.f32 %v1730, %v1739
  %v1743 = vadd.f32 %v1731, %v1739
  %v1744 = vadd.f32 %v1732, %v1739
  %v1745 = vadd.f32 %v1733, %v1739
  %v1746 = vadd.f32 %v1734, %v1739
  %v1747 = vmax.f32 %v1741, 0.0
  %v1748 = vmax.f32 %v1742, 0.0
  %v1749 = vmax.f32 %v1743, 0.0
  %v1750 = vmax.f32 %v1744, 0.0
  %v1751 = vmax.f32 %v1745, 0.0
  %v1752 = vmax.f32 %v1746, 0.0
  %v1754 = vlaneseq
  %v1755 = vshrl.u32 %v1754, 7
  %v1756 = vsub.s32 0, %v1755
  %v1757 = vrot.slane %v39, %v1756
  %v1758 = vlaneseq
  %v1759 = vshrl.u32 %v1758, 7
  %v1760 = vsub.s32 1, %v1759
  %v1761 = vrot.slane %v39, %v1760
  %v1762 = vlaneseq
  %v1763 = vshrl.u32 %v1762, 7
  %v1764 = vsub.s32 2, %v1763
  %v1765 = vrot.slane %v39, %v1764
  %v1766 = vlaneseq
  %v1767 = vshrl.u32 %v1766, 7
  %v1768 = vsub.s32 3, %v1767
  %v1769 = vrot.slane %v39, %v1768
  %v1770 = vlaneseq
  %v1771 = vshrl.u32 %v1770, 7
  %v1772 = vsub.s32 4, %v1771
  %v1773 = vrot.slane %v39, %v1772
  %v1774 = vlaneseq
  %v1775 = vshrl.u32 %v1774, 7
  %v1776 = vsub.s32 5, %v1775
  %v1777 = vrot.slane %v39, %v1776
  %v1784 = vmul.f32 %v1747, %v1757
  %v1785 = vmul.f32 %v1748, %v1761
  %v1786 = vmul.f32 %v1749, %v1765
  %v1787 = vmul.f32 %v1750, %v1769
  %v1788 = vmul.f32 %v1751, %v1773
  %v1789 = vmul.f32 %v1752, %v1777
  %vm1790 = vcmask 1043456
  %v1791 = vsel %vm1790, %v1784, 0.0
  %v1792 = vsel %vm1790, %v1785, 0.0
  %v1793 = vadd.f32 %v1791, %v1792
  %v1794 = vsel %vm1790, %v1786, 0.0
  %v1795 = vadd.f32 %v1793, %v1794
  %v1796 = vsel %vm1790, %v1787, 0.0
  %v1797 = vadd.f32 %v1795, %v1796
  %v1798 = vsel %vm1790, %v1788, 0.0
  %v1799 = vadd.f32 %v1797, %v1798
  %vm1800 = vcmask 60416
  %v1801 = vsel %vm1800, %v1789, 0.0
  %v1802 = vadd.f32 %v1799, %v1801
  %1803 = vadd.xlane.f32.xlu0 %v1802
  %v1804 = vpop.xlane.xlu0 %1803
  %v1805 = vmul.f32 %v1804, 0.001953125
  %v1806 = vsub.f32 %v1747, %v1805
  %v1807 = vsub.f32 %v1748, %v1805
  %v1808 = vsub.f32 %v1749, %v1805
  %v1809 = vsub.f32 %v1750, %v1805
  %v1810 = vsub.f32 %v1751, %v1805
  %v1811 = vsub.f32 %v1752, %v1805
  %v1812 = vmul.f32 %v1806, %v1757
  %v1813 = vmul.f32 %v1807, %v1761
  %v1814 = vmul.f32 %v1808, %v1765
  %v1815 = vmul.f32 %v1809, %v1769
  %v1816 = vmul.f32 %v1810, %v1773
  %v1817 = vmul.f32 %v1811, %v1777
  %v1818 = vmul.f32 %v1812, %v1812
  %v1819 = vmul.f32 %v1813, %v1813
  %v1820 = vmul.f32 %v1814, %v1814
  %v1821 = vmul.f32 %v1815, %v1815
  %v1822 = vmul.f32 %v1816, %v1816
  %v1823 = vmul.f32 %v1817, %v1817
  %v1824 = vsel %vm1790, %v1818, 0.0
  %v1825 = vsel %vm1790, %v1819, 0.0
  %v1826 = vadd.f32 %v1824, %v1825
  %v1827 = vsel %vm1790, %v1820, 0.0
  %v1828 = vadd.f32 %v1826, %v1827
  %v1829 = vsel %vm1790, %v1821, 0.0
  %v1830 = vadd.f32 %v1828, %v1829
  %v1831 = vsel %vm1790, %v1822, 0.0
  %v1832 = vadd.f32 %v1830, %v1831
  %v1833 = vsel %vm1800, %v1823, 0.0
  %v1834 = vadd.f32 %v1832, %v1833
  %1835 = vadd.xlane.f32.xlu0 %v1834
  %v1836 = vpop.xlane.xlu0 %1835
  %v1837 = vmul.f32 %v1836, 0.001953125
  %v1838 = vld [vmem:[%s3] sm:$0xf]
  %v1839 = vadd.f32 %v1837, 1e-05
  %v1840 = vrsqrt.pop %v1839
  %v1841 = vmul.f32 %v1838, %v1840
  %v1842 = vld [vmem:[%s4] sm:$0xf]
  %v1843 = vmul.f32 %v1805, %v1841
  %v1844 = vsub.f32 %v1842, %v1843
  %1846 = vset.pattern.permute.xlu0 0
  %1847 = vperm.xlu0 %1846, %v1841
  %v1848 = vpop.permute.xlu0 %1847
  %v1850 = vmul.f32 %v1747, %v1848
  %v1851 = vmul.f32 %v1748, %v1848
  %v1852 = vmul.f32 %v1749, %v1848
  %v1853 = vmul.f32 %v1750, %v1848
  %v1854 = vmul.f32 %v1751, %v1848
  %v1855 = vmul.f32 %v1752, %v1848
  %1857 = vset.pattern.permute.xlu0 0
  %1858 = vperm.xlu0 %1857, %v1844
  %v1859 = vpop.permute.xlu0 %1858
  %v1861 = vadd.f32 %v1850, %v1859
  %v1862 = vadd.f32 %v1851, %v1859
  %v1863 = vadd.f32 %v1852, %v1859
  %v1864 = vadd.f32 %v1853, %v1859
  %v1865 = vadd.f32 %v1854, %v1859
  %v1866 = vadd.f32 %v1855, %v1859
  %v1867 = vmul.f32 %v1861, %v1757
  %v1868 = vmul.f32 %v1862, %v1761
  %v1869 = vmul.f32 %v1863, %v1765
  %v1870 = vmul.f32 %v1864, %v1769
  %v1871 = vmul.f32 %v1865, %v1773
  %v1872 = vmul.f32 %v1866, %v1777
  %1873 = vst [vmem:[#allocation2] sm:$0xff] 0.0
  %1874 = vst [vmem:[#allocation2 + $0x8] sm:$0xff] 0.0
  %1875 = vst [vmem:[#allocation2 + $0x10] sm:$0xff] 0.0
  %v1882 = vcombine.low %v1867, %v1868
  %v1883 = vcombine.low %v1869, %v1870
  %v1884 = vcombine.low %v1871, %v1872
  %1885 = vrot.lane.b32.xlu0 %v1882, 19
  %v1886 = vpop.permute.xlu0 %1885
  %1887 = vrot.lane.b32.xlu0 %v1883, 19
  %v1888 = vpop.permute.xlu0 %1887
  %1889 = vrot.lane.b32.xlu0 %v1884, 19
  %v1890 = vpop.permute.xlu0 %1889
  %v1891 = vrot.slane %v1886, 4
  %v1892 = vrot.slane %v1888, 4
  %v1893 = vrot.slane %v1890, 4
  %vm1894 = vcmask 154624
  %v1895 = vsel %vm1894, %v1891, %v1886
  %v1896 = vsel %vm1790, %v1891, %v1892
  %v1897 = vsel %vm1894, %v1896, %v1888
  %v1898 = vsel %vm1790, %v1892, %v1893
  %v1899 = vsel %vm1894, %v1898, %v1890
  %vm1903 = vcmask 1043608
  %vm1904 = vcmask 1047556
  %vm1905 = vmor %vm1904, %vm1903
  %1906 = vst.msk [vmem:[#allocation2] sm:$0xff] %vm1905, %v1895
  %1907 = vst [vmem:[#allocation2 + $0x8] sm:$0xff] %v1897
  %vm1908 = vcmask 220164
  %vm1909 = vmor %vm1908, %vm1790
  %1910 = vst.msk [vmem:[#allocation2 + $0x10] sm:$0xff] %vm1909, %v1899
  %v1911 = vld [vmem:[%s6] sm:$0xff]
  %v1912 = vld [vmem:[%s6 + $0x8] sm:$0xff]
  %v1913 = vld [vmem:[%s6 + $0x10] sm:$0xff]
  %v1914 = vld [vmem:[%s6 + $0x18] sm:$0xff]
  %v1915 = vpack.c.bf16 %v1912, %v1911
  %v1916 = vpack.c.bf16 %v1914, %v1913
  %v1917 = vld [vmem:[%s0] sm:$0xff]
  %v1918 = vld [vmem:[%s0 + $0x8] sm:$0xff]
  %v1919 = vld [vmem:[%s0 + $0x10] sm:$0xff]
  %v1923 = vcombine.high %v1917, %v1917
  %v1924 = vcombine.high %v1918, %v1918
  %v1925 = vcombine.high %v1919, %v1919
  %v1929 = vpack.c.bf16 %v1917, %v1917
  %v1930 = vpack.c.bf16 %v1923, %v1923
  %v1931 = vpack.c.bf16 %v1918, %v1918
  %v1932 = vpack.c.bf16 %v1924, %v1924
  %v1933 = vpack.c.bf16 %v1919, %v1919
  %v1934 = vpack.c.bf16 %v1925, %v1925
  %v1935 = vld [vmem:[%s5] sm:$0xff]
  %v1936 = vld [vmem:[%s5 + $0x8] sm:$0xff]
  %v1937 = vld [vmem:[%s5 + $0x10] sm:$0xff]
  %v1938 = vld [vmem:[%s5 + $0x18] sm:$0xff]
  %v1939 = vpack.c.bf16 %v1936, %v1935
  %v1940 = vpack.c.bf16 %v1938, %v1937
  %v1941 = vld [vmem:[#allocation2] sm:$0xff]
  %v1942 = vld [vmem:[#allocation2 + $0x8] sm:$0xff]
  %v1943 = vld [vmem:[#allocation2 + $0x10] sm:$0xff]
  %v1947 = vcombine.high %v1941, %v1941
  %v1948 = vcombine.high %v1942, %v1942
  %v1949 = vcombine.high %v1943, %v1943
  %v1953 = vpack.c.bf16 %v1941, %v1941
  %v1954 = vpack.c.bf16 %v1947, %v1947
  %v1955 = vpack.c.bf16 %v1942, %v1942
  %v1956 = vpack.c.bf16 %v1948, %v1948
  %v1957 = vpack.c.bf16 %v1943, %v1943
  %v1958 = vpack.c.bf16 %v1949, %v1949
  %1965 = vrot.lane.b32.xlu0 %v1953, 109
  %v1966 = vpop.permute.xlu0 %1965
  %1967 = vrot.lane.b32.xlu0 %v1954, 109
  %v1968 = vpop.permute.xlu0 %1967
  %1969 = vrot.lane.b32.xlu0 %v1955, 109
  %v1970 = vpop.permute.xlu0 %1969
  %1971 = vrot.lane.b32.xlu0 %v1956, 109
  %v1972 = vpop.permute.xlu0 %1971
  %1973 = vrot.lane.b32.xlu0 %v1957, 109
  %v1974 = vpop.permute.xlu0 %1973
  %1975 = vrot.lane.b32.xlu0 %v1958, 109
  %v1976 = vpop.permute.xlu0 %1975
  %v1977 = vsel %vm803, %v1966, %v1968
  %v1978 = vsel %vm803, %v1968, %v1970
  %v1979 = vsel %vm803, %v1970, %v1972
  %v1980 = vsel %vm803, %v1972, %v1974
  %v1981 = vsel %vm803, %v1974, %v1976
  %v1983 = vsel %vm87, %v1939, 0
  %v1986 = vsel %vm87, %v1940, 0
  %v1989 = vsel %vm91, %v1977, 0
  %v1992 = vsel %vm91, %v1978, 0
  %v1995 = vsel %vm91, %v1979, 0
  %v1998 = vsel %vm91, %v1980, 0
  %v2001 = vsel %vm91, %v1981, 0
  %v2004 = vsel %vm91, %v1976, 0
  %2006 = vmatprep.subr.bf16.mxu0 %v1992
  %2007 = vmatpush1.bf16.msra.mxu0 %v1989
  %2008 = vmatprep.subr.bf16.mxu0 0
  %2009 = vmatpush1.bf16.msra.mxu0 0
  %2010 = vmatprep.subr.bf16.mxu0 0
  %2011 = vmatpush1.bf16.msra.mxu0 0
  %2012 = vmatprep.subr.bf16.mxu0 0
  %2013 = vmatpush1.bf16.msra.mxu0 0
  %2014 = vmatprep.subr.bf16.mxu0 0
  %2015 = vmatpush1.bf16.msra.mxu0 0
  %2016 = vmatprep.subr.bf16.mxu0 0
  %2017 = vmatpush1.bf16.msra.mxu0 0
  %2018 = vmatprep.subr.bf16.mxu0 0
  %2019 = vmatpush1.bf16.msra.mxu0 0
  %2020 = vmatprep.subr.bf16.mxu0 0
  %2021 = vmatpush1.bf16.msra.mxu0 0
  %2022 = vmatprep.subr.bf16.mxu0 0
  %2023 = vmatpush1.bf16.msra.mxu0 0
  %2024 = vmatprep.subr.bf16.mxu0 0
  %2025 = vmatpush1.bf16.msra.mxu0 0
  %2026 = vmatprep.subr.bf16.mxu0 0
  %2027 = vmatpush1.bf16.msra.mxu0 0
  %2028 = vmatprep.subr.bf16.mxu0 0
  %2029 = vmatpush1.bf16.msra.mxu0 0
  %2030 = vmatprep.subr.bf16.mxu0 0
  %2031 = vmatpush1.bf16.msra.mxu0 0
  %2032 = vmatprep.subr.bf16.mxu0 0
  %2033 = vmatpush1.bf16.msra.mxu0 0
  %2034 = vmatprep.subr.bf16.mxu0 0
  %2035 = vmatpush1.bf16.msra.mxu0 0
  %2036 = vmatprep.subr.bf16.mxu0 0
  %2037 = vmatpush1.bf16.msra.mxu0 0
  %2038 = vmatprep.mubr.bf16.mxu0 0
  %2039 = vmatmul.mubr.bf16.gmra.mrb[0].mxu0 %v1983
  %v2040 = vpop.f32.mrb[0].mxu0
  %v2041 = vadd.f32 0.0, %v2040
  %v2042 = vpop.f32.mrb[0].mxu0
  %v2043 = vadd.f32 0.0, %v2042
  %v2044 = vpop.f32.mrb[0].mxu0
  %v2045 = vadd.f32 0.0, %v2044
  %v2046 = vpop.f32.mrb[0].mxu0
  %v2047 = vadd.f32 0.0, %v2046
  %2048 = vmatprep.mubr.bf16.mxu0 0
  %2049 = vmatmul.mubr.bf16.gmra.mrb[0].mxu0 %v1986
  %v2050 = vpop.f32.mrb[0].mxu0
  %v2051 = vadd.f32 0.0, %v2050
  %v2052 = vpop.f32.mrb[0].mxu0
  %v2053 = vadd.f32 0.0, %v2052
  %v2054 = vpop.f32.mrb[0].mxu0
  %v2055 = vadd.f32 0.0, %v2054
  %v2056 = vpop.f32.mrb[0].mxu0
  %v2057 = vadd.f32 0.0, %v2056
  %2058 = vdwg.mxu0
  %2059 = vmatprep.subr.bf16.mxu0 %v1998
  %2060 = vmatpush1.bf16.msra.mxu0 %v1995
  %2061 = vmatprep.subr.bf16.mxu0 0
  %2062 = vmatpush1.bf16.msra.mxu0 0
  %2063 = vmatprep.subr.bf16.mxu0 0
  %2064 = vmatpush1.bf16.msra.mxu0 0
  %2065 = vmatprep.subr.bf16.mxu0 0
  %2066 = vmatpush1.bf16.msra.mxu0 0
  %2067 = vmatprep.subr.bf16.mxu0 0
  %2068 = vmatpush1.bf16.msra.mxu0 0
  %2069 = vmatprep.subr.bf16.mxu0 0
  %2070 = vmatpush1.bf16.msra.mxu0 0
  %2071 = vmatprep.subr.bf16.mxu0 0
  %2072 = vmatpush1.bf16.msra.mxu0 0
  %2073 = vmatprep.subr.bf16.mxu0 0
  %2074 = vmatpush1.bf16.msra.mxu0 0
  %2075 = vmatprep.subr.bf16.mxu0 0
  %2076 = vmatpush1.bf16.msra.mxu0 0
  %2077 = vmatprep.subr.bf16.mxu0 0
  %2078 = vmatpush1.bf16.msra.mxu0 0
  %2079 = vmatprep.subr.bf16.mxu0 0
  %2080 = vmatpush1.bf16.msra.mxu0 0
  %2081 = vmatprep.subr.bf16.mxu0 0
  %2082 = vmatpush1.bf16.msra.mxu0 0
  %2083 = vmatprep.subr.bf16.mxu0 0
  %2084 = vmatpush1.bf16.msra.mxu0 0
  %2085 = vmatprep.subr.bf16.mxu0 0
  %2086 = vmatpush1.bf16.msra.mxu0 0
  %2087 = vmatprep.subr.bf16.mxu0 0
  %2088 = vmatpush1.bf16.msra.mxu0 0
  %2089 = vmatprep.subr.bf16.mxu0 0
  %2090 = vmatpush1.bf16.msra.mxu0 0
  %2091 = vmatprep.mubr.bf16.mxu0 0
  %2092 = vmatmul.mubr.bf16.gmra.mrb[0].mxu0 %v1983
  %v2093 = vpop.f32.mrb[0].mxu0
  %v2094 = vadd.f32 0.0, %v2093
  %v2095 = vpop.f32.mrb[0].mxu0
  %v2096 = vadd.f32 0.0, %v2095
  %v2097 = vpop.f32.mrb[0].mxu0
  %v2098 = vadd.f32 0.0, %v2097
  %v2099 = vpop.f32.mrb[0].mxu0
  %v2100 = vadd.f32 0.0, %v2099
  %2101 = vmatprep.mubr.bf16.mxu0 0
  %2102 = vmatmul.mubr.bf16.gmra.mrb[0].mxu0 %v1986
  %v2103 = vpop.f32.mrb[0].mxu0
  %v2104 = vadd.f32 0.0, %v2103
  %v2105 = vpop.f32.mrb[0].mxu0
  %v2106 = vadd.f32 0.0, %v2105
  %v2107 = vpop.f32.mrb[0].mxu0
  %v2108 = vadd.f32 0.0, %v2107
  %v2109 = vpop.f32.mrb[0].mxu0
  %v2110 = vadd.f32 0.0, %v2109
  %2111 = vdwg.mxu0
  %2112 = vmatprep.subr.bf16.mxu0 %v2004
  %2113 = vmatpush1.bf16.msra.mxu0 %v2001
  %2114 = vmatprep.subr.bf16.mxu0 0
  %2115 = vmatpush1.bf16.msra.mxu0 0
  %2116 = vmatprep.subr.bf16.mxu0 0
  %2117 = vmatpush1.bf16.msra.mxu0 0
  %2118 = vmatprep.subr.bf16.mxu0 0
  %2119 = vmatpush1.bf16.msra.mxu0 0
  %2120 = vmatprep.subr.bf16.mxu0 0
  %2121 = vmatpush1.bf16.msra.mxu0 0
  %2122 = vmatprep.subr.bf16.mxu0 0
  %2123 = vmatpush1.bf16.msra.mxu0 0
  %2124 = vmatprep.subr.bf16.mxu0 0
  %2125 = vmatpush1.bf16.msra.mxu0 0
  %2126 = vmatprep.subr.bf16.mxu0 0
  %2127 = vmatpush1.bf16.msra.mxu0 0
  %2128 = vmatprep.subr.bf16.mxu0 0
  %2129 = vmatpush1.bf16.msra.mxu0 0
  %2130 = vmatprep.subr.bf16.mxu0 0
  %2131 = vmatpush1.bf16.msra.mxu0 0
  %2132 = vmatprep.subr.bf16.mxu0 0
  %2133 = vmatpush1.bf16.msra.mxu0 0
  %2134 = vmatprep.subr.bf16.mxu0 0
  %2135 = vmatpush1.bf16.msra.mxu0 0
  %2136 = vmatprep.subr.bf16.mxu0 0
  %2137 = vmatpush1.bf16.msra.mxu0 0
  %2138 = vmatprep.subr.bf16.mxu0 0
  %2139 = vmatpush1.bf16.msra.mxu0 0
  %2140 = vmatprep.subr.bf16.mxu0 0
  %2141 = vmatpush1.bf16.msra.mxu0 0
  %2142 = vmatprep.subr.bf16.mxu0 0
  %2143 = vmatpush1.bf16.msra.mxu0 0
  %2144 = vmatprep.mubr.bf16.mxu0 0
  %2145 = vmatmul.mubr.bf16.gmra.mrb[0].mxu0 %v1983
  %v2146 = vpop.f32.mrb[0].mxu0
  %v2147 = vadd.f32 0.0, %v2146
  %v2148 = vpop.f32.mrb[0].mxu0
  %v2149 = vadd.f32 0.0, %v2148
  %v2150 = vpop.f32.mrb[0].mxu0
  %v2151 = vadd.f32 0.0, %v2150
  %v2152 = vpop.f32.mrb[0].mxu0
  %v2153 = vadd.f32 0.0, %v2152
  %2154 = vmatprep.mubr.bf16.mxu0 0
  %2155 = vmatmul.mubr.bf16.gmra.mrb[0].mxu0 %v1986
  %v2156 = vpop.f32.mrb[0].mxu0
  %v2157 = vadd.f32 0.0, %v2156
  %v2158 = vpop.f32.mrb[0].mxu0
  %v2159 = vadd.f32 0.0, %v2158
  %v2160 = vpop.f32.mrb[0].mxu0
  %v2161 = vadd.f32 0.0, %v2160
  %v2162 = vpop.f32.mrb[0].mxu0
  %v2163 = vadd.f32 0.0, %v2162
  %2164 = vdwg.mxu0
  %2171 = vrot.lane.b32.xlu0 %v1929, 109
  %v2172 = vpop.permute.xlu0 %2171
  %2173 = vrot.lane.b32.xlu0 %v1930, 109
  %v2174 = vpop.permute.xlu0 %2173
  %2175 = vrot.lane.b32.xlu0 %v1931, 109
  %v2176 = vpop.permute.xlu0 %2175
  %2177 = vrot.lane.b32.xlu0 %v1932, 109
  %v2178 = vpop.permute.xlu0 %2177
  %2179 = vrot.lane.b32.xlu0 %v1933, 109
  %v2180 = vpop.permute.xlu0 %2179
  %2181 = vrot.lane.b32.xlu0 %v1934, 109
  %v2182 = vpop.permute.xlu0 %2181
  %v2183 = vsel %vm803, %v2172, %v2174
  %v2184 = vsel %vm803, %v2174, %v2176
  %v2185 = vsel %vm803, %v2176, %v2178
  %v2186 = vsel %vm803, %v2178, %v2180
  %v2187 = vsel %vm803, %v2180, %v2182
  %v2189 = vsel %vm87, %v1915, 0
  %v2192 = vsel %vm87, %v1916, 0
  %v2195 = vsel %vm91, %v2183, 0
  %v2198 = vsel %vm91, %v2184, 0
  %v2201 = vsel %vm91, %v2185, 0
  %v2204 = vsel %vm91, %v2186, 0
  %v2207 = vsel %vm91, %v2187, 0
  %v2210 = vsel %vm91, %v2182, 0
  %2212 = vmatprep.subr.bf16.mxu0 %v2198
  %2213 = vmatpush1.bf16.msra.mxu0 %v2195
  %2214 = vmatprep.subr.bf16.mxu0 0
  %2215 = vmatpush1.bf16.msra.mxu0 0
  %2216 = vmatprep.subr.bf16.mxu0 0
  %2217 = vmatpush1.bf16.msra.mxu0 0
  %2218 = vmatprep.subr.bf16.mxu0 0
  %2219 = vmatpush1.bf16.msra.mxu0 0
  %2220 = vmatprep.subr.bf16.mxu0 0
  %2221 = vmatpush1.bf16.msra.mxu0 0
  %2222 = vmatprep.subr.bf16.mxu0 0
  %2223 = vmatpush1.bf16.msra.mxu0 0
  %2224 = vmatprep.subr.bf16.mxu0 0
  %2225 = vmatpush1.bf16.msra.mxu0 0
  %2226 = vmatprep.subr.bf16.mxu0 0
  %2227 = vmatpush1.bf16.msra.mxu0 0
  %2228 = vmatprep.subr.bf16.mxu0 0
  %2229 = vmatpush1.bf16.msra.mxu0 0
  %2230 = vmatprep.subr.bf16.mxu0 0
  %2231 = vmatpush1.bf16.msra.mxu0 0
  %2232 = vmatprep.subr.bf16.mxu0 0
  %2233 = vmatpush1.bf16.msra.mxu0 0
  %2234 = vmatprep.subr.bf16.mxu0 0
  %2235 = vmatpush1.bf16.msra.mxu0 0
  %2236 = vmatprep.subr.bf16.mxu0 0
  %2237 = vmatpush1.bf16.msra.mxu0 0
  %2238 = vmatprep.subr.bf16.mxu0 0
  %2239 = vmatpush1.bf16.msra.mxu0 0
  %2240 = vmatprep.subr.bf16.mxu0 0
  %2241 = vmatpush1.bf16.msra.mxu0 0
  %2242 = vmatprep.subr.bf16.mxu0 0
  %2243 = vmatpush1.bf16.msra.mxu0 0
  %2244 = vmatprep.mubr.bf16.mxu0 0
  %2245 = vmatmul.mubr.bf16.gmra.mrb[0].mxu0 %v2189
  %v2246 = vpop.f32.mrb[0].mxu0
  %v2247 = vadd.f32 %v2041, %v2246
  %v2248 = vpop.f32.mrb[0].mxu0
  %v2249 = vadd.f32 %v2043, %v2248
  %v2250 = vpop.f32.mrb[0].mxu0
  %v2251 = vadd.f32 %v2045, %v2250
  %v2252 = vpop.f32.mrb[0].mxu0
  %v2253 = vadd.f32 %v2047, %v2252
  %2254 = vmatprep.mubr.bf16.mxu0 0
  %2255 = vmatmul.mubr.bf16.gmra.mrb[0].mxu0 %v2192
  %v2256 = vpop.f32.mrb[0].mxu0
  %v2257 = vadd.f32 %v2051, %v2256
  %v2258 = vpop.f32.mrb[0].mxu0
  %v2259 = vadd.f32 %v2053, %v2258
  %v2260 = vpop.f32.mrb[0].mxu0
  %v2261 = vadd.f32 %v2055, %v2260
  %v2262 = vpop.f32.mrb[0].mxu0
  %v2263 = vadd.f32 %v2057, %v2262
  %2264 = vdwg.mxu0
  %2265 = vmatprep.subr.bf16.mxu0 %v2204
  %2266 = vmatpush1.bf16.msra.mxu0 %v2201
  %2267 = vmatprep.subr.bf16.mxu0 0
  %2268 = vmatpush1.bf16.msra.mxu0 0
  %2269 = vmatprep.subr.bf16.mxu0 0
  %2270 = vmatpush1.bf16.msra.mxu0 0
  %2271 = vmatprep.subr.bf16.mxu0 0
  %2272 = vmatpush1.bf16.msra.mxu0 0
  %2273 = vmatprep.subr.bf16.mxu0 0
  %2274 = vmatpush1.bf16.msra.mxu0 0
  %2275 = vmatprep.subr.bf16.mxu0 0
  %2276 = vmatpush1.bf16.msra.mxu0 0
  %2277 = vmatprep.subr.bf16.mxu0 0
  %2278 = vmatpush1.bf16.msra.mxu0 0
  %2279 = vmatprep.subr.bf16.mxu0 0
  %2280 = vmatpush1.bf16.msra.mxu0 0
  %2281 = vmatprep.subr.bf16.mxu0 0
  %2282 = vmatpush1.bf16.msra.mxu0 0
  %2283 = vmatprep.subr.bf16.mxu0 0
  %2284 = vmatpush1.bf16.msra.mxu0 0
  %2285 = vmatprep.subr.bf16.mxu0 0
  %2286 = vmatpush1.bf16.msra.mxu0 0
  %2287 = vmatprep.subr.bf16.mxu0 0
  %2288 = vmatpush1.bf16.msra.mxu0 0
  %2289 = vmatprep.subr.bf16.mxu0 0
  %2290 = vmatpush1.bf16.msra.mxu0 0
  %2291 = vmatprep.subr.bf16.mxu0 0
  %2292 = vmatpush1.bf16.msra.mxu0 0
  %2293 = vmatprep.subr.bf16.mxu0 0
  %2294 = vmatpush1.bf16.msra.mxu0 0
  %2295 = vmatprep.subr.bf16.mxu0 0
  %2296 = vmatpush1.bf16.msra.mxu0 0
  %2297 = vmatprep.mubr.bf16.mxu0 0
  %2298 = vmatmul.mubr.bf16.gmra.mrb[0].mxu0 %v2189
  %v2299 = vpop.f32.mrb[0].mxu0
  %v2300 = vadd.f32 %v2094, %v2299
  %v2301 = vpop.f32.mrb[0].mxu0
  %v2302 = vadd.f32 %v2096, %v2301
  %v2303 = vpop.f32.mrb[0].mxu0
  %v2304 = vadd.f32 %v2098, %v2303
  %v2305 = vpop.f32.mrb[0].mxu0
  %v2306 = vadd.f32 %v2100, %v2305
  %2307 = vmatprep.mubr.bf16.mxu0 0
  %2308 = vmatmul.mubr.bf16.gmra.mrb[0].mxu0 %v2192
  %v2309 = vpop.f32.mrb[0].mxu0
  %v2310 = vadd.f32 %v2104, %v2309
  %v2311 = vpop.f32.mrb[0].mxu0
  %v2312 = vadd.f32 %v2106, %v2311
  %v2313 = vpop.f32.mrb[0].mxu0
  %v2314 = vadd.f32 %v2108, %v2313
  %v2315 = vpop.f32.mrb[0].mxu0
  %v2316 = vadd.f32 %v2110, %v2315
  %2317 = vdwg.mxu0
  %2318 = vmatprep.subr.bf16.mxu0 %v2210
  %2319 = vmatpush1.bf16.msra.mxu0 %v2207
  %2320 = vmatprep.subr.bf16.mxu0 0
  %2321 = vmatpush1.bf16.msra.mxu0 0
  %2322 = vmatprep.subr.bf16.mxu0 0
  %2323 = vmatpush1.bf16.msra.mxu0 0
  %2324 = vmatprep.subr.bf16.mxu0 0
  %2325 = vmatpush1.bf16.msra.mxu0 0
  %2326 = vmatprep.subr.bf16.mxu0 0
  %2327 = vmatpush1.bf16.msra.mxu0 0
  %2328 = vmatprep.subr.bf16.mxu0 0
  %2329 = vmatpush1.bf16.msra.mxu0 0
  %2330 = vmatprep.subr.bf16.mxu0 0
  %2331 = vmatpush1.bf16.msra.mxu0 0
  %2332 = vmatprep.subr.bf16.mxu0 0
  %2333 = vmatpush1.bf16.msra.mxu0 0
  %2334 = vmatprep.subr.bf16.mxu0 0
  %2335 = vmatpush1.bf16.msra.mxu0 0
  %2336 = vmatprep.subr.bf16.mxu0 0
  %2337 = vmatpush1.bf16.msra.mxu0 0
  %2338 = vmatprep.subr.bf16.mxu0 0
  %2339 = vmatpush1.bf16.msra.mxu0 0
  %2340 = vmatprep.subr.bf16.mxu0 0
  %2341 = vmatpush1.bf16.msra.mxu0 0
  %2342 = vmatprep.subr.bf16.mxu0 0
  %2343 = vmatpush1.bf16.msra.mxu0 0
  %2344 = vmatprep.subr.bf16.mxu0 0
  %2345 = vmatpush1.bf16.msra.mxu0 0
  %2346 = vmatprep.subr.bf16.mxu0 0
  %2347 = vmatpush1.bf16.msra.mxu0 0
  %2348 = vmatprep.subr.bf16.mxu0 0
  %2349 = vmatpush1.bf16.msra.mxu0 0
  %2350 = vmatprep.mubr.bf16.mxu0 0
  %2351 = vmatmul.mubr.bf16.gmra.mrb[0].mxu0 %v2189
  %v2352 = vpop.f32.mrb[0].mxu0
  %v2353 = vadd.f32 %v2147, %v2352
  %v2354 = vpop.f32.mrb[0].mxu0
  %v2355 = vadd.f32 %v2149, %v2354
  %v2356 = vpop.f32.mrb[0].mxu0
  %v2357 = vadd.f32 %v2151, %v2356
  %v2358 = vpop.f32.mrb[0].mxu0
  %v2359 = vadd.f32 %v2153, %v2358
  %2360 = vmatprep.mubr.bf16.mxu0 0
  %2361 = vmatmul.mubr.bf16.gmra.mrb[0].mxu0 %v2192
  %v2362 = vpop.f32.mrb[0].mxu0
  %v2363 = vadd.f32 %v2157, %v2362
  %v2364 = vpop.f32.mrb[0].mxu0
  %v2365 = vadd.f32 %v2159, %v2364
  %v2366 = vpop.f32.mrb[0].mxu0
  %v2367 = vadd.f32 %v2161, %v2366
  %v2368 = vpop.f32.mrb[0].mxu0
  %v2369 = vadd.f32 %v2163, %v2368
  %2370 = vdwg.mxu0
  %v2371 = vld [vmem:[#allocation2] sm:$0xff]
  %v2372 = vld [vmem:[#allocation2 + $0x8] sm:$0xff]
  %v2373 = vld [vmem:[#allocation2 + $0x10] sm:$0xff]
  %v2377 = vcombine.high %v2371, %v2371
  %v2378 = vcombine.high %v2372, %v2372
  %v2379 = vcombine.high %v2373, %v2373
  %v2383 = vpack.c.bf16 %v2371, %v2371
  %v2384 = vpack.c.bf16 %v2377, %v2377
  %v2385 = vpack.c.bf16 %v2372, %v2372
  %v2386 = vpack.c.bf16 %v2378, %v2378
  %v2387 = vpack.c.bf16 %v2373, %v2373
  %v2388 = vpack.c.bf16 %v2379, %v2379
  %2391 = vrot.lane.b32.xlu0 %v1939, 124
  %v2392 = vpop.permute.xlu0 %2391
  %2393 = vrot.lane.b32.xlu0 %v1940, 124
  %v2394 = vpop.permute.xlu0 %2393
  %2401 = vrot.lane.b32.xlu0 %v2383, 110
  %v2402 = vpop.permute.xlu0 %2401
  %2403 = vrot.lane.b32.xlu0 %v2384, 110
  %v2404 = vpop.permute.xlu0 %2403
  %2405 = vrot.lane.b32.xlu0 %v2385, 110
  %v2406 = vpop.permute.xlu0 %2405
  %2407 = vrot.lane.b32.xlu0 %v2386, 110
  %v2408 = vpop.permute.xlu0 %2407
  %2409 = vrot.lane.b32.xlu0 %v2387, 110
  %v2410 = vpop.permute.xlu0 %2409
  %2411 = vrot.lane.b32.xlu0 %v2388, 110
  %v2412 = vpop.permute.xlu0 %2411
  %v2413 = vsel %vm609, %v2402, %v2404
  %v2414 = vsel %vm609, %v2404, %v2406
  %v2415 = vsel %vm609, %v2406, %v2408
  %v2416 = vsel %vm609, %v2408, %v2410
  %v2417 = vsel %vm609, %v2410, %v2412
  %v2419 = vsel %vm87, %v2392, 0
  %v2422 = vsel %vm87, %v2394, 0
  %v2425 = vsel %vm91, %v2413, 0
  %v2428 = vsel %vm91, %v2414, 0
  %v2431 = vsel %vm91, %v2415, 0
  %v2434 = vsel %vm91, %v2416, 0
  %v2437 = vsel %vm91, %v2417, 0
  %v2440 = vsel %vm91, %v2412, 0
  %2442 = vmatprep.subr.bf16.mxu0 %v2428
  %2443 = vmatpush1.bf16.msra.mxu0 %v2425
  %2444 = vmatprep.subr.bf16.mxu0 0
  %2445 = vmatpush1.bf16.msra.mxu0 0
  %2446 = vmatprep.subr.bf16.mxu0 0
  %2447 = vmatpush1.bf16.msra.mxu0 0
  %2448 = vmatprep.subr.bf16.mxu0 0
  %2449 = vmatpush1.bf16.msra.mxu0 0
  %2450 = vmatprep.subr.bf16.mxu0 0
  %2451 = vmatpush1.bf16.msra.mxu0 0
  %2452 = vmatprep.subr.bf16.mxu0 0
  %2453 = vmatpush1.bf16.msra.mxu0 0
  %2454 = vmatprep.subr.bf16.mxu0 0
  %2455 = vmatpush1.bf16.msra.mxu0 0
  %2456 = vmatprep.subr.bf16.mxu0 0
  %2457 = vmatpush1.bf16.msra.mxu0 0
  %2458 = vmatprep.subr.bf16.mxu0 0
  %2459 = vmatpush1.bf16.msra.mxu0 0
  %2460 = vmatprep.subr.bf16.mxu0 0
  %2461 = vmatpush1.bf16.msra.mxu0 0
  %2462 = vmatprep.subr.bf16.mxu0 0
  %2463 = vmatpush1.bf16.msra.mxu0 0
  %2464 = vmatprep.subr.bf16.mxu0 0
  %2465 = vmatpush1.bf16.msra.mxu0 0
  %2466 = vmatprep.subr.bf16.mxu0 0
  %2467 = vmatpush1.bf16.msra.mxu0 0
  %2468 = vmatprep.subr.bf16.mxu0 0
  %2469 = vmatpush1.bf16.msra.mxu0 0
  %2470 = vmatprep.subr.bf16.mxu0 0
  %2471 = vmatpush1.bf16.msra.mxu0 0
  %2472 = vmatprep.subr.bf16.mxu0 0
  %2473 = vmatpush1.bf16.msra.mxu0 0
  %2474 = vmatprep.mubr.bf16.mxu0 0
  %2475 = vmatmul.mubr.bf16.gmra.mrb[0].mxu0 %v2419
  %v2476 = vpop.f32.mrb[0].mxu0
  %v2477 = vadd.f32 0.0, %v2476
  %v2478 = vpop.f32.mrb[0].mxu0
  %v2479 = vadd.f32 0.0, %v2478
  %v2480 = vpop.f32.mrb[0].mxu0
  %v2481 = vadd.f32 0.0, %v2480
  %v2482 = vpop.f32.mrb[0].mxu0
  %v2483 = vadd.f32 0.0, %v2482
  %2484 = vmatprep.mubr.bf16.mxu0 0
  %2485 = vmatmul.mubr.bf16.gmra.mrb[0].mxu0 %v2422
  %v2486 = vpop.f32.mrb[0].mxu0
  %v2487 = vadd.f32 0.0, %v2486
  %v2488 = vpop.f32.mrb[0].mxu0
  %v2489 = vadd.f32 0.0, %v2488
  %v2490 = vpop.f32.mrb[0].mxu0
  %v2491 = vadd.f32 0.0, %v2490
  %v2492 = vpop.f32.mrb[0].mxu0
  %v2493 = vadd.f32 0.0, %v2492
  %2494 = vdwg.mxu0
  %2495 = vmatprep.subr.bf16.mxu0 %v2434
  %2496 = vmatpush1.bf16.msra.mxu0 %v2431
  %2497 = vmatprep.subr.bf16.mxu0 0
  %2498 = vmatpush1.bf16.msra.mxu0 0
  %2499 = vmatprep.subr.bf16.mxu0 0
  %2500 = vmatpush1.bf16.msra.mxu0 0
  %2501 = vmatprep.subr.bf16.mxu0 0
  %2502 = vmatpush1.bf16.msra.mxu0 0
  %2503 = vmatprep.subr.bf16.mxu0 0
  %2504 = vmatpush1.bf16.msra.mxu0 0
  %2505 = vmatprep.subr.bf16.mxu0 0
  %2506 = vmatpush1.bf16.msra.mxu0 0
  %2507 = vmatprep.subr.bf16.mxu0 0
  %2508 = vmatpush1.bf16.msra.mxu0 0
  %2509 = vmatprep.subr.bf16.mxu0 0
  %2510 = vmatpush1.bf16.msra.mxu0 0
  %2511 = vmatprep.subr.bf16.mxu0 0
  %2512 = vmatpush1.bf16.msra.mxu0 0
  %2513 = vmatprep.subr.bf16.mxu0 0
  %2514 = vmatpush1.bf16.msra.mxu0 0
  %2515 = vmatprep.subr.bf16.mxu0 0
  %2516 = vmatpush1.bf16.msra.mxu0 0
  %2517 = vmatprep.subr.bf16.mxu0 0
  %2518 = vmatpush1.bf16.msra.mxu0 0
  %2519 = vmatprep.subr.bf16.mxu0 0
  %2520 = vmatpush1.bf16.msra.mxu0 0
  %2521 = vmatprep.subr.bf16.mxu0 0
  %2522 = vmatpush1.bf16.msra.mxu0 0
  %2523 = vmatprep.subr.bf16.mxu0 0
  %2524 = vmatpush1.bf16.msra.mxu0 0
  %2525 = vmatprep.subr.bf16.mxu0 0
  %2526 = vmatpush1.bf16.msra.mxu0 0
  %2527 = vmatprep.mubr.bf16.mxu0 0
  %2528 = vmatmul.mubr.bf16.gmra.mrb[0].mxu0 %v2419
  %v2529 = vpop.f32.mrb[0].mxu0
  %v2530 = vadd.f32 0.0, %v2529
  %v2531 = vpop.f32.mrb[0].mxu0
  %v2532 = vadd.f32 0.0, %v2531
  %v2533 = vpop.f32.mrb[0].mxu0
  %v2534 = vadd.f32 0.0, %v2533
  %v2535 = vpop.f32.mrb[0].mxu0
  %v2536 = vadd.f32 0.0, %v2535
  %2537 = vmatprep.mubr.bf16.mxu0 0
  %2538 = vmatmul.mubr.bf16.gmra.mrb[0].mxu0 %v2422
  %v2539 = vpop.f32.mrb[0].mxu0
  %v2540 = vadd.f32 0.0, %v2539
  %v2541 = vpop.f32.mrb[0].mxu0
  %v2542 = vadd.f32 0.0, %v2541
  %v2543 = vpop.f32.mrb[0].mxu0
  %v2544 = vadd.f32 0.0, %v2543
  %v2545 = vpop.f32.mrb[0].mxu0
  %v2546 = vadd.f32 0.0, %v2545
  %2547 = vdwg.mxu0
  %2548 = vmatprep.subr.bf16.mxu0 %v2440
  %2549 = vmatpush1.bf16.msra.mxu0 %v2437
  %2550 = vmatprep.subr.bf16.mxu0 0
  %2551 = vmatpush1.bf16.msra.mxu0 0
  %2552 = vmatprep.subr.bf16.mxu0 0
  %2553 = vmatpush1.bf16.msra.mxu0 0
  %2554 = vmatprep.subr.bf16.mxu0 0
  %2555 = vmatpush1.bf16.msra.mxu0 0
  %2556 = vmatprep.subr.bf16.mxu0 0
  %2557 = vmatpush1.bf16.msra.mxu0 0
  %2558 = vmatprep.subr.bf16.mxu0 0
  %2559 = vmatpush1.bf16.msra.mxu0 0
  %2560 = vmatprep.subr.bf16.mxu0 0
  %2561 = vmatpush1.bf16.msra.mxu0 0
  %2562 = vmatprep.subr.bf16.mxu0 0
  %2563 = vmatpush1.bf16.msra.mxu0 0
  %2564 = vmatprep.subr.bf16.mxu0 0
  %2565 = vmatpush1.bf16.msra.mxu0 0
  %2566 = vmatprep.subr.bf16.mxu0 0
  %2567 = vmatpush1.bf16.msra.mxu0 0
  %2568 = vmatprep.subr.bf16.mxu0 0
  %2569 = vmatpush1.bf16.msra.mxu0 0
  %2570 = vmatprep.subr.bf16.mxu0 0
  %2571 = vmatpush1.bf16.msra.mxu0 0
  %2572 = vmatprep.subr.bf16.mxu0 0
  %2573 = vmatpush1.bf16.msra.mxu0 0
  %2574 = vmatprep.subr.bf16.mxu0 0
  %2575 = vmatpush1.bf16.msra.mxu0 0
  %2576 = vmatprep.subr.bf16.mxu0 0
  %2577 = vmatpush1.bf16.msra.mxu0 0
  %2578 = vmatprep.subr.bf16.mxu0 0
  %2579 = vmatpush1.bf16.msra.mxu0 0
  %2580 = vmatprep.mubr.bf16.mxu0 0
  %2581 = vmatmul.mubr.bf16.gmra.mrb[0].mxu0 %v2419
  %v2582 = vpop.f32.mrb[0].mxu0
  %v2583 = vadd.f32 0.0, %v2582
  %v2584 = vpop.f32.mrb[0].mxu0
  %v2585 = vadd.f32 0.0, %v2584
  %v2586 = vpop.f32.mrb[0].mxu0
  %v2587 = vadd.f32 0.0, %v2586
  %v2588 = vpop.f32.mrb[0].mxu0
  %v2589 = vadd.f32 0.0, %v2588
  %2590 = vmatprep.mubr.bf16.mxu0 0
  %2591 = vmatmul.mubr.bf16.gmra.mrb[0].mxu0 %v2422
  %v2592 = vpop.f32.mrb[0].mxu0
  %v2593 = vadd.f32 0.0, %v2592
  %v2594 = vpop.f32.mrb[0].mxu0
  %v2595 = vadd.f32 0.0, %v2594
  %v2596 = vpop.f32.mrb[0].mxu0
  %v2597 = vadd.f32 0.0, %v2596
  %v2598 = vpop.f32.mrb[0].mxu0
  %v2599 = vadd.f32 0.0, %v2598
  %2600 = vdwg.mxu0
  %v2601 = vadd.f32 %v2247, %v2477
  %v2602 = vadd.f32 %v2249, %v2479
  %v2603 = vadd.f32 %v2300, %v2530
  %v2604 = vadd.f32 %v2302, %v2532
  %v2605 = vadd.f32 %v2353, %v2583
  %v2606 = vadd.f32 %v2355, %v2585
  %v2607 = vadd.f32 %v2251, %v2481
  %v2608 = vadd.f32 %v2253, %v2483
  %v2609 = vadd.f32 %v2304, %v2534
  %v2610 = vadd.f32 %v2306, %v2536
  %v2611 = vadd.f32 %v2357, %v2587
  %v2612 = vadd.f32 %v2359, %v2589
  %v2613 = vadd.f32 %v2257, %v2487
  %v2614 = vadd.f32 %v2259, %v2489
  %v2615 = vadd.f32 %v2310, %v2540
  %v2616 = vadd.f32 %v2312, %v2542
  %v2617 = vadd.f32 %v2363, %v2593
  %v2618 = vadd.f32 %v2365, %v2595
  %v2619 = vadd.f32 %v2261, %v2491
  %v2620 = vadd.f32 %v2263, %v2493
  %v2621 = vadd.f32 %v2314, %v2544
  %v2622 = vadd.f32 %v2316, %v2546
  %v2623 = vadd.f32 %v2367, %v2597
  %v2624 = vadd.f32 %v2369, %v2599
  %v2625 = vld [vmem:[#allocation2] sm:$0xff]
  %v2626 = vld [vmem:[#allocation2 + $0x8] sm:$0xff]
  %v2627 = vld [vmem:[#allocation2 + $0x10] sm:$0xff]
  %v2631 = vcombine.high %v2625, %v2625
  %v2632 = vcombine.high %v2626, %v2626
  %v2633 = vcombine.high %v2627, %v2627
  %v2637 = vpack.c.bf16 %v2625, %v2625
  %v2638 = vpack.c.bf16 %v2631, %v2631
  %v2639 = vpack.c.bf16 %v2626, %v2626
  %v2640 = vpack.c.bf16 %v2632, %v2632
  %v2641 = vpack.c.bf16 %v2627, %v2627
  %v2642 = vpack.c.bf16 %v2633, %v2633
  %2643 = vrot.lane.b32.xlu0 %v1939, 120
  %v2644 = vpop.permute.xlu0 %2643
  %2645 = vrot.lane.b32.xlu0 %v1940, 120
  %v2646 = vpop.permute.xlu0 %2645
  %2653 = vrot.lane.b32.xlu0 %v2637, 127
  %v2654 = vpop.permute.xlu0 %2653
  %2655 = vrot.lane.b32.xlu0 %v2638, 127
  %v2656 = vpop.permute.xlu0 %2655
  %2657 = vrot.lane.b32.xlu0 %v2639, 127
  %v2658 = vpop.permute.xlu0 %2657
  %2659 = vrot.lane.b32.xlu0 %v2640, 127
  %v2660 = vpop.permute.xlu0 %2659
  %2661 = vrot.lane.b32.xlu0 %v2641, 127
  %v2662 = vpop.permute.xlu0 %2661
  %2663 = vrot.lane.b32.xlu0 %v2642, 127
  %v2664 = vpop.permute.xlu0 %2663
  %v2665 = vsel %vm81, %v2654, %v2656
  %v2666 = vsel %vm81, %v2656, %v2658
  %v2667 = vsel %vm81, %v2658, %v2660
  %v2668 = vsel %vm81, %v2660, %v2662
  %v2669 = vsel %vm81, %v2662, %v2664
  %v2671 = vsel %vm87, %v2644, 0
  %v2674 = vsel %vm87, %v2646, 0
  %v2677 = vsel %vm91, %v2665, 0
  %v2680 = vsel %vm91, %v2666, 0
  %v2683 = vsel %vm91, %v2667, 0
  %v2686 = vsel %vm91, %v2668, 0
  %v2689 = vsel %vm91, %v2669, 0
  %v2692 = vsel %vm91, %v2664, 0
  %2694 = vmatprep.subr.bf16.mxu0 %v2680
  %2695 = vmatpush1.bf16.msra.mxu0 %v2677
  %2696 = vmatprep.subr.bf16.mxu0 0
  %2697 = vmatpush1.bf16.msra.mxu0 0
  %2698 = vmatprep.subr.bf16.mxu0 0
  %2699 = vmatpush1.bf16.msra.mxu0 0
  %2700 = vmatprep.subr.bf16.mxu0 0
  %2701 = vmatpush1.bf16.msra.mxu0 0
  %2702 = vmatprep.subr.bf16.mxu0 0
  %2703 = vmatpush1.bf16.msra.mxu0 0
  %2704 = vmatprep.subr.bf16.mxu0 0
  %2705 = vmatpush1.bf16.msra.mxu0 0
  %2706 = vmatprep.subr.bf16.mxu0 0
  %2707 = vmatpush1.bf16.msra.mxu0 0
  %2708 = vmatprep.subr.bf16.mxu0 0
  %2709 = vmatpush1.bf16.msra.mxu0 0
  %2710 = vmatprep.subr.bf16.mxu0 0
  %2711 = vmatpush1.bf16.msra.mxu0 0
  %2712 = vmatprep.subr.bf16.mxu0 0
  %2713 = vmatpush1.bf16.msra.mxu0 0
  %2714 = vmatprep.subr.bf16.mxu0 0
  %2715 = vmatpush1.bf16.msra.mxu0 0
  %2716 = vmatprep.subr.bf16.mxu0 0
  %2717 = vmatpush1.bf16.msra.mxu0 0
  %2718 = vmatprep.subr.bf16.mxu0 0
  %2719 = vmatpush1.bf16.msra.mxu0 0
  %2720 = vmatprep.subr.bf16.mxu0 0
  %2721 = vmatpush1.bf16.msra.mxu0 0
  %2722 = vmatprep.subr.bf16.mxu0 0
  %2723 = vmatpush1.bf16.msra.mxu0 0
  %2724 = vmatprep.subr.bf16.mxu0 0
  %2725 = vmatpush1.bf16.msra.mxu0 0
  %2726 = vmatprep.mubr.bf16.mxu0 0
  %2727 = vmatmul.mubr.bf16.gmra.mrb[0].mxu0 %v2671
  %v2728 = vpop.f32.mrb[0].mxu0
  %v2729 = vadd.f32 0.0, %v2728
  %v2730 = vpop.f32.mrb[0].mxu0
  %v2731 = vadd.f32 0.0, %v2730
  %v2732 = vpop.f32.mrb[0].mxu0
  %v2733 = vadd.f32 0.0, %v2732
  %v2734 = vpop.f32.mrb[0].mxu0
  %v2735 = vadd.f32 0.0, %v2734
  %2736 = vmatprep.mubr.bf16.mxu0 0
  %2737 = vmatmul.mubr.bf16.gmra.mrb[0].mxu0 %v2674
  %v2738 = vpop.f32.mrb[0].mxu0
  %v2739 = vadd.f32 0.0, %v2738
  %v2740 = vpop.f32.mrb[0].mxu0
  %v2741 = vadd.f32 0.0, %v2740
  %v2742 = vpop.f32.mrb[0].mxu0
  %v2743 = vadd.f32 0.0, %v2742
  %v2744 = vpop.f32.mrb[0].mxu0
  %v2745 = vadd.f32 0.0, %v2744
  %2746 = vdwg.mxu0
  %2747 = vmatprep.subr.bf16.mxu0 %v2686
  %2748 = vmatpush1.bf16.msra.mxu0 %v2683
  %2749 = vmatprep.subr.bf16.mxu0 0
  %2750 = vmatpush1.bf16.msra.mxu0 0
  %2751 = vmatprep.subr.bf16.mxu0 0
  %2752 = vmatpush1.bf16.msra.mxu0 0
  %2753 = vmatprep.subr.bf16.mxu0 0
  %2754 = vmatpush1.bf16.msra.mxu0 0
  %2755 = vmatprep.subr.bf16.mxu0 0
  %2756 = vmatpush1.bf16.msra.mxu0 0
  %2757 = vmatprep.subr.bf16.mxu0 0
  %2758 = vmatpush1.bf16.msra.mxu0 0
  %2759 = vmatprep.subr.bf16.mxu0 0
  %2760 = vmatpush1.bf16.msra.mxu0 0
  %2761 = vmatprep.subr.bf16.mxu0 0
  %2762 = vmatpush1.bf16.msra.mxu0 0
  %2763 = vmatprep.subr.bf16.mxu0 0
  %2764 = vmatpush1.bf16.msra.mxu0 0
  %2765 = vmatprep.subr.bf16.mxu0 0
  %2766 = vmatpush1.bf16.msra.mxu0 0
  %2767 = vmatprep.subr.bf16.mxu0 0
  %2768 = vmatpush1.bf16.msra.mxu0 0
  %2769 = vmatprep.subr.bf16.mxu0 0
  %2770 = vmatpush1.bf16.msra.mxu0 0
  %2771 = vmatprep.subr.bf16.mxu0 0
  %2772 = vmatpush1.bf16.msra.mxu0 0
  %2773 = vmatprep.subr.bf16.mxu0 0
  %2774 = vmatpush1.bf16.msra.mxu0 0
  %2775 = vmatprep.subr.bf16.mxu0 0
  %2776 = vmatpush1.bf16.msra.mxu0 0
  %2777 = vmatprep.subr.bf16.mxu0 0
  %2778 = vmatpush1.bf16.msra.mxu0 0
  %2779 = vmatprep.mubr.bf16.mxu0 0
  %2780 = vmatmul.mubr.bf16.gmra.mrb[0].mxu0 %v2671
  %v2781 = vpop.f32.mrb[0].mxu0
  %v2782 = vadd.f32 0.0, %v2781
  %v2783 = vpop.f32.mrb[0].mxu0
  %v2784 = vadd.f32 0.0, %v2783
  %v2785 = vpop.f32.mrb[0].mxu0
  %v2786 = vadd.f32 0.0, %v2785
  %v2787 = vpop.f32.mrb[0].mxu0
  %v2788 = vadd.f32 0.0, %v2787
  %2789 = vmatprep.mubr.bf16.mxu0 0
  %2790 = vmatmul.mubr.bf16.gmra.mrb[0].mxu0 %v2674
  %v2791 = vpop.f32.mrb[0].mxu0
  %v2792 = vadd.f32 0.0, %v2791
  %v2793 = vpop.f32.mrb[0].mxu0
  %v2794 = vadd.f32 0.0, %v2793
  %v2795 = vpop.f32.mrb[0].mxu0
  %v2796 = vadd.f32 0.0, %v2795
  %v2797 = vpop.f32.mrb[0].mxu0
  %v2798 = vadd.f32 0.0, %v2797
  %2799 = vdwg.mxu0
  %2800 = vmatprep.subr.bf16.mxu0 %v2692
  %2801 = vmatpush1.bf16.msra.mxu0 %v2689
  %2802 = vmatprep.subr.bf16.mxu0 0
  %2803 = vmatpush1.bf16.msra.mxu0 0
  %2804 = vmatprep.subr.bf16.mxu0 0
  %2805 = vmatpush1.bf16.msra.mxu0 0
  %2806 = vmatprep.subr.bf16.mxu0 0
  %2807 = vmatpush1.bf16.msra.mxu0 0
  %2808 = vmatprep.subr.bf16.mxu0 0
  %2809 = vmatpush1.bf16.msra.mxu0 0
  %2810 = vmatprep.subr.bf16.mxu0 0
  %2811 = vmatpush1.bf16.msra.mxu0 0
  %2812 = vmatprep.subr.bf16.mxu0 0
  %2813 = vmatpush1.bf16.msra.mxu0 0
  %2814 = vmatprep.subr.bf16.mxu0 0
  %2815 = vmatpush1.bf16.msra.mxu0 0
  %2816 = vmatprep.subr.bf16.mxu0 0
  %2817 = vmatpush1.bf16.msra.mxu0 0
  %2818 = vmatprep.subr.bf16.mxu0 0
  %2819 = vmatpush1.bf16.msra.mxu0 0
  %2820 = vmatprep.subr.bf16.mxu0 0
  %2821 = vmatpush1.bf16.msra.mxu0 0
  %2822 = vmatprep.subr.bf16.mxu0 0
  %2823 = vmatpush1.bf16.msra.mxu0 0
  %2824 = vmatprep.subr.bf16.mxu0 0
  %2825 = vmatpush1.bf16.msra.mxu0 0
  %2826 = vmatprep.subr.bf16.mxu0 0
  %2827 = vmatpush1.bf16.msra.mxu0 0
  %2828 = vmatprep.subr.bf16.mxu0 0
  %2829 = vmatpush1.bf16.msra.mxu0 0
  %2830 = vmatprep.subr.bf16.mxu0 0
  %2831 = vmatpush1.bf16.msra.mxu0 0
  %2832 = vmatprep.mubr.bf16.mxu0 0
  %2833 = vmatmul.mubr.bf16.gmra.mrb[0].mxu0 %v2671
  %v2834 = vpop.f32.mrb[0].mxu0
  %v2835 = vadd.f32 0.0, %v2834
  %v2836 = vpop.f32.mrb[0].mxu0
  %v2837 = vadd.f32 0.0, %v2836
  %v2838 = vpop.f32.mrb[0].mxu0
  %v2839 = vadd.f32 0.0, %v2838
  %v2840 = vpop.f32.mrb[0].mxu0
  %v2841 = vadd.f32 0.0, %v2840
  %2842 = vmatprep.mubr.bf16.mxu0 0
  %2843 = vmatmul.mubr.bf16.gmra.mrb[0].mxu0 %v2674
  %v2844 = vpop.f32.mrb[0].mxu0
  %v2845 = vadd.f32 0.0, %v2844
  %v2846 = vpop.f32.mrb[0].mxu0
  %v2847 = vadd.f32 0.0, %v2846
  %v2848 = vpop.f32.mrb[0].mxu0
  %v2849 = vadd.f32 0.0, %v2848
  %v2850 = vpop.f32.mrb[0].mxu0
  %v2851 = vadd.f32 0.0, %v2850
  %2852 = vdwg.mxu0
  %v2853 = vadd.f32 %v2601, %v2729
  %v2854 = vadd.f32 %v2602, %v2731
  %v2855 = vadd.f32 %v2603, %v2782
  %v2856 = vadd.f32 %v2604, %v2784
  %v2857 = vadd.f32 %v2605, %v2835
  %v2858 = vadd.f32 %v2606, %v2837
  %v2859 = vadd.f32 %v2607, %v2733
  %v2860 = vadd.f32 %v2608, %v2735
  %v2861 = vadd.f32 %v2609, %v2786
  %v2862 = vadd.f32 %v2610, %v2788
  %v2863 = vadd.f32 %v2611, %v2839
  %v2864 = vadd.f32 %v2612, %v2841
  %v2865 = vadd.f32 %v2613, %v2739
  %v2866 = vadd.f32 %v2614, %v2741
  %v2867 = vadd.f32 %v2615, %v2792
  %v2868 = vadd.f32 %v2616, %v2794
  %v2869 = vadd.f32 %v2617, %v2845
  %v2870 = vadd.f32 %v2618, %v2847
  %v2871 = vadd.f32 %v2619, %v2743
  %v2872 = vadd.f32 %v2620, %v2745
  %v2873 = vadd.f32 %v2621, %v2796
  %v2874 = vadd.f32 %v2622, %v2798
  %v2875 = vadd.f32 %v2623, %v2849
  %v2876 = vadd.f32 %v2624, %v2851
  %v2877 = vld [vmem:[#allocation2] sm:$0xff]
  %v2878 = vld [vmem:[#allocation2 + $0x8] sm:$0xff]
  %v2879 = vld [vmem:[#allocation2 + $0x10] sm:$0xff]
  %v2883 = vcombine.high %v2877, %v2877
  %v2884 = vcombine.high %v2878, %v2878
  %v2885 = vcombine.high %v2879, %v2879
  %v2889 = vpack.c.bf16 %v2877, %v2877
  %v2890 = vpack.c.bf16 %v2883, %v2883
  %v2891 = vpack.c.bf16 %v2878, %v2878
  %v2892 = vpack.c.bf16 %v2884, %v2884
  %v2893 = vpack.c.bf16 %v2879, %v2879
  %v2894 = vpack.c.bf16 %v2885, %v2885
  %2895 = vrot.lane.b32.xlu0 %v1939, 116
  %v2896 = vpop.permute.xlu0 %2895
  %2897 = vrot.lane.b32.xlu0 %v1940, 116
  %v2898 = vpop.permute.xlu0 %2897
  %v2900 = vsel %vm87, %v2896, 0
  %v2903 = vsel %vm87, %v2898, 0
  %v2906 = vsel %vm91, %v2889, 0
  %v2909 = vsel %vm91, %v2890, 0
  %v2912 = vsel %vm91, %v2891, 0
  %v2915 = vsel %vm91, %v2892, 0
  %v2918 = vsel %vm91, %v2893, 0
  %v2921 = vsel %vm91, %v2894, 0
  %2923 = vmatprep.subr.bf16.mxu0 %v2909
  %2924 = vmatpush1.bf16.msra.mxu0 %v2906
  %2925 = vmatprep.subr.bf16.mxu0 0
  %2926 = vmatpush1.bf16.msra.mxu0 0
  %2927 = vmatprep.subr.bf16.mxu0 0
  %2928 = vmatpush1.bf16.msra.mxu0 0
  %2929 = vmatprep.subr.bf16.mxu0 0
  %2930 = vmatpush1.bf16.msra.mxu0 0
  %2931 = vmatprep.subr.bf16.mxu0 0
  %2932 = vmatpush1.bf16.msra.mxu0 0
  %2933 = vmatprep.subr.bf16.mxu0 0
  %2934 = vmatpush1.bf16.msra.mxu0 0
  %2935 = vmatprep.subr.bf16.mxu0 0
  %2936 = vmatpush1.bf16.msra.mxu0 0
  %2937 = vmatprep.subr.bf16.mxu0 0
  %2938 = vmatpush1.bf16.msra.mxu0 0
  %2939 = vmatprep.subr.bf16.mxu0 0
  %2940 = vmatpush1.bf16.msra.mxu0 0
  %2941 = vmatprep.subr.bf16.mxu0 0
  %2942 = vmatpush1.bf16.msra.mxu0 0
  %2943 = vmatprep.subr.bf16.mxu0 0
  %2944 = vmatpush1.bf16.msra.mxu0 0
  %2945 = vmatprep.subr.bf16.mxu0 0
  %2946 = vmatpush1.bf16.msra.mxu0 0
  %2947 = vmatprep.subr.bf16.mxu0 0
  %2948 = vmatpush1.bf16.msra.mxu0 0
  %2949 = vmatprep.subr.bf16.mxu0 0
  %2950 = vmatpush1.bf16.msra.mxu0 0
  %2951 = vmatprep.subr.bf16.mxu0 0
  %2952 = vmatpush1.bf16.msra.mxu0 0
  %2953 = vmatprep.subr.bf16.mxu0 0
  %2954 = vmatpush1.bf16.msra.mxu0 0
  %2955 = vmatprep.mubr.bf16.mxu0 0
  %2956 = vmatmul.mubr.bf16.gmra.mrb[0].mxu0 %v2900
  %v2957 = vpop.f32.mrb[0].mxu0
  %v2958 = vadd.f32 0.0, %v2957
  %v2959 = vpop.f32.mrb[0].mxu0
  %v2960 = vadd.f32 0.0, %v2959
  %v2961 = vpop.f32.mrb[0].mxu0
  %v2962 = vadd.f32 0.0, %v2961
  %v2963 = vpop.f32.mrb[0].mxu0
  %v2964 = vadd.f32 0.0, %v2963
  %2965 = vmatprep.mubr.bf16.mxu0 0
  %2966 = vmatmul.mubr.bf16.gmra.mrb[0].mxu0 %v2903
  %v2967 = vpop.f32.mrb[0].mxu0
  %v2968 = vadd.f32 0.0, %v2967
  %v2969 = vpop.f32.mrb[0].mxu0
  %v2970 = vadd.f32 0.0, %v2969
  %v2971 = vpop.f32.mrb[0].mxu0
  %v2972 = vadd.f32 0.0, %v2971
  %v2973 = vpop.f32.mrb[0].mxu0
  %v2974 = vadd.f32 0.0, %v2973
  %2975 = vdwg.mxu0
  %2976 = vmatprep.subr.bf16.mxu0 %v2915
  %2977 = vmatpush1.bf16.msra.mxu0 %v2912
  %2978 = vmatprep.subr.bf16.mxu0 0
  %2979 = vmatpush1.bf16.msra.mxu0 0
  %2980 = vmatprep.subr.bf16.mxu0 0
  %2981 = vmatpush1.bf16.msra.mxu0 0
  %2982 = vmatprep.subr.bf16.mxu0 0
  %2983 = vmatpush1.bf16.msra.mxu0 0
  %2984 = vmatprep.subr.bf16.mxu0 0
  %2985 = vmatpush1.bf16.msra.mxu0 0
  %2986 = vmatprep.subr.bf16.mxu0 0
  %2987 = vmatpush1.bf16.msra.mxu0 0
  %2988 = vmatprep.subr.bf16.mxu0 0
  %2989 = vmatpush1.bf16.msra.mxu0 0
  %2990 = vmatprep.subr.bf16.mxu0 0
  %2991 = vmatpush1.bf16.msra.mxu0 0
  %2992 = vmatprep.subr.bf16.mxu0 0
  %2993 = vmatpush1.bf16.msra.mxu0 0
  %2994 = vmatprep.subr.bf16.mxu0 0
  %2995 = vmatpush1.bf16.msra.mxu0 0
  %2996 = vmatprep.subr.bf16.mxu0 0
  %2997 = vmatpush1.bf16.msra.mxu0 0
  %2998 = vmatprep.subr.bf16.mxu0 0
  %2999 = vmatpush1.bf16.msra.mxu0 0
  %3000 = vmatprep.subr.bf16.mxu0 0
  %3001 = vmatpush1.bf16.msra.mxu0 0
  %3002 = vmatprep.subr.bf16.mxu0 0
  %3003 = vmatpush1.bf16.msra.mxu0 0
  %3004 = vmatprep.subr.bf16.mxu0 0
  %3005 = vmatpush1.bf16.msra.mxu0 0
  %3006 = vmatprep.subr.bf16.mxu0 0
  %3007 = vmatpush1.bf16.msra.mxu0 0
  %3008 = vmatprep.mubr.bf16.mxu0 0
  %3009 = vmatmul.mubr.bf16.gmra.mrb[0].mxu0 %v2900
  %v3010 = vpop.f32.mrb[0].mxu0
  %v3011 = vadd.f32 0.0, %v3010
  %v3012 = vpop.f32.mrb[0].mxu0
  %v3013 = vadd.f32 0.0, %v3012
  %v3014 = vpop.f32.mrb[0].mxu0
  %v3015 = vadd.f32 0.0, %v3014
  %v3016 = vpop.f32.mrb[0].mxu0
  %v3017 = vadd.f32 0.0, %v3016
  %3018 = vmatprep.mubr.bf16.mxu0 0
  %3019 = vmatmul.mubr.bf16.gmra.mrb[0].mxu0 %v2903
  %v3020 = vpop.f32.mrb[0].mxu0
  %v3021 = vadd.f32 0.0, %v3020
  %v3022 = vpop.f32.mrb[0].mxu0
  %v3023 = vadd.f32 0.0, %v3022
  %v3024 = vpop.f32.mrb[0].mxu0
  %v3025 = vadd.f32 0.0, %v3024
  %v3026 = vpop.f32.mrb[0].mxu0
  %v3027 = vadd.f32 0.0, %v3026
  %3028 = vdwg.mxu0
  %3029 = vmatprep.subr.bf16.mxu0 %v2921
  %3030 = vmatpush1.bf16.msra.mxu0 %v2918
  %3031 = vmatprep.subr.bf16.mxu0 0
  %3032 = vmatpush1.bf16.msra.mxu0 0
  %3033 = vmatprep.subr.bf16.mxu0 0
  %3034 = vmatpush1.bf16.msra.mxu0 0
  %3035 = vmatprep.subr.bf16.mxu0 0
  %3036 = vmatpush1.bf16.msra.mxu0 0
  %3037 = vmatprep.subr.bf16.mxu0 0
  %3038 = vmatpush1.bf16.msra.mxu0 0
  %3039 = vmatprep.subr.bf16.mxu0 0
  %3040 = vmatpush1.bf16.msra.mxu0 0
  %3041 = vmatprep.subr.bf16.mxu0 0
  %3042 = vmatpush1.bf16.msra.mxu0 0
  %3043 = vmatprep.subr.bf16.mxu0 0
  %3044 = vmatpush1.bf16.msra.mxu0 0
  %3045 = vmatprep.subr.bf16.mxu0 0
  %3046 = vmatpush1.bf16.msra.mxu0 0
  %3047 = vmatprep.subr.bf16.mxu0 0
  %3048 = vmatpush1.bf16.msra.mxu0 0
  %3049 = vmatprep.subr.bf16.mxu0 0
  %3050 = vmatpush1.bf16.msra.mxu0 0
  %3051 = vmatprep.subr.bf16.mxu0 0
  %3052 = vmatpush1.bf16.msra.mxu0 0
  %3053 = vmatprep.subr.bf16.mxu0 0
  %3054 = vmatpush1.bf16.msra.mxu0 0
  %3055 = vmatprep.subr.bf16.mxu0 0
  %3056 = vmatpush1.bf16.msra.mxu0 0
  %3057 = vmatprep.subr.bf16.mxu0 0
  %3058 = vmatpush1.bf16.msra.mxu0 0
  %3059 = vmatprep.subr.bf16.mxu0 0
  %3060 = vmatpush1.bf16.msra.mxu0 0
  %3061 = vmatprep.mubr.bf16.mxu0 0
  %3062 = vmatmul.mubr.bf16.gmra.mrb[0].mxu0 %v2900
  %v3063 = vpop.f32.mrb[0].mxu0
  %v3064 = vadd.f32 0.0, %v3063
  %v3065 = vpop.f32.mrb[0].mxu0
  %v3066 = vadd.f32 0.0, %v3065
  %v3067 = vpop.f32.mrb[0].mxu0
  %v3068 = vadd.f32 0.0, %v3067
  %v3069 = vpop.f32.mrb[0].mxu0
  %v3070 = vadd.f32 0.0, %v3069
  %3071 = vmatprep.mubr.bf16.mxu0 0
  %3072 = vmatmul.mubr.bf16.gmra.mrb[0].mxu0 %v2903
  %v3073 = vpop.f32.mrb[0].mxu0
  %v3074 = vadd.f32 0.0, %v3073
  %v3075 = vpop.f32.mrb[0].mxu0
  %v3076 = vadd.f32 0.0, %v3075
  %v3077 = vpop.f32.mrb[0].mxu0
  %v3078 = vadd.f32 0.0, %v3077
  %v3079 = vpop.f32.mrb[0].mxu0
  %v3080 = vadd.f32 0.0, %v3079
  %3081 = vdwg.mxu0
  %v3082 = vadd.f32 %v2853, %v2958
  %v3083 = vadd.f32 %v2854, %v2960
  %v3084 = vadd.f32 %v2855, %v3011
  %v3085 = vadd.f32 %v2856, %v3013
  %v3086 = vadd.f32 %v2857, %v3064
  %v3087 = vadd.f32 %v2858, %v3066
  %v3088 = vadd.f32 %v2859, %v2962
  %v3089 = vadd.f32 %v2860, %v2964
  %v3090 = vadd.f32 %v2861, %v3015
  %v3091 = vadd.f32 %v2862, %v3017
  %v3092 = vadd.f32 %v2863, %v3068
  %v3093 = vadd.f32 %v2864, %v3070
  %v3094 = vadd.f32 %v2865, %v2968
  %v3095 = vadd.f32 %v2866, %v2970
  %v3096 = vadd.f32 %v2867, %v3021
  %v3097 = vadd.f32 %v2868, %v3023
  %v3098 = vadd.f32 %v2869, %v3074
  %v3099 = vadd.f32 %v2870, %v3076
  %v3100 = vadd.f32 %v2871, %v2972
  %v3101 = vadd.f32 %v2872, %v2974
  %v3102 = vadd.f32 %v2873, %v3025
  %v3103 = vadd.f32 %v2874, %v3027
  %v3104 = vadd.f32 %v2875, %v3078
  %v3105 = vadd.f32 %v2876, %v3080
  %v3106 = vld [vmem:[#allocation2] sm:$0xff]
  %v3107 = vld [vmem:[#allocation2 + $0x8] sm:$0xff]
  %v3108 = vld [vmem:[#allocation2 + $0x10] sm:$0xff]
  %v3112 = vcombine.high %v3106, %v3106
  %v3113 = vcombine.high %v3107, %v3107
  %v3114 = vcombine.high %v3108, %v3108
  %v3118 = vpack.c.bf16 %v3106, %v3106
  %v3119 = vpack.c.bf16 %v3112, %v3112
  %v3120 = vpack.c.bf16 %v3107, %v3107
  %v3121 = vpack.c.bf16 %v3113, %v3113
  %v3122 = vpack.c.bf16 %v3108, %v3108
  %v3123 = vpack.c.bf16 %v3114, %v3114
  %3124 = vrot.lane.b32.xlu0 %v1939, 112
  %v3125 = vpop.permute.xlu0 %3124
  %3126 = vrot.lane.b32.xlu0 %v1940, 112
  %v3127 = vpop.permute.xlu0 %3126
  %3134 = vrot.lane.b32.xlu0 %v3118, 108
  %v3135 = vpop.permute.xlu0 %3134
  %3136 = vrot.lane.b32.xlu0 %v3119, 108
  %v3137 = vpop.permute.xlu0 %3136
  %3138 = vrot.lane.b32.xlu0 %v3120, 108
  %v3139 = vpop.permute.xlu0 %3138
  %3140 = vrot.lane.b32.xlu0 %v3121, 108
  %v3141 = vpop.permute.xlu0 %3140
  %3142 = vrot.lane.b32.xlu0 %v3122, 108
  %v3143 = vpop.permute.xlu0 %3142
  %3144 = vrot.lane.b32.xlu0 %v3123, 108
  %v3145 = vpop.permute.xlu0 %3144
  %v3146 = vsel %vm997, %v3135, %v3137
  %v3147 = vsel %vm997, %v3137, %v3139
  %v3148 = vsel %vm997, %v3139, %v3141
  %v3149 = vsel %vm997, %v3141, %v3143
  %v3150 = vsel %vm997, %v3143, %v3145
  %v3152 = vsel %vm87, %v3125, 0
  %v3155 = vsel %vm87, %v3127, 0
  %v3158 = vsel %vm91, %v3146, 0
  %v3161 = vsel %vm91, %v3147, 0
  %v3164 = vsel %vm91, %v3148, 0
  %v3167 = vsel %vm91, %v3149, 0
  %v3170 = vsel %vm91, %v3150, 0
  %v3173 = vsel %vm91, %v3145, 0
  %3175 = vmatprep.subr.bf16.mxu0 %v3161
  %3176 = vmatpush1.bf16.msra.mxu0 %v3158
  %3177 = vmatprep.subr.bf16.mxu0 0
  %3178 = vmatpush1.bf16.msra.mxu0 0
  %3179 = vmatprep.subr.bf16.mxu0 0
  %3180 = vmatpush1.bf16.msra.mxu0 0
  %3181 = vmatprep.subr.bf16.mxu0 0
  %3182 = vmatpush1.bf16.msra.mxu0 0
  %3183 = vmatprep.subr.bf16.mxu0 0
  %3184 = vmatpush1.bf16.msra.mxu0 0
  %3185 = vmatprep.subr.bf16.mxu0 0
  %3186 = vmatpush1.bf16.msra.mxu0 0
  %3187 = vmatprep.subr.bf16.mxu0 0
  %3188 = vmatpush1.bf16.msra.mxu0 0
  %3189 = vmatprep.subr.bf16.mxu0 0
  %3190 = vmatpush1.bf16.msra.mxu0 0
  %3191 = vmatprep.subr.bf16.mxu0 0
  %3192 = vmatpush1.bf16.msra.mxu0 0
  %3193 = vmatprep.subr.bf16.mxu0 0
  %3194 = vmatpush1.bf16.msra.mxu0 0
  %3195 = vmatprep.subr.bf16.mxu0 0
  %3196 = vmatpush1.bf16.msra.mxu0 0
  %3197 = vmatprep.subr.bf16.mxu0 0
  %3198 = vmatpush1.bf16.msra.mxu0 0
  %3199 = vmatprep.subr.bf16.mxu0 0
  %3200 = vmatpush1.bf16.msra.mxu0 0
  %3201 = vmatprep.subr.bf16.mxu0 0
  %3202 = vmatpush1.bf16.msra.mxu0 0
  %3203 = vmatprep.subr.bf16.mxu0 0
  %3204 = vmatpush1.bf16.msra.mxu0 0
  %3205 = vmatprep.subr.bf16.mxu0 0
  %3206 = vmatpush1.bf16.msra.mxu0 0
  %3207 = vmatprep.mubr.bf16.mxu0 0
  %3208 = vmatmul.mubr.bf16.gmra.mrb[0].mxu0 %v3152
  %v3209 = vpop.f32.mrb[0].mxu0
  %v3210 = vadd.f32 0.0, %v3209
  %v3211 = vpop.f32.mrb[0].mxu0
  %v3212 = vadd.f32 0.0, %v3211
  %v3213 = vpop.f32.mrb[0].mxu0
  %v3214 = vadd.f32 0.0, %v3213
  %v3215 = vpop.f32.mrb[0].mxu0
  %v3216 = vadd.f32 0.0, %v3215
  %3217 = vmatprep.mubr.bf16.mxu0 0
  %3218 = vmatmul.mubr.bf16.gmra.mrb[0].mxu0 %v3155
  %v3219 = vpop.f32.mrb[0].mxu0
  %v3220 = vadd.f32 0.0, %v3219
  %v3221 = vpop.f32.mrb[0].mxu0
  %v3222 = vadd.f32 0.0, %v3221
  %v3223 = vpop.f32.mrb[0].mxu0
  %v3224 = vadd.f32 0.0, %v3223
  %v3225 = vpop.f32.mrb[0].mxu0
  %v3226 = vadd.f32 0.0, %v3225
  %3227 = vdwg.mxu0
  %3228 = vmatprep.subr.bf16.mxu0 %v3167
  %3229 = vmatpush1.bf16.msra.mxu0 %v3164
  %3230 = vmatprep.subr.bf16.mxu0 0
  %3231 = vmatpush1.bf16.msra.mxu0 0
  %3232 = vmatprep.subr.bf16.mxu0 0
  %3233 = vmatpush1.bf16.msra.mxu0 0
  %3234 = vmatprep.subr.bf16.mxu0 0
  %3235 = vmatpush1.bf16.msra.mxu0 0
  %3236 = vmatprep.subr.bf16.mxu0 0
  %3237 = vmatpush1.bf16.msra.mxu0 0
  %3238 = vmatprep.subr.bf16.mxu0 0
  %3239 = vmatpush1.bf16.msra.mxu0 0
  %3240 = vmatprep.subr.bf16.mxu0 0
  %3241 = vmatpush1.bf16.msra.mxu0 0
  %3242 = vmatprep.subr.bf16.mxu0 0
  %3243 = vmatpush1.bf16.msra.mxu0 0
  %3244 = vmatprep.subr.bf16.mxu0 0
  %3245 = vmatpush1.bf16.msra.mxu0 0
  %3246 = vmatprep.subr.bf16.mxu0 0
  %3247 = vmatpush1.bf16.msra.mxu0 0
  %3248 = vmatprep.subr.bf16.mxu0 0
  %3249 = vmatpush1.bf16.msra.mxu0 0
  %3250 = vmatprep.subr.bf16.mxu0 0
  %3251 = vmatpush1.bf16.msra.mxu0 0
  %3252 = vmatprep.subr.bf16.mxu0 0
  %3253 = vmatpush1.bf16.msra.mxu0 0
  %3254 = vmatprep.subr.bf16.mxu0 0
  %3255 = vmatpush1.bf16.msra.mxu0 0
  %3256 = vmatprep.subr.bf16.mxu0 0
  %3257 = vmatpush1.bf16.msra.mxu0 0
  %3258 = vmatprep.subr.bf16.mxu0 0
  %3259 = vmatpush1.bf16.msra.mxu0 0
  %3260 = vmatprep.mubr.bf16.mxu0 0
  %3261 = vmatmul.mubr.bf16.gmra.mrb[0].mxu0 %v3152
  %v3262 = vpop.f32.mrb[0].mxu0
  %v3263 = vadd.f32 0.0, %v3262
  %v3264 = vpop.f32.mrb[0].mxu0
  %v3265 = vadd.f32 0.0, %v3264
  %v3266 = vpop.f32.mrb[0].mxu0
  %v3267 = vadd.f32 0.0, %v3266
  %v3268 = vpop.f32.mrb[0].mxu0
  %v3269 = vadd.f32 0.0, %v3268
  %3270 = vmatprep.mubr.bf16.mxu0 0
  %3271 = vmatmul.mubr.bf16.gmra.mrb[0].mxu0 %v3155
  %v3272 = vpop.f32.mrb[0].mxu0
  %v3273 = vadd.f32 0.0, %v3272
  %v3274 = vpop.f32.mrb[0].mxu0
  %v3275 = vadd.f32 0.0, %v3274
  %v3276 = vpop.f32.mrb[0].mxu0
  %v3277 = vadd.f32 0.0, %v3276
  %v3278 = vpop.f32.mrb[0].mxu0
  %v3279 = vadd.f32 0.0, %v3278
  %3280 = vdwg.mxu0
  %3281 = vmatprep.subr.bf16.mxu0 %v3173
  %3282 = vmatpush1.bf16.msra.mxu0 %v3170
  %3283 = vmatprep.subr.bf16.mxu0 0
  %3284 = vmatpush1.bf16.msra.mxu0 0
  %3285 = vmatprep.subr.bf16.mxu0 0
  %3286 = vmatpush1.bf16.msra.mxu0 0
  %3287 = vmatprep.subr.bf16.mxu0 0
  %3288 = vmatpush1.bf16.msra.mxu0 0
  %3289 = vmatprep.subr.bf16.mxu0 0
  %3290 = vmatpush1.bf16.msra.mxu0 0
  %3291 = vmatprep.subr.bf16.mxu0 0
  %3292 = vmatpush1.bf16.msra.mxu0 0
  %3293 = vmatprep.subr.bf16.mxu0 0
  %3294 = vmatpush1.bf16.msra.mxu0 0
  %3295 = vmatprep.subr.bf16.mxu0 0
  %3296 = vmatpush1.bf16.msra.mxu0 0
  %3297 = vmatprep.subr.bf16.mxu0 0
  %3298 = vmatpush1.bf16.msra.mxu0 0
  %3299 = vmatprep.subr.bf16.mxu0 0
  %3300 = vmatpush1.bf16.msra.mxu0 0
  %3301 = vmatprep.subr.bf16.mxu0 0
  %3302 = vmatpush1.bf16.msra.mxu0 0
  %3303 = vmatprep.subr.bf16.mxu0 0
  %3304 = vmatpush1.bf16.msra.mxu0 0
  %3305 = vmatprep.subr.bf16.mxu0 0
  %3306 = vmatpush1.bf16.msra.mxu0 0
  %3307 = vmatprep.subr.bf16.mxu0 0
  %3308 = vmatpush1.bf16.msra.mxu0 0
  %3309 = vmatprep.subr.bf16.mxu0 0
  %3310 = vmatpush1.bf16.msra.mxu0 0
  %3311 = vmatprep.subr.bf16.mxu0 0
  %3312 = vmatpush1.bf16.msra.mxu0 0
  %3313 = vmatprep.mubr.bf16.mxu0 0
  %3314 = vmatmul.mubr.bf16.gmra.mrb[0].mxu0 %v3152
  %v3315 = vpop.f32.mrb[0].mxu0
  %v3316 = vadd.f32 0.0, %v3315
  %v3317 = vpop.f32.mrb[0].mxu0
  %v3318 = vadd.f32 0.0, %v3317
  %v3319 = vpop.f32.mrb[0].mxu0
  %v3320 = vadd.f32 0.0, %v3319
  %v3321 = vpop.f32.mrb[0].mxu0
  %v3322 = vadd.f32 0.0, %v3321
  %3323 = vmatprep.mubr.bf16.mxu0 0
  %3324 = vmatmul.mubr.bf16.gmra.mrb[0].mxu0 %v3155
  %v3325 = vpop.f32.mrb[0].mxu0
  %v3326 = vadd.f32 0.0, %v3325
  %v3327 = vpop.f32.mrb[0].mxu0
  %v3328 = vadd.f32 0.0, %v3327
  %v3329 = vpop.f32.mrb[0].mxu0
  %v3330 = vadd.f32 0.0, %v3329
  %v3331 = vpop.f32.mrb[0].mxu0
  %v3332 = vadd.f32 0.0, %v3331
  %3333 = vdwg.mxu0
  %v3334 = vadd.f32 %v3082, %v3210
  %v3335 = vadd.f32 %v3083, %v3212
  %v3336 = vadd.f32 %v3084, %v3263
  %v3337 = vadd.f32 %v3085, %v3265
  %v3338 = vadd.f32 %v3086, %v3316
  %v3339 = vadd.f32 %v3087, %v3318
  %v3340 = vadd.f32 %v3088, %v3214
  %v3341 = vadd.f32 %v3089, %v3216
  %v3342 = vadd.f32 %v3090, %v3267
  %v3343 = vadd.f32 %v3091, %v3269
  %v3344 = vadd.f32 %v3092, %v3320
  %v3345 = vadd.f32 %v3093, %v3322
  %v3346 = vadd.f32 %v3094, %v3220
  %v3347 = vadd.f32 %v3095, %v3222
  %v3348 = vadd.f32 %v3096, %v3273
  %v3349 = vadd.f32 %v3097, %v3275
  %v3350 = vadd.f32 %v3098, %v3326
  %v3351 = vadd.f32 %v3099, %v3328
  %v3352 = vadd.f32 %v3100, %v3224
  %v3353 = vadd.f32 %v3101, %v3226
  %v3354 = vadd.f32 %v3102, %v3277
  %v3355 = vadd.f32 %v3103, %v3279
  %v3356 = vadd.f32 %v3104, %v3330
  %v3357 = vadd.f32 %v3105, %v3332
  %v3358 = vld [vmem:[#allocation2] sm:$0xff]
  %v3359 = vld [vmem:[#allocation2 + $0x8] sm:$0xff]
  %v3360 = vld [vmem:[#allocation2 + $0x10] sm:$0xff]
  %v3364 = vcombine.high %v3358, %v3358
  %v3365 = vcombine.high %v3359, %v3359
  %v3366 = vcombine.high %v3360, %v3360
  %v3370 = vpack.c.bf16 %v3358, %v3358
  %v3371 = vpack.c.bf16 %v3364, %v3364
  %v3372 = vpack.c.bf16 %v3359, %v3359
  %v3373 = vpack.c.bf16 %v3365, %v3365
  %v3374 = vpack.c.bf16 %v3360, %v3360
  %v3375 = vpack.c.bf16 %v3366, %v3366
  %3376 = vrot.lane.b32.xlu0 %v1939, 108
  %v3377 = vpop.permute.xlu0 %3376
  %3378 = vrot.lane.b32.xlu0 %v1940, 108
  %v3379 = vpop.permute.xlu0 %3378
  %3386 = vrot.lane.b32.xlu0 %v3370, 126
  %v3387 = vpop.permute.xlu0 %3386
  %3388 = vrot.lane.b32.xlu0 %v3371, 126
  %v3389 = vpop.permute.xlu0 %3388
  %3390 = vrot.lane.b32.xlu0 %v3372, 126
  %v3391 = vpop.permute.xlu0 %3390
  %3392 = vrot.lane.b32.xlu0 %v3373, 126
  %v3393 = vpop.permute.xlu0 %3392
  %3394 = vrot.lane.b32.xlu0 %v3374, 126
  %v3395 = vpop.permute.xlu0 %3394
  %3396 = vrot.lane.b32.xlu0 %v3375, 126
  %v3397 = vpop.permute.xlu0 %3396
  %v3398 = vsel %vm415, %v3387, %v3389
  %v3399 = vsel %vm415, %v3389, %v3391
  %v3400 = vsel %vm415, %v3391, %v3393
  %v3401 = vsel %vm415, %v3393, %v3395
  %v3402 = vsel %vm415, %v3395, %v3397
  %v3404 = vsel %vm87, %v3377, 0
  %v3407 = vsel %vm87, %v3379, 0
  %v3410 = vsel %vm91, %v3398, 0
  %v3413 = vsel %vm91, %v3399, 0
  %v3416 = vsel %vm91, %v3400, 0
  %v3419 = vsel %vm91, %v3401, 0
  %v3422 = vsel %vm91, %v3402, 0
  %v3425 = vsel %vm91, %v3397, 0
  %3427 = vmatprep.subr.bf16.mxu0 %v3413
  %3428 = vmatpush1.bf16.msra.mxu0 %v3410
  %3429 = vmatprep.subr.bf16.mxu0 0
  %3430 = vmatpush1.bf16.msra.mxu0 0
  %3431 = vmatprep.subr.bf16.mxu0 0
  %3432 = vmatpush1.bf16.msra.mxu0 0
  %3433 = vmatprep.subr.bf16.mxu0 0
  %3434 = vmatpush1.bf16.msra.mxu0 0
  %3435 = vmatprep.subr.bf16.mxu0 0
  %3436 = vmatpush1.bf16.msra.mxu0 0
  %3437 = vmatprep.subr.bf16.mxu0 0
  %3438 = vmatpush1.bf16.msra.mxu0 0
  %3439 = vmatprep.subr.bf16.mxu0 0
  %3440 = vmatpush1.bf16.msra.mxu0 0
  %3441 = vmatprep.subr.bf16.mxu0 0
  %3442 = vmatpush1.bf16.msra.mxu0 0
  %3443 = vmatprep.subr.bf16.mxu0 0
  %3444 = vmatpush1.bf16.msra.mxu0 0
  %3445 = vmatprep.subr.bf16.mxu0 0
  %3446 = vmatpush1.bf16.msra.mxu0 0
  %3447 = vmatprep.subr.bf16.mxu0 0
  %3448 = vmatpush1.bf16.msra.mxu0 0
  %3449 = vmatprep.subr.bf16.mxu0 0
  %3450 = vmatpush1.bf16.msra.mxu0 0
  %3451 = vmatprep.subr.bf16.mxu0 0
  %3452 = vmatpush1.bf16.msra.mxu0 0
  %3453 = vmatprep.subr.bf16.mxu0 0
  %3454 = vmatpush1.bf16.msra.mxu0 0
  %3455 = vmatprep.subr.bf16.mxu0 0
  %3456 = vmatpush1.bf16.msra.mxu0 0
  %3457 = vmatprep.subr.bf16.mxu0 0
  %3458 = vmatpush1.bf16.msra.mxu0 0
  %3459 = vmatprep.mubr.bf16.mxu0 0
  %3460 = vmatmul.mubr.bf16.gmra.mrb[0].mxu0 %v3404
  %v3461 = vpop.f32.mrb[0].mxu0
  %v3462 = vadd.f32 0.0, %v3461
  %v3463 = vpop.f32.mrb[0].mxu0
  %v3464 = vadd.f32 0.0, %v3463
  %v3465 = vpop.f32.mrb[0].mxu0
  %v3466 = vadd.f32 0.0, %v3465
  %v3467 = vpop.f32.mrb[0].mxu0
  %v3468 = vadd.f32 0.0, %v3467
  %3469 = vmatprep.mubr.bf16.mxu0 0
  %3470 = vmatmul.mubr.bf16.gmra.mrb[0].mxu0 %v3407
  %v3471 = vpop.f32.mrb[0].mxu0
  %v3472 = vadd.f32 0.0, %v3471
  %v3473 = vpop.f32.mrb[0].mxu0
  %v3474 = vadd.f32 0.0, %v3473
  %v3475 = vpop.f32.mrb[0].mxu0
  %v3476 = vadd.f32 0.0, %v3475
  %v3477 = vpop.f32.mrb[0].mxu0
  %v3478 = vadd.f32 0.0, %v3477
  %3479 = vdwg.mxu0
  %3480 = vmatprep.subr.bf16.mxu0 %v3419
  %3481 = vmatpush1.bf16.msra.mxu0 %v3416
  %3482 = vmatprep.subr.bf16.mxu0 0
  %3483 = vmatpush1.bf16.msra.mxu0 0
  %3484 = vmatprep.subr.bf16.mxu0 0
  %3485 = vmatpush1.bf16.msra.mxu0 0
  %3486 = vmatprep.subr.bf16.mxu0 0
  %3487 = vmatpush1.bf16.msra.mxu0 0
  %3488 = vmatprep.subr.bf16.mxu0 0
  %3489 = vmatpush1.bf16.msra.mxu0 0
  %3490 = vmatprep.subr.bf16.mxu0 0
  %3491 = vmatpush1.bf16.msra.mxu0 0
  %3492 = vmatprep.subr.bf16.mxu0 0
  %3493 = vmatpush1.bf16.msra.mxu0 0
  %3494 = vmatprep.subr.bf16.mxu0 0
  %3495 = vmatpush1.bf16.msra.mxu0 0
  %3496 = vmatprep.subr.bf16.mxu0 0
  %3497 = vmatpush1.bf16.msra.mxu0 0
  %3498 = vmatprep.subr.bf16.mxu0 0
  %3499 = vmatpush1.bf16.msra.mxu0 0
  %3500 = vmatprep.subr.bf16.mxu0 0
  %3501 = vmatpush1.bf16.msra.mxu0 0
  %3502 = vmatprep.subr.bf16.mxu0 0
  %3503 = vmatpush1.bf16.msra.mxu0 0
  %3504 = vmatprep.subr.bf16.mxu0 0
  %3505 = vmatpush1.bf16.msra.mxu0 0
  %3506 = vmatprep.subr.bf16.mxu0 0
  %3507 = vmatpush1.bf16.msra.mxu0 0
  %3508 = vmatprep.subr.bf16.mxu0 0
  %3509 = vmatpush1.bf16.msra.mxu0 0
  %3510 = vmatprep.subr.bf16.mxu0 0
  %3511 = vmatpush1.bf16.msra.mxu0 0
  %3512 = vmatprep.mubr.bf16.mxu0 0
  %3513 = vmatmul.mubr.bf16.gmra.mrb[0].mxu0 %v3404
  %v3514 = vpop.f32.mrb[0].mxu0
  %v3515 = vadd.f32 0.0, %v3514
  %v3516 = vpop.f32.mrb[0].mxu0
  %v3517 = vadd.f32 0.0, %v3516
  %v3518 = vpop.f32.mrb[0].mxu0
  %v3519 = vadd.f32 0.0, %v3518
  %v3520 = vpop.f32.mrb[0].mxu0
  %v3521 = vadd.f32 0.0, %v3520
  %3522 = vmatprep.mubr.bf16.mxu0 0
  %3523 = vmatmul.mubr.bf16.gmra.mrb[0].mxu0 %v3407
  %v3524 = vpop.f32.mrb[0].mxu0
  %v3525 = vadd.f32 0.0, %v3524
  %v3526 = vpop.f32.mrb[0].mxu0
  %v3527 = vadd.f32 0.0, %v3526
  %v3528 = vpop.f32.mrb[0].mxu0
  %v3529 = vadd.f32 0.0, %v3528
  %v3530 = vpop.f32.mrb[0].mxu0
  %v3531 = vadd.f32 0.0, %v3530
  %3532 = vdwg.mxu0
  %3533 = vmatprep.subr.bf16.mxu0 %v3425
  %3534 = vmatpush1.bf16.msra.mxu0 %v3422
  %3535 = vmatprep.subr.bf16.mxu0 0
  %3536 = vmatpush1.bf16.msra.mxu0 0
  %3537 = vmatprep.subr.bf16.mxu0 0
  %3538 = vmatpush1.bf16.msra.mxu0 0
  %3539 = vmatprep.subr.bf16.mxu0 0
  %3540 = vmatpush1.bf16.msra.mxu0 0
  %3541 = vmatprep.subr.bf16.mxu0 0
  %3542 = vmatpush1.bf16.msra.mxu0 0
  %3543 = vmatprep.subr.bf16.mxu0 0
  %3544 = vmatpush1.bf16.msra.mxu0 0
  %3545 = vmatprep.subr.bf16.mxu0 0
  %3546 = vmatpush1.bf16.msra.mxu0 0
  %3547 = vmatprep.subr.bf16.mxu0 0
  %3548 = vmatpush1.bf16.msra.mxu0 0
  %3549 = vmatprep.subr.bf16.mxu0 0
  %3550 = vmatpush1.bf16.msra.mxu0 0
  %3551 = vmatprep.subr.bf16.mxu0 0
  %3552 = vmatpush1.bf16.msra.mxu0 0
  %3553 = vmatprep.subr.bf16.mxu0 0
  %3554 = vmatpush1.bf16.msra.mxu0 0
  %3555 = vmatprep.subr.bf16.mxu0 0
  %3556 = vmatpush1.bf16.msra.mxu0 0
  %3557 = vmatprep.subr.bf16.mxu0 0
  %3558 = vmatpush1.bf16.msra.mxu0 0
  %3559 = vmatprep.subr.bf16.mxu0 0
  %3560 = vmatpush1.bf16.msra.mxu0 0
  %3561 = vmatprep.subr.bf16.mxu0 0
  %3562 = vmatpush1.bf16.msra.mxu0 0
  %3563 = vmatprep.subr.bf16.mxu0 0
  %3564 = vmatpush1.bf16.msra.mxu0 0
  %3565 = vmatprep.mubr.bf16.mxu0 0
  %3566 = vmatmul.mubr.bf16.gmra.mrb[0].mxu0 %v3404
  %v3567 = vpop.f32.mrb[0].mxu0
  %v3568 = vadd.f32 0.0, %v3567
  %v3569 = vpop.f32.mrb[0].mxu0
  %v3570 = vadd.f32 0.0, %v3569
  %v3571 = vpop.f32.mrb[0].mxu0
  %v3572 = vadd.f32 0.0, %v3571
  %v3573 = vpop.f32.mrb[0].mxu0
  %v3574 = vadd.f32 0.0, %v3573
  %3575 = vmatprep.mubr.bf16.mxu0 0
  %3576 = vmatmul.mubr.bf16.gmra.mrb[0].mxu0 %v3407
  %v3577 = vpop.f32.mrb[0].mxu0
  %v3578 = vadd.f32 0.0, %v3577
  %v3579 = vpop.f32.mrb[0].mxu0
  %v3580 = vadd.f32 0.0, %v3579
  %v3581 = vpop.f32.mrb[0].mxu0
  %v3582 = vadd.f32 0.0, %v3581
  %v3583 = vpop.f32.mrb[0].mxu0
  %v3584 = vadd.f32 0.0, %v3583
  %3585 = vdwg.mxu0
  %v3586 = vadd.f32 %v3334, %v3462
  %v3587 = vadd.f32 %v3335, %v3464
  %v3588 = vadd.f32 %v3336, %v3515
  %v3589 = vadd.f32 %v3337, %v3517
  %v3590 = vadd.f32 %v3338, %v3568
  %v3591 = vadd.f32 %v3339, %v3570
  %v3592 = vadd.f32 %v3340, %v3466
  %v3593 = vadd.f32 %v3341, %v3468
  %v3594 = vadd.f32 %v3342, %v3519
  %v3595 = vadd.f32 %v3343, %v3521
  %v3596 = vadd.f32 %v3344, %v3572
  %v3597 = vadd.f32 %v3345, %v3574
  %v3598 = vadd.f32 %v3346, %v3472
  %v3599 = vadd.f32 %v3347, %v3474
  %v3600 = vadd.f32 %v3348, %v3525
  %v3601 = vadd.f32 %v3349, %v3527
  %v3602 = vadd.f32 %v3350, %v3578
  %v3603 = vadd.f32 %v3351, %v3580
  %v3604 = vadd.f32 %v3352, %v3476
  %v3605 = vadd.f32 %v3353, %v3478
  %v3606 = vadd.f32 %v3354, %v3529
  %v3607 = vadd.f32 %v3355, %v3531
  %v3608 = vadd.f32 %v3356, %v3582
  %v3609 = vadd.f32 %v3357, %v3584
  %v3610 = vld [vmem:[#allocation2] sm:$0xff]
  %v3611 = vld [vmem:[#allocation2 + $0x8] sm:$0xff]
  %v3612 = vld [vmem:[#allocation2 + $0x10] sm:$0xff]
  %v3616 = vcombine.high %v3610, %v3610
  %v3617 = vcombine.high %v3611, %v3611
  %v3618 = vcombine.high %v3612, %v3612
  %v3622 = vpack.c.bf16 %v3610, %v3610
  %v3623 = vpack.c.bf16 %v3616, %v3616
  %v3624 = vpack.c.bf16 %v3611, %v3611
  %v3625 = vpack.c.bf16 %v3617, %v3617
  %v3626 = vpack.c.bf16 %v3612, %v3612
  %v3627 = vpack.c.bf16 %v3618, %v3618
  %3628 = vrot.lane.b32.xlu0 %v1939, 104
  %v3629 = vpop.permute.xlu0 %3628
  %3630 = vrot.lane.b32.xlu0 %v1940, 104
  %v3631 = vpop.permute.xlu0 %3630
  %3638 = vrot.lane.b32.xlu0 %v3622, 91
  %v3639 = vpop.permute.xlu0 %3638
  %3640 = vrot.lane.b32.xlu0 %v3623, 91
  %v3641 = vpop.permute.xlu0 %3640
  %3642 = vrot.lane.b32.xlu0 %v3624, 91
  %v3643 = vpop.permute.xlu0 %3642
  %3644 = vrot.lane.b32.xlu0 %v3625, 91
  %v3645 = vpop.permute.xlu0 %3644
  %3646 = vrot.lane.b32.xlu0 %v3626, 91
  %v3647 = vpop.permute.xlu0 %3646
  %3648 = vrot.lane.b32.xlu0 %v3627, 91
  %v3649 = vpop.permute.xlu0 %3648
  %v3650 = vsel %vm1385, %v3639, %v3641
  %v3651 = vsel %vm1385, %v3641, %v3643
  %v3652 = vsel %vm1385, %v3643, %v3645
  %v3653 = vsel %vm1385, %v3645, %v3647
  %v3654 = vsel %vm1385, %v3647, %v3649
  %v3656 = vsel %vm87, %v3629, 0
  %v3659 = vsel %vm87, %v3631, 0
  %v3662 = vsel %vm91, %v3650, 0
  %v3665 = vsel %vm91, %v3651, 0
  %v3668 = vsel %vm91, %v3652, 0
  %v3671 = vsel %vm91, %v3653, 0
  %v3674 = vsel %vm91, %v3654, 0
  %v3677 = vsel %vm91, %v3649, 0
  %3679 = vmatprep.subr.bf16.mxu0 %v3665
  %3680 = vmatpush1.bf16.msra.mxu0 %v3662
  %3681 = vmatprep.subr.bf16.mxu0 0
  %3682 = vmatpush1.bf16.msra.mxu0 0
  %3683 = vmatprep.subr.bf16.mxu0 0
  %3684 = vmatpush1.bf16.msra.mxu0 0
  %3685 = vmatprep.subr.bf16.mxu0 0
  %3686 = vmatpush1.bf16.msra.mxu0 0
  %3687 = vmatprep.subr.bf16.mxu0 0
  %3688 = vmatpush1.bf16.msra.mxu0 0
  %3689 = vmatprep.subr.bf16.mxu0 0
  %3690 = vmatpush1.bf16.msra.mxu0 0
  %3691 = vmatprep.subr.bf16.mxu0 0
  %3692 = vmatpush1.bf16.msra.mxu0 0
  %3693 = vmatprep.subr.bf16.mxu0 0
  %3694 = vmatpush1.bf16.msra.mxu0 0
  %3695 = vmatprep.subr.bf16.mxu0 0
  %3696 = vmatpush1.bf16.msra.mxu0 0
  %3697 = vmatprep.subr.bf16.mxu0 0
  %3698 = vmatpush1.bf16.msra.mxu0 0
  %3699 = vmatprep.subr.bf16.mxu0 0
  %3700 = vmatpush1.bf16.msra.mxu0 0
  %3701 = vmatprep.subr.bf16.mxu0 0
  %3702 = vmatpush1.bf16.msra.mxu0 0
  %3703 = vmatprep.subr.bf16.mxu0 0
  %3704 = vmatpush1.bf16.msra.mxu0 0
  %3705 = vmatprep.subr.bf16.mxu0 0
  %3706 = vmatpush1.bf16.msra.mxu0 0
  %3707 = vmatprep.subr.bf16.mxu0 0
  %3708 = vmatpush1.bf16.msra.mxu0 0
  %3709 = vmatprep.subr.bf16.mxu0 0
  %3710 = vmatpush1.bf16.msra.mxu0 0
  %3711 = vmatprep.mubr.bf16.mxu0 0
  %3712 = vmatmul.mubr.bf16.gmra.mrb[0].mxu0 %v3656
  %v3713 = vpop.f32.mrb[0].mxu0
  %v3714 = vadd.f32 0.0, %v3713
  %v3715 = vpop.f32.mrb[0].mxu0
  %v3716 = vadd.f32 0.0, %v3715
  %v3717 = vpop.f32.mrb[0].mxu0
  %v3718 = vadd.f32 0.0, %v3717
  %v3719 = vpop.f32.mrb[0].mxu0
  %v3720 = vadd.f32 0.0, %v3719
  %3721 = vmatprep.mubr.bf16.mxu0 0
  %3722 = vmatmul.mubr.bf16.gmra.mrb[0].mxu0 %v3659
  %v3723 = vpop.f32.mrb[0].mxu0
  %v3724 = vadd.f32 0.0, %v3723
  %v3725 = vpop.f32.mrb[0].mxu0
  %v3726 = vadd.f32 0.0, %v3725
  %v3727 = vpop.f32.mrb[0].mxu0
  %v3728 = vadd.f32 0.0, %v3727
  %v3729 = vpop.f32.mrb[0].mxu0
  %v3730 = vadd.f32 0.0, %v3729
  %3731 = vdwg.mxu0
  %3732 = vmatprep.subr.bf16.mxu0 %v3671
  %3733 = vmatpush1.bf16.msra.mxu0 %v3668
  %3734 = vmatprep.subr.bf16.mxu0 0
  %3735 = vmatpush1.bf16.msra.mxu0 0
  %3736 = vmatprep.subr.bf16.mxu0 0
  %3737 = vmatpush1.bf16.msra.mxu0 0
  %3738 = vmatprep.subr.bf16.mxu0 0
  %3739 = vmatpush1.bf16.msra.mxu0 0
  %3740 = vmatprep.subr.bf16.mxu0 0
  %3741 = vmatpush1.bf16.msra.mxu0 0
  %3742 = vmatprep.subr.bf16.mxu0 0
  %3743 = vmatpush1.bf16.msra.mxu0 0
  %3744 = vmatprep.subr.bf16.mxu0 0
  %3745 = vmatpush1.bf16.msra.mxu0 0
  %3746 = vmatprep.subr.bf16.mxu0 0
  %3747 = vmatpush1.bf16.msra.mxu0 0
  %3748 = vmatprep.subr.bf16.mxu0 0
  %3749 = vmatpush1.bf16.msra.mxu0 0
  %3750 = vmatprep.subr.bf16.mxu0 0
  %3751 = vmatpush1.bf16.msra.mxu0 0
  %3752 = vmatprep.subr.bf16.mxu0 0
  %3753 = vmatpush1.bf16.msra.mxu0 0
  %3754 = vmatprep.subr.bf16.mxu0 0
  %3755 = vmatpush1.bf16.msra.mxu0 0
  %3756 = vmatprep.subr.bf16.mxu0 0
  %3757 = vmatpush1.bf16.msra.mxu0 0
  %3758 = vmatprep.subr.bf16.mxu0 0
  %3759 = vmatpush1.bf16.msra.mxu0 0
  %3760 = vmatprep.subr.bf16.mxu0 0
  %3761 = vmatpush1.bf16.msra.mxu0 0
  %3762 = vmatprep.subr.bf16.mxu0 0
  %3763 = vmatpush1.bf16.msra.mxu0 0
  %3764 = vmatprep.mubr.bf16.mxu0 0
  %3765 = vmatmul.mubr.bf16.gmra.mrb[0].mxu0 %v3656
  %v3766 = vpop.f32.mrb[0].mxu0
  %v3767 = vadd.f32 0.0, %v3766
  %v3768 = vpop.f32.mrb[0].mxu0
  %v3769 = vadd.f32 0.0, %v3768
  %v3770 = vpop.f32.mrb[0].mxu0
  %v3771 = vadd.f32 0.0, %v3770
  %v3772 = vpop.f32.mrb[0].mxu0
  %v3773 = vadd.f32 0.0, %v3772
  %3774 = vmatprep.mubr.bf16.mxu0 0
  %3775 = vmatmul.mubr.bf16.gmra.mrb[0].mxu0 %v3659
  %v3776 = vpop.f32.mrb[0].mxu0
  %v3777 = vadd.f32 0.0, %v3776
  %v3778 = vpop.f32.mrb[0].mxu0
  %v3779 = vadd.f32 0.0, %v3778
  %v3780 = vpop.f32.mrb[0].mxu0
  %v3781 = vadd.f32 0.0, %v3780
  %v3782 = vpop.f32.mrb[0].mxu0
  %v3783 = vadd.f32 0.0, %v3782
  %3784 = vdwg.mxu0
  %3785 = vmatprep.subr.bf16.mxu0 %v3677
  %3786 = vmatpush1.bf16.msra.mxu0 %v3674
  %3787 = vmatprep.subr.bf16.mxu0 0
  %3788 = vmatpush1.bf16.msra.mxu0 0
  %3789 = vmatprep.subr.bf16.mxu0 0
  %3790 = vmatpush1.bf16.msra.mxu0 0
  %3791 = vmatprep.subr.bf16.mxu0 0
  %3792 = vmatpush1.bf16.msra.mxu0 0
  %3793 = vmatprep.subr.bf16.mxu0 0
  %3794 = vmatpush1.bf16.msra.mxu0 0
  %3795 = vmatprep.subr.bf16.mxu0 0
  %3796 = vmatpush1.bf16.msra.mxu0 0
  %3797 = vmatprep.subr.bf16.mxu0 0
  %3798 = vmatpush1.bf16.msra.mxu0 0
  %3799 = vmatprep.subr.bf16.mxu0 0
  %3800 = vmatpush1.bf16.msra.mxu0 0
  %3801 = vmatprep.subr.bf16.mxu0 0
  %3802 = vmatpush1.bf16.msra.mxu0 0
  %3803 = vmatprep.subr.bf16.mxu0 0
  %3804 = vmatpush1.bf16.msra.mxu0 0
  %3805 = vmatprep.subr.bf16.mxu0 0
  %3806 = vmatpush1.bf16.msra.mxu0 0
  %3807 = vmatprep.subr.bf16.mxu0 0
  %3808 = vmatpush1.bf16.msra.mxu0 0
  %3809 = vmatprep.subr.bf16.mxu0 0
  %3810 = vmatpush1.bf16.msra.mxu0 0
  %3811 = vmatprep.subr.bf16.mxu0 0
  %3812 = vmatpush1.bf16.msra.mxu0 0
  %3813 = vmatprep.subr.bf16.mxu0 0
  %3814 = vmatpush1.bf16.msra.mxu0 0
  %3815 = vmatprep.subr.bf16.mxu0 0
  %3816 = vmatpush1.bf16.msra.mxu0 0
  %3817 = vmatprep.mubr.bf16.mxu0 0
  %3818 = vmatmul.mubr.bf16.gmra.mrb[0].mxu0 %v3656
  %v3819 = vpop.f32.mrb[0].mxu0
  %v3820 = vadd.f32 0.0, %v3819
  %v3821 = vpop.f32.mrb[0].mxu0
  %v3822 = vadd.f32 0.0, %v3821
  %v3823 = vpop.f32.mrb[0].mxu0
  %v3824 = vadd.f32 0.0, %v3823
  %v3825 = vpop.f32.mrb[0].mxu0
  %v3826 = vadd.f32 0.0, %v3825
  %3827 = vmatprep.mubr.bf16.mxu0 0
  %3828 = vmatmul.mubr.bf16.gmra.mrb[0].mxu0 %v3659
  %v3829 = vpop.f32.mrb[0].mxu0
  %v3830 = vadd.f32 0.0, %v3829
  %v3831 = vpop.f32.mrb[0].mxu0
  %v3832 = vadd.f32 0.0, %v3831
  %v3833 = vpop.f32.mrb[0].mxu0
  %v3834 = vadd.f32 0.0, %v3833
  %v3835 = vpop.f32.mrb[0].mxu0
  %v3836 = vadd.f32 0.0, %v3835
  %3837 = vdwg.mxu0
  %v3838 = vadd.f32 %v3586, %v3714
  %v3839 = vadd.f32 %v3587, %v3716
  %v3840 = vadd.f32 %v3588, %v3767
  %v3841 = vadd.f32 %v3589, %v3769
  %v3842 = vadd.f32 %v3590, %v3820
  %v3843 = vadd.f32 %v3591, %v3822
  %v3844 = vadd.f32 %v3592, %v3718
  %v3845 = vadd.f32 %v3593, %v3720
  %v3846 = vadd.f32 %v3594, %v3771
  %v3847 = vadd.f32 %v3595, %v3773
  %v3848 = vadd.f32 %v3596, %v3824
  %v3849 = vadd.f32 %v3597, %v3826
  %v3850 = vadd.f32 %v3598, %v3724
  %v3851 = vadd.f32 %v3599, %v3726
  %v3852 = vadd.f32 %v3600, %v3777
  %v3853 = vadd.f32 %v3601, %v3779
  %v3854 = vadd.f32 %v3602, %v3830
  %v3855 = vadd.f32 %v3603, %v3832
  %v3856 = vadd.f32 %v3604, %v3728
  %v3857 = vadd.f32 %v3605, %v3730
  %v3858 = vadd.f32 %v3606, %v3781
  %v3859 = vadd.f32 %v3607, %v3783
  %v3860 = vadd.f32 %v3608, %v3834
  %v3861 = vadd.f32 %v3609, %v3836
  %v3862 = vld [vmem:[#allocation2] sm:$0xff]
  %v3863 = vld [vmem:[#allocation2 + $0x8] sm:$0xff]
  %v3864 = vld [vmem:[#allocation2 + $0x10] sm:$0xff]
  %v3868 = vcombine.high %v3862, %v3862
  %v3869 = vcombine.high %v3863, %v3863
  %v3870 = vcombine.high %v3864, %v3864
  %v3874 = vpack.c.bf16 %v3862, %v3862
  %v3875 = vpack.c.bf16 %v3868, %v3868
  %v3876 = vpack.c.bf16 %v3863, %v3863
  %v3877 = vpack.c.bf16 %v3869, %v3869
  %v3878 = vpack.c.bf16 %v3864, %v3864
  %v3879 = vpack.c.bf16 %v3870, %v3870
  %3880 = vrot.lane.b32.xlu0 %v1939, 100
  %v3881 = vpop.permute.xlu0 %3880
  %3882 = vrot.lane.b32.xlu0 %v1940, 100
  %v3883 = vpop.permute.xlu0 %3882
  %3890 = vrot.lane.b32.xlu0 %v3874, 92
  %v3891 = vpop.permute.xlu0 %3890
  %3892 = vrot.lane.b32.xlu0 %v3875, 92
  %v3893 = vpop.permute.xlu0 %3892
  %3894 = vrot.lane.b32.xlu0 %v3876, 92
  %v3895 = vpop.permute.xlu0 %3894
  %3896 = vrot.lane.b32.xlu0 %v3877, 92
  %v3897 = vpop.permute.xlu0 %3896
  %3898 = vrot.lane.b32.xlu0 %v3878, 92
  %v3899 = vpop.permute.xlu0 %3898
  %3900 = vrot.lane.b32.xlu0 %v3879, 92
  %v3901 = vpop.permute.xlu0 %3900
  %v3902 = vsel %vm1191, %v3891, %v3893
  %v3903 = vsel %vm1191, %v3893, %v3895
  %v3904 = vsel %vm1191, %v3895, %v3897
  %v3905 = vsel %vm1191, %v3897, %v3899
  %v3906 = vsel %vm1191, %v3899, %v3901
  %v3908 = vsel %vm87, %v3881, 0
  %v3911 = vsel %vm87, %v3883, 0
  %v3914 = vsel %vm91, %v3902, 0
  %v3917 = vsel %vm91, %v3903, 0
  %v3920 = vsel %vm91, %v3904, 0
  %v3923 = vsel %vm91, %v3905, 0
  %v3926 = vsel %vm91, %v3906, 0
  %v3929 = vsel %vm91, %v3901, 0
  %3931 = vmatprep.subr.bf16.mxu0 %v3917
  %3932 = vmatpush1.bf16.msra.mxu0 %v3914
  %3933 = vmatprep.subr.bf16.mxu0 0
  %3934 = vmatpush1.bf16.msra.mxu0 0
  %3935 = vmatprep.subr.bf16.mxu0 0
  %3936 = vmatpush1.bf16.msra.mxu0 0
  %3937 = vmatprep.subr.bf16.mxu0 0
  %3938 = vmatpush1.bf16.msra.mxu0 0
  %3939 = vmatprep.subr.bf16.mxu0 0
  %3940 = vmatpush1.bf16.msra.mxu0 0
  %3941 = vmatprep.subr.bf16.mxu0 0
  %3942 = vmatpush1.bf16.msra.mxu0 0
  %3943 = vmatprep.subr.bf16.mxu0 0
  %3944 = vmatpush1.bf16.msra.mxu0 0
  %3945 = vmatprep.subr.bf16.mxu0 0
  %3946 = vmatpush1.bf16.msra.mxu0 0
  %3947 = vmatprep.subr.bf16.mxu0 0
  %3948 = vmatpush1.bf16.msra.mxu0 0
  %3949 = vmatprep.subr.bf16.mxu0 0
  %3950 = vmatpush1.bf16.msra.mxu0 0
  %3951 = vmatprep.subr.bf16.mxu0 0
  %3952 = vmatpush1.bf16.msra.mxu0 0
  %3953 = vmatprep.subr.bf16.mxu0 0
  %3954 = vmatpush1.bf16.msra.mxu0 0
  %3955 = vmatprep.subr.bf16.mxu0 0
  %3956 = vmatpush1.bf16.msra.mxu0 0
  %3957 = vmatprep.subr.bf16.mxu0 0
  %3958 = vmatpush1.bf16.msra.mxu0 0
  %3959 = vmatprep.subr.bf16.mxu0 0
  %3960 = vmatpush1.bf16.msra.mxu0 0
  %3961 = vmatprep.subr.bf16.mxu0 0
  %3962 = vmatpush1.bf16.msra.mxu0 0
  %3963 = vmatprep.mubr.bf16.mxu0 0
  %3964 = vmatmul.mubr.bf16.gmra.mrb[0].mxu0 %v3908
  %v3965 = vpop.f32.mrb[0].mxu0
  %v3966 = vadd.f32 0.0, %v3965
  %v3967 = vpop.f32.mrb[0].mxu0
  %v3968 = vadd.f32 0.0, %v3967
  %v3969 = vpop.f32.mrb[0].mxu0
  %v3970 = vadd.f32 0.0, %v3969
  %v3971 = vpop.f32.mrb[0].mxu0
  %v3972 = vadd.f32 0.0, %v3971
  %3973 = vmatprep.mubr.bf16.mxu0 0
  %3974 = vmatmul.mubr.bf16.gmra.mrb[0].mxu0 %v3911
  %v3975 = vpop.f32.mrb[0].mxu0
  %v3976 = vadd.f32 0.0, %v3975
  %v3977 = vpop.f32.mrb[0].mxu0
  %v3978 = vadd.f32 0.0, %v3977
  %v3979 = vpop.f32.mrb[0].mxu0
  %v3980 = vadd.f32 0.0, %v3979
  %v3981 = vpop.f32.mrb[0].mxu0
  %v3982 = vadd.f32 0.0, %v3981
  %3983 = vdwg.mxu0
  %3984 = vmatprep.subr.bf16.mxu0 %v3923
  %3985 = vmatpush1.bf16.msra.mxu0 %v3920
  %3986 = vmatprep.subr.bf16.mxu0 0
  %3987 = vmatpush1.bf16.msra.mxu0 0
  %3988 = vmatprep.subr.bf16.mxu0 0
  %3989 = vmatpush1.bf16.msra.mxu0 0
  %3990 = vmatprep.subr.bf16.mxu0 0
  %3991 = vmatpush1.bf16.msra.mxu0 0
  %3992 = vmatprep.subr.bf16.mxu0 0
  %3993 = vmatpush1.bf16.msra.mxu0 0
  %3994 = vmatprep.subr.bf16.mxu0 0
  %3995 = vmatpush1.bf16.msra.mxu0 0
  %3996 = vmatprep.subr.bf16.mxu0 0
  %3997 = vmatpush1.bf16.msra.mxu0 0
  %3998 = vmatprep.subr.bf16.mxu0 0
  %3999 = vmatpush1.bf16.msra.mxu0 0
  %4000 = vmatprep.subr.bf16.mxu0 0
  %4001 = vmatpush1.bf16.msra.mxu0 0
  %4002 = vmatprep.subr.bf16.mxu0 0
  %4003 = vmatpush1.bf16.msra.mxu0 0
  %4004 = vmatprep.subr.bf16.mxu0 0
  %4005 = vmatpush1.bf16.msra.mxu0 0
  %4006 = vmatprep.subr.bf16.mxu0 0
  %4007 = vmatpush1.bf16.msra.mxu0 0
  %4008 = vmatprep.subr.bf16.mxu0 0
  %4009 = vmatpush1.bf16.msra.mxu0 0
  %4010 = vmatprep.subr.bf16.mxu0 0
  %4011 = vmatpush1.bf16.msra.mxu0 0
  %4012 = vmatprep.subr.bf16.mxu0 0
  %4013 = vmatpush1.bf16.msra.mxu0 0
  %4014 = vmatprep.subr.bf16.mxu0 0
  %4015 = vmatpush1.bf16.msra.mxu0 0
  %4016 = vmatprep.mubr.bf16.mxu0 0
  %4017 = vmatmul.mubr.bf16.gmra.mrb[0].mxu0 %v3908
  %v4018 = vpop.f32.mrb[0].mxu0
  %v4019 = vadd.f32 0.0, %v4018
  %v4020 = vpop.f32.mrb[0].mxu0
  %v4021 = vadd.f32 0.0, %v4020
  %v4022 = vpop.f32.mrb[0].mxu0
  %v4023 = vadd.f32 0.0, %v4022
  %v4024 = vpop.f32.mrb[0].mxu0
  %v4025 = vadd.f32 0.0, %v4024
  %4026 = vmatprep.mubr.bf16.mxu0 0
  %4027 = vmatmul.mubr.bf16.gmra.mrb[0].mxu0 %v3911
  %v4028 = vpop.f32.mrb[0].mxu0
  %v4029 = vadd.f32 0.0, %v4028
  %v4030 = vpop.f32.mrb[0].mxu0
  %v4031 = vadd.f32 0.0, %v4030
  %v4032 = vpop.f32.mrb[0].mxu0
  %v4033 = vadd.f32 0.0, %v4032
  %v4034 = vpop.f32.mrb[0].mxu0
  %v4035 = vadd.f32 0.0, %v4034
  %4036 = vdwg.mxu0
  %4037 = vmatprep.subr.bf16.mxu0 %v3929
  %4038 = vmatpush1.bf16.msra.mxu0 %v3926
  %4039 = vmatprep.subr.bf16.mxu0 0
  %4040 = vmatpush1.bf16.msra.mxu0 0
  %4041 = vmatprep.subr.bf16.mxu0 0
  %4042 = vmatpush1.bf16.msra.mxu0 0
  %4043 = vmatprep.subr.bf16.mxu0 0
  %4044 = vmatpush1.bf16.msra.mxu0 0
  %4045 = vmatprep.subr.bf16.mxu0 0
  %4046 = vmatpush1.bf16.msra.mxu0 0
  %4047 = vmatprep.subr.bf16.mxu0 0
  %4048 = vmatpush1.bf16.msra.mxu0 0
  %4049 = vmatprep.subr.bf16.mxu0 0
  %4050 = vmatpush1.bf16.msra.mxu0 0
  %4051 = vmatprep.subr.bf16.mxu0 0
  %4052 = vmatpush1.bf16.msra.mxu0 0
  %4053 = vmatprep.subr.bf16.mxu0 0
  %4054 = vmatpush1.bf16.msra.mxu0 0
  %4055 = vmatprep.subr.bf16.mxu0 0
  %4056 = vmatpush1.bf16.msra.mxu0 0
  %4057 = vmatprep.subr.bf16.mxu0 0
  %4058 = vmatpush1.bf16.msra.mxu0 0
  %4059 = vmatprep.subr.bf16.mxu0 0
  %4060 = vmatpush1.bf16.msra.mxu0 0
  %4061 = vmatprep.subr.bf16.mxu0 0
  %4062 = vmatpush1.bf16.msra.mxu0 0
  %4063 = vmatprep.subr.bf16.mxu0 0
  %4064 = vmatpush1.bf16.msra.mxu0 0
  %4065 = vmatprep.subr.bf16.mxu0 0
  %4066 = vmatpush1.bf16.msra.mxu0 0
  %4067 = vmatprep.subr.bf16.mxu0 0
  %4068 = vmatpush1.bf16.msra.mxu0 0
  %4069 = vmatprep.mubr.bf16.mxu0 0
  %4070 = vmatmul.mubr.bf16.gmra.mrb[0].mxu0 %v3908
  %v4071 = vpop.f32.mrb[0].mxu0
  %v4072 = vadd.f32 0.0, %v4071
  %v4073 = vpop.f32.mrb[0].mxu0
  %v4074 = vadd.f32 0.0, %v4073
  %v4075 = vpop.f32.mrb[0].mxu0
  %v4076 = vadd.f32 0.0, %v4075
  %v4077 = vpop.f32.mrb[0].mxu0
  %v4078 = vadd.f32 0.0, %v4077
  %4079 = vmatprep.mubr.bf16.mxu0 0
  %4080 = vmatmul.mubr.bf16.gmra.mrb[0].mxu0 %v3911
  %v4081 = vpop.f32.mrb[0].mxu0
  %v4082 = vadd.f32 0.0, %v4081
  %v4083 = vpop.f32.mrb[0].mxu0
  %v4084 = vadd.f32 0.0, %v4083
  %v4085 = vpop.f32.mrb[0].mxu0
  %v4086 = vadd.f32 0.0, %v4085
  %v4087 = vpop.f32.mrb[0].mxu0
  %v4088 = vadd.f32 0.0, %v4087
  %4089 = vdwg.mxu0
  %v4090 = vadd.f32 %v3838, %v3966
  %v4091 = vadd.f32 %v3839, %v3968
  %v4092 = vadd.f32 %v3840, %v4019
  %v4093 = vadd.f32 %v3841, %v4021
  %v4094 = vadd.f32 %v3842, %v4072
  %v4095 = vadd.f32 %v3843, %v4074
  %v4096 = vadd.f32 %v3844, %v3970
  %v4097 = vadd.f32 %v3845, %v3972
  %v4098 = vadd.f32 %v3846, %v4023
  %v4099 = vadd.f32 %v3847, %v4025
  %v4100 = vadd.f32 %v3848, %v4076
  %v4101 = vadd.f32 %v3849, %v4078
  %v4102 = vadd.f32 %v3850, %v3976
  %v4103 = vadd.f32 %v3851, %v3978
  %v4104 = vadd.f32 %v3852, %v4029
  %v4105 = vadd.f32 %v3853, %v4031
  %v4106 = vadd.f32 %v3854, %v4082
  %v4107 = vadd.f32 %v3855, %v4084
  %v4108 = vadd.f32 %v3856, %v3980
  %v4109 = vadd.f32 %v3857, %v3982
  %v4110 = vadd.f32 %v3858, %v4033
  %v4111 = vadd.f32 %v3859, %v4035
  %v4112 = vadd.f32 %v3860, %v4086
  %v4113 = vadd.f32 %v3861, %v4088
  %v4114 = vld [vmem:[#allocation2] sm:$0xff]
  %v4115 = vld [vmem:[#allocation2 + $0x8] sm:$0xff]
  %v4116 = vld [vmem:[#allocation2 + $0x10] sm:$0xff]
  %v4120 = vcombine.high %v4114, %v4114
  %v4121 = vcombine.high %v4115, %v4115
  %v4122 = vcombine.high %v4116, %v4116
  %v4126 = vpack.c.bf16 %v4114, %v4114
  %v4127 = vpack.c.bf16 %v4120, %v4120
  %v4128 = vpack.c.bf16 %v4115, %v4115
  %v4129 = vpack.c.bf16 %v4121, %v4121
  %v4130 = vpack.c.bf16 %v4116, %v4116
  %v4131 = vpack.c.bf16 %v4122, %v4122
  %4132 = vrot.lane.b32.xlu0 %v1939, 96
  %v4133 = vpop.permute.xlu0 %4132
  %4134 = vrot.lane.b32.xlu0 %v1940, 96
  %v4135 = vpop.permute.xlu0 %4134
  %4142 = vrot.lane.b32.xlu0 %v4126, 90
  %v4143 = vpop.permute.xlu0 %4142
  %4144 = vrot.lane.b32.xlu0 %v4127, 90
  %v4145 = vpop.permute.xlu0 %4144
  %4146 = vrot.lane.b32.xlu0 %v4128, 90
  %v4147 = vpop.permute.xlu0 %4146
  %4148 = vrot.lane.b32.xlu0 %v4129, 90
  %v4149 = vpop.permute.xlu0 %4148
  %4150 = vrot.lane.b32.xlu0 %v4130, 90
  %v4151 = vpop.permute.xlu0 %4150
  %4152 = vrot.lane.b32.xlu0 %v4131, 90
  %v4153 = vpop.permute.xlu0 %4152
  %v4154 = vsel %vm1579, %v4143, %v4145
  %v4155 = vsel %vm1579, %v4145, %v4147
  %v4156 = vsel %vm1579, %v4147, %v4149
  %v4157 = vsel %vm1579, %v4149, %v4151
  %v4158 = vsel %vm1579, %v4151, %v4153
  %v4160 = vsel %vm87, %v4133, 0
  %v4163 = vsel %vm87, %v4135, 0
  %v4166 = vsel %vm91, %v4154, 0
  %v4169 = vsel %vm91, %v4155, 0
  %v4172 = vsel %vm91, %v4156, 0
  %v4175 = vsel %vm91, %v4157, 0
  %v4178 = vsel %vm91, %v4158, 0
  %v4181 = vsel %vm91, %v4153, 0
  %4183 = vmatprep.subr.bf16.mxu0 %v4169
  %4184 = vmatpush1.bf16.msra.mxu0 %v4166
  %4185 = vmatprep.subr.bf16.mxu0 0
  %4186 = vmatpush1.bf16.msra.mxu0 0
  %4187 = vmatprep.subr.bf16.mxu0 0
  %4188 = vmatpush1.bf16.msra.mxu0 0
  %4189 = vmatprep.subr.bf16.mxu0 0
  %4190 = vmatpush1.bf16.msra.mxu0 0
  %4191 = vmatprep.subr.bf16.mxu0 0
  %4192 = vmatpush1.bf16.msra.mxu0 0
  %4193 = vmatprep.subr.bf16.mxu0 0
  %4194 = vmatpush1.bf16.msra.mxu0 0
  %4195 = vmatprep.subr.bf16.mxu0 0
  %4196 = vmatpush1.bf16.msra.mxu0 0
  %4197 = vmatprep.subr.bf16.mxu0 0
  %4198 = vmatpush1.bf16.msra.mxu0 0
  %4199 = vmatprep.subr.bf16.mxu0 0
  %4200 = vmatpush1.bf16.msra.mxu0 0
  %4201 = vmatprep.subr.bf16.mxu0 0
  %4202 = vmatpush1.bf16.msra.mxu0 0
  %4203 = vmatprep.subr.bf16.mxu0 0
  %4204 = vmatpush1.bf16.msra.mxu0 0
  %4205 = vmatprep.subr.bf16.mxu0 0
  %4206 = vmatpush1.bf16.msra.mxu0 0
  %4207 = vmatprep.subr.bf16.mxu0 0
  %4208 = vmatpush1.bf16.msra.mxu0 0
  %4209 = vmatprep.subr.bf16.mxu0 0
  %4210 = vmatpush1.bf16.msra.mxu0 0
  %4211 = vmatprep.subr.bf16.mxu0 0
  %4212 = vmatpush1.bf16.msra.mxu0 0
  %4213 = vmatprep.subr.bf16.mxu0 0
  %4214 = vmatpush1.bf16.msra.mxu0 0
  %4215 = vmatprep.mubr.bf16.mxu0 0
  %4216 = vmatmul.mubr.bf16.gmra.mrb[0].mxu0 %v4160
  %v4217 = vpop.f32.mrb[0].mxu0
  %v4218 = vadd.f32 0.0, %v4217
  %v4219 = vpop.f32.mrb[0].mxu0
  %v4220 = vadd.f32 0.0, %v4219
  %v4221 = vpop.f32.mrb[0].mxu0
  %v4222 = vadd.f32 0.0, %v4221
  %v4223 = vpop.f32.mrb[0].mxu0
  %v4224 = vadd.f32 0.0, %v4223
  %4225 = vmatprep.mubr.bf16.mxu0 0
  %4226 = vmatmul.mubr.bf16.gmra.mrb[0].mxu0 %v4163
  %v4227 = vpop.f32.mrb[0].mxu0
  %v4228 = vadd.f32 0.0, %v4227
  %v4229 = vpop.f32.mrb[0].mxu0
  %v4230 = vadd.f32 0.0, %v4229
  %v4231 = vpop.f32.mrb[0].mxu0
  %v4232 = vadd.f32 0.0, %v4231
  %v4233 = vpop.f32.mrb[0].mxu0
  %v4234 = vadd.f32 0.0, %v4233
  %4235 = vdwg.mxu0
  %4236 = vmatprep.subr.bf16.mxu0 %v4175
  %4237 = vmatpush1.bf16.msra.mxu0 %v4172
  %4238 = vmatprep.subr.bf16.mxu0 0
  %4239 = vmatpush1.bf16.msra.mxu0 0
  %4240 = vmatprep.subr.bf16.mxu0 0
  %4241 = vmatpush1.bf16.msra.mxu0 0
  %4242 = vmatprep.subr.bf16.mxu0 0
  %4243 = vmatpush1.bf16.msra.mxu0 0
  %4244 = vmatprep.subr.bf16.mxu0 0
  %4245 = vmatpush1.bf16.msra.mxu0 0
  %4246 = vmatprep.subr.bf16.mxu0 0
  %4247 = vmatpush1.bf16.msra.mxu0 0
  %4248 = vmatprep.subr.bf16.mxu0 0
  %4249 = vmatpush1.bf16.msra.mxu0 0
  %4250 = vmatprep.subr.bf16.mxu0 0
  %4251 = vmatpush1.bf16.msra.mxu0 0
  %4252 = vmatprep.subr.bf16.mxu0 0
  %4253 = vmatpush1.bf16.msra.mxu0 0
  %4254 = vmatprep.subr.bf16.mxu0 0
  %4255 = vmatpush1.bf16.msra.mxu0 0
  %4256 = vmatprep.subr.bf16.mxu0 0
  %4257 = vmatpush1.bf16.msra.mxu0 0
  %4258 = vmatprep.subr.bf16.mxu0 0
  %4259 = vmatpush1.bf16.msra.mxu0 0
  %4260 = vmatprep.subr.bf16.mxu0 0
  %4261 = vmatpush1.bf16.msra.mxu0 0
  %4262 = vmatprep.subr.bf16.mxu0 0
  %4263 = vmatpush1.bf16.msra.mxu0 0
  %4264 = vmatprep.subr.bf16.mxu0 0
  %4265 = vmatpush1.bf16.msra.mxu0 0
  %4266 = vmatprep.subr.bf16.mxu0 0
  %4267 = vmatpush1.bf16.msra.mxu0 0
  %4268 = vmatprep.mubr.bf16.mxu0 0
  %4269 = vmatmul.mubr.bf16.gmra.mrb[0].mxu0 %v4160
  %v4270 = vpop.f32.mrb[0].mxu0
  %v4271 = vadd.f32 0.0, %v4270
  %v4272 = vpop.f32.mrb[0].mxu0
  %v4273 = vadd.f32 0.0, %v4272
  %v4274 = vpop.f32.mrb[0].mxu0
  %v4275 = vadd.f32 0.0, %v4274
  %v4276 = vpop.f32.mrb[0].mxu0
  %v4277 = vadd.f32 0.0, %v4276
  %4278 = vmatprep.mubr.bf16.mxu0 0
  %4279 = vmatmul.mubr.bf16.gmra.mrb[0].mxu0 %v4163
  %v4280 = vpop.f32.mrb[0].mxu0
  %v4281 = vadd.f32 0.0, %v4280
  %v4282 = vpop.f32.mrb[0].mxu0
  %v4283 = vadd.f32 0.0, %v4282
  %v4284 = vpop.f32.mrb[0].mxu0
  %v4285 = vadd.f32 0.0, %v4284
  %v4286 = vpop.f32.mrb[0].mxu0
  %v4287 = vadd.f32 0.0, %v4286
  %4288 = vdwg.mxu0
  %4289 = vmatprep.subr.bf16.mxu0 %v4181
  %4290 = vmatpush1.bf16.msra.mxu0 %v4178
  %4291 = vmatprep.subr.bf16.mxu0 0
  %4292 = vmatpush1.bf16.msra.mxu0 0
  %4293 = vmatprep.subr.bf16.mxu0 0
  %4294 = vmatpush1.bf16.msra.mxu0 0
  %4295 = vmatprep.subr.bf16.mxu0 0
  %4296 = vmatpush1.bf16.msra.mxu0 0
  %4297 = vmatprep.subr.bf16.mxu0 0
  %4298 = vmatpush1.bf16.msra.mxu0 0
  %4299 = vmatprep.subr.bf16.mxu0 0
  %4300 = vmatpush1.bf16.msra.mxu0 0
  %4301 = vmatprep.subr.bf16.mxu0 0
  %4302 = vmatpush1.bf16.msra.mxu0 0
  %4303 = vmatprep.subr.bf16.mxu0 0
  %4304 = vmatpush1.bf16.msra.mxu0 0
  %4305 = vmatprep.subr.bf16.mxu0 0
  %4306 = vmatpush1.bf16.msra.mxu0 0
  %4307 = vmatprep.subr.bf16.mxu0 0
  %4308 = vmatpush1.bf16.msra.mxu0 0
  %4309 = vmatprep.subr.bf16.mxu0 0
  %4310 = vmatpush1.bf16.msra.mxu0 0
  %4311 = vmatprep.subr.bf16.mxu0 0
  %4312 = vmatpush1.bf16.msra.mxu0 0
  %4313 = vmatprep.subr.bf16.mxu0 0
  %4314 = vmatpush1.bf16.msra.mxu0 0
  %4315 = vmatprep.subr.bf16.mxu0 0
  %4316 = vmatpush1.bf16.msra.mxu0 0
  %4317 = vmatprep.subr.bf16.mxu0 0
  %4318 = vmatpush1.bf16.msra.mxu0 0
  %4319 = vmatprep.subr.bf16.mxu0 0
  %4320 = vmatpush1.bf16.msra.mxu0 0
  %4321 = vmatprep.mubr.bf16.mxu0 0
  %4322 = vmatmul.mubr.bf16.gmra.mrb[0].mxu0 %v4160
  %v4323 = vpop.f32.mrb[0].mxu0
  %v4324 = vadd.f32 0.0, %v4323
  %v4325 = vpop.f32.mrb[0].mxu0
  %v4326 = vadd.f32 0.0, %v4325
  %v4327 = vpop.f32.mrb[0].mxu0
  %v4328 = vadd.f32 0.0, %v4327
  %v4329 = vpop.f32.mrb[0].mxu0
  %v4330 = vadd.f32 0.0, %v4329
  %4331 = vmatprep.mubr.bf16.mxu0 0
  %4332 = vmatmul.mubr.bf16.gmra.mrb[0].mxu0 %v4163
  %v4333 = vpop.f32.mrb[0].mxu0
  %v4334 = vadd.f32 0.0, %v4333
  %v4335 = vpop.f32.mrb[0].mxu0
  %v4336 = vadd.f32 0.0, %v4335
  %v4337 = vpop.f32.mrb[0].mxu0
  %v4338 = vadd.f32 0.0, %v4337
  %v4339 = vpop.f32.mrb[0].mxu0
  %v4340 = vadd.f32 0.0, %v4339
  %4341 = vdwg.mxu0
  %v4342 = vadd.f32 %v4090, %v4218
  %v4343 = vadd.f32 %v4091, %v4220
  %v4344 = vadd.f32 %v4092, %v4271
  %v4345 = vadd.f32 %v4093, %v4273
  %v4346 = vadd.f32 %v4094, %v4324
  %v4347 = vadd.f32 %v4095, %v4326
  %v4348 = vadd.f32 %v4096, %v4222
  %v4349 = vadd.f32 %v4097, %v4224
  %v4350 = vadd.f32 %v4098, %v4275
  %v4351 = vadd.f32 %v4099, %v4277
  %v4352 = vadd.f32 %v4100, %v4328
  %v4353 = vadd.f32 %v4101, %v4330
  %v4354 = vadd.f32 %v4102, %v4228
  %v4355 = vadd.f32 %v4103, %v4230
  %v4356 = vadd.f32 %v4104, %v4281
  %v4357 = vadd.f32 %v4105, %v4283
  %v4358 = vadd.f32 %v4106, %v4334
  %v4359 = vadd.f32 %v4107, %v4336
  %v4360 = vadd.f32 %v4108, %v4232
  %v4361 = vadd.f32 %v4109, %v4234
  %v4362 = vadd.f32 %v4110, %v4285
  %v4363 = vadd.f32 %v4111, %v4287
  %v4364 = vadd.f32 %v4112, %v4338
  %v4365 = vadd.f32 %v4113, %v4340
  %v4366 = vld [vmem:[%s7] sm:$0xff]
  %v4367 = vld [vmem:[%s7 + $0x8] sm:$0xff]
  %v4368 = vld [vmem:[%s7 + $0x10] sm:$0xff]
  %v4369 = vld [vmem:[%s7 + $0x18] sm:$0xff]
  %4371 = vset.pattern.permute.xlu0 0
  %4372 = vperm.xlu0 %4371, %v4366
  %v4373 = vpop.permute.xlu0 %4372
  %4376 = vset.pattern.permute.xlu0 0
  %4377 = vperm.xlu0 %4376, %v4367
  %v4378 = vpop.permute.xlu0 %4377
  %4381 = vset.pattern.permute.xlu0 0
  %4382 = vperm.xlu0 %4381, %v4368
  %v4383 = vpop.permute.xlu0 %4382
  %4386 = vset.pattern.permute.xlu0 0
  %4387 = vperm.xlu0 %4386, %v4369
  %v4388 = vpop.permute.xlu0 %4387
  %v4390 = vadd.f32 %v4342, %v4373
  %v4391 = vadd.f32 %v4343, %v4373
  %v4392 = vadd.f32 %v4344, %v4373
  %v4393 = vadd.f32 %v4345, %v4373
  %v4394 = vadd.f32 %v4346, %v4373
  %v4395 = vadd.f32 %v4347, %v4373
  %v4396 = vadd.f32 %v4348, %v4378
  %v4397 = vadd.f32 %v4349, %v4378
  %v4398 = vadd.f32 %v4350, %v4378
  %v4399 = vadd.f32 %v4351, %v4378
  %v4400 = vadd.f32 %v4352, %v4378
  %v4401 = vadd.f32 %v4353, %v4378
  %v4402 = vadd.f32 %v4354, %v4383
  %v4403 = vadd.f32 %v4355, %v4383
  %v4404 = vadd.f32 %v4356, %v4383
  %v4405 = vadd.f32 %v4357, %v4383
  %v4406 = vadd.f32 %v4358, %v4383
  %v4407 = vadd.f32 %v4359, %v4383
  %v4408 = vadd.f32 %v4360, %v4388
  %v4409 = vadd.f32 %v4361, %v4388
  %v4410 = vadd.f32 %v4362, %v4388
  %v4411 = vadd.f32 %v4363, %v4388
  %v4412 = vadd.f32 %v4364, %v4388
  %v4413 = vadd.f32 %v4365, %v4388
  %v4414 = vmax.f32 %v4390, 0.0
  %v4415 = vmax.f32 %v4391, 0.0
  %v4416 = vmax.f32 %v4392, 0.0
  %v4417 = vmax.f32 %v4393, 0.0
  %v4418 = vmax.f32 %v4394, 0.0
  %v4419 = vmax.f32 %v4395, 0.0
  %v4420 = vmax.f32 %v4396, 0.0
  %v4421 = vmax.f32 %v4397, 0.0
  %v4422 = vmax.f32 %v4398, 0.0
  %v4423 = vmax.f32 %v4399, 0.0
  %v4424 = vmax.f32 %v4400, 0.0
  %v4425 = vmax.f32 %v4401, 0.0
  %v4426 = vmax.f32 %v4402, 0.0
  %v4427 = vmax.f32 %v4403, 0.0
  %v4428 = vmax.f32 %v4404, 0.0
  %v4429 = vmax.f32 %v4405, 0.0
  %v4430 = vmax.f32 %v4406, 0.0
  %v4431 = vmax.f32 %v4407, 0.0
  %v4432 = vmax.f32 %v4408, 0.0
  %v4433 = vmax.f32 %v4409, 0.0
  %v4434 = vmax.f32 %v4410, 0.0
  %v4435 = vmax.f32 %v4411, 0.0
  %v4436 = vmax.f32 %v4412, 0.0
  %v4437 = vmax.f32 %v4413, 0.0
  %v4438 = vmul.f32 %v4414, %v1757
  %v4439 = vmul.f32 %v4415, %v1761
  %v4440 = vmul.f32 %v4416, %v1765
  %v4441 = vmul.f32 %v4417, %v1769
  %v4442 = vmul.f32 %v4418, %v1773
  %v4443 = vmul.f32 %v4419, %v1777
  %v4444 = vmul.f32 %v4420, %v1757
  %v4445 = vmul.f32 %v4421, %v1761
  %v4446 = vmul.f32 %v4422, %v1765
  %v4447 = vmul.f32 %v4423, %v1769
  %v4448 = vmul.f32 %v4424, %v1773
  %v4449 = vmul.f32 %v4425, %v1777
  %v4450 = vmul.f32 %v4426, %v1757
  %v4451 = vmul.f32 %v4427, %v1761
  %v4452 = vmul.f32 %v4428, %v1765
  %v4453 = vmul.f32 %v4429, %v1769
  %v4454 = vmul.f32 %v4430, %v1773
  %v4455 = vmul.f32 %v4431, %v1777
  %v4456 = vmul.f32 %v4432, %v1757
  %v4457 = vmul.f32 %v4433, %v1761
  %v4458 = vmul.f32 %v4434, %v1765
  %v4459 = vmul.f32 %v4435, %v1769
  %v4460 = vmul.f32 %v4436, %v1773
  %v4461 = vmul.f32 %v4437, %v1777
  %v4462 = vadd.f32 %v4438, %v4439
  %v4463 = vadd.f32 %v4462, %v4440
  %v4464 = vadd.f32 %v4463, %v4441
  %v4465 = vadd.f32 %v4464, %v4442
  %vm4466 = vcmask 64512
  %v4467 = vsel %vm4466, %v4443, 0.0
  %v4468 = vadd.f32 %v4465, %v4467
  %4469 = vadd.xlane.f32.xlu0 %v4468
  %v4470 = vpop.xlane.xlu0 %4469
  %v4471 = vadd.f32 %v4444, %v4445
  %v4472 = vadd.f32 %v4471, %v4446
  %v4473 = vadd.f32 %v4472, %v4447
  %v4474 = vadd.f32 %v4473, %v4448
  %v4475 = vsel %vm4466, %v4449, 0.0
  %v4476 = vadd.f32 %v4474, %v4475
  %4477 = vadd.xlane.f32.xlu0 %v4476
  %v4478 = vpop.xlane.xlu0 %4477
  %v4479 = vadd.f32 %v4450, %v4451
  %v4480 = vadd.f32 %v4479, %v4452
  %v4481 = vadd.f32 %v4480, %v4453
  %v4482 = vadd.f32 %v4481, %v4454
  %v4483 = vsel %vm4466, %v4455, 0.0
  %v4484 = vadd.f32 %v4482, %v4483
  %4485 = vadd.xlane.f32.xlu0 %v4484
  %v4486 = vpop.xlane.xlu0 %4485
  %v4487 = vadd.f32 %v4456, %v4457
  %v4488 = vadd.f32 %v4487, %v4458
  %v4489 = vadd.f32 %v4488, %v4459
  %v4490 = vadd.f32 %v4489, %v4460
  %v4491 = vsel %vm4466, %v4461, 0.0
  %v4492 = vadd.f32 %v4490, %v4491
  %4493 = vadd.xlane.f32.xlu0 %v4492
  %v4494 = vpop.xlane.xlu0 %4493
  %v4495 = vadd.f32 %v4470, %v4478
  %v4496 = vadd.f32 %v4495, %v4486
  %v4497 = vadd.f32 %v4496, %v4494
  %v4498 = vmul.f32 %v4497, 0.00048828125
  %v4499 = vsub.f32 %v4414, %v4498
  %v4500 = vsub.f32 %v4415, %v4498
  %v4501 = vsub.f32 %v4416, %v4498
  %v4502 = vsub.f32 %v4417, %v4498
  %v4503 = vsub.f32 %v4418, %v4498
  %v4504 = vsub.f32 %v4419, %v4498
  %v4505 = vmul.f32 %v4499, %v1757
  %v4506 = vmul.f32 %v4500, %v1761
  %v4507 = vmul.f32 %v4501, %v1765
  %v4508 = vmul.f32 %v4502, %v1769
  %v4509 = vmul.f32 %v4503, %v1773
  %v4510 = vmul.f32 %v4504, %v1777
  %v4511 = vmul.f32 %v4505, %v4505
  %v4512 = vmul.f32 %v4506, %v4506
  %v4513 = vmul.f32 %v4507, %v4507
  %v4514 = vmul.f32 %v4508, %v4508
  %v4515 = vmul.f32 %v4509, %v4509
  %v4516 = vmul.f32 %v4510, %v4510
  %v4517 = vadd.f32 %v4511, %v4512
  %v4518 = vadd.f32 %v4517, %v4513
  %v4519 = vadd.f32 %v4518, %v4514
  %v4520 = vadd.f32 %v4519, %v4515
  %v4521 = vsel %vm4466, %v4516, 0.0
  %v4522 = vadd.f32 %v4520, %v4521
  %4523 = vadd.xlane.f32.xlu0 %v4522
  %v4524 = vpop.xlane.xlu0 %4523
  %v4525 = vsub.f32 %v4420, %v4498
  %v4526 = vsub.f32 %v4421, %v4498
  %v4527 = vsub.f32 %v4422, %v4498
  %v4528 = vsub.f32 %v4423, %v4498
  %v4529 = vsub.f32 %v4424, %v4498
  %v4530 = vsub.f32 %v4425, %v4498
  %v4531 = vmul.f32 %v4525, %v1757
  %v4532 = vmul.f32 %v4526, %v1761
  %v4533 = vmul.f32 %v4527, %v1765
  %v4534 = vmul.f32 %v4528, %v1769
  %v4535 = vmul.f32 %v4529, %v1773
  %v4536 = vmul.f32 %v4530, %v1777
  %v4537 = vmul.f32 %v4531, %v4531
  %v4538 = vmul.f32 %v4532, %v4532
  %v4539 = vmul.f32 %v4533, %v4533
  %v4540 = vmul.f32 %v4534, %v4534
  %v4541 = vmul.f32 %v4535, %v4535
  %v4542 = vmul.f32 %v4536, %v4536
  %v4543 = vadd.f32 %v4537, %v4538
  %v4544 = vadd.f32 %v4543, %v4539
  %v4545 = vadd.f32 %v4544, %v4540
  %v4546 = vadd.f32 %v4545, %v4541
  %v4547 = vsel %vm4466, %v4542, 0.0
  %v4548 = vadd.f32 %v4546, %v4547
  %4549 = vadd.xlane.f32.xlu0 %v4548
  %v4550 = vpop.xlane.xlu0 %4549
  %v4551 = vadd.f32 %v4524, %v4550
  %v4552 = vsub.f32 %v4426, %v4498
  %v4553 = vsub.f32 %v4427, %v4498
  %v4554 = vsub.f32 %v4428, %v4498
  %v4555 = vsub.f32 %v4429, %v4498
  %v4556 = vsub.f32 %v4430, %v4498
  %v4557 = vsub.f32 %v4431, %v4498
  %v4558 = vmul.f32 %v4552, %v1757
  %v4559 = vmul.f32 %v4553, %v1761
  %v4560 = vmul.f32 %v4554, %v1765
  %v4561 = vmul.f32 %v4555, %v1769
  %v4562 = vmul.f32 %v4556, %v1773
  %v4563 = vmul.f32 %v4557, %v1777
  %v4564 = vmul.f32 %v4558, %v4558
  %v4565 = vmul.f32 %v4559, %v4559
  %v4566 = vmul.f32 %v4560, %v4560
  %v4567 = vmul.f32 %v4561, %v4561
  %v4568 = vmul.f32 %v4562, %v4562
  %v4569 = vmul.f32 %v4563, %v4563
  %v4570 = vadd.f32 %v4564, %v4565
  %v4571 = vadd.f32 %v4570, %v4566
  %v4572 = vadd.f32 %v4571, %v4567
  %v4573 = vadd.f32 %v4572, %v4568
  %v4574 = vsel %vm4466, %v4569, 0.0
  %v4575 = vadd.f32 %v4573, %v4574
  %4576 = vadd.xlane.f32.xlu0 %v4575
  %v4577 = vpop.xlane.xlu0 %4576
  %v4578 = vadd.f32 %v4551, %v4577
  %v4579 = vsub.f32 %v4432, %v4498
  %v4580 = vsub.f32 %v4433, %v4498
  %v4581 = vsub.f32 %v4434, %v4498
  %v4582 = vsub.f32 %v4435, %v4498
  %v4583 = vsub.f32 %v4436, %v4498
  %v4584 = vsub.f32 %v4437, %v4498
  %v4585 = vmul.f32 %v4579, %v1757
  %v4586 = vmul.f32 %v4580, %v1761
  %v4587 = vmul.f32 %v4581, %v1765
  %v4588 = vmul.f32 %v4582, %v1769
  %v4589 = vmul.f32 %v4583, %v1773
  %v4590 = vmul.f32 %v4584, %v1777
  %v4591 = vmul.f32 %v4585, %v4585
  %v4592 = vmul.f32 %v4586, %v4586
  %v4593 = vmul.f32 %v4587, %v4587
  %v4594 = vmul.f32 %v4588, %v4588
  %v4595 = vmul.f32 %v4589, %v4589
  %v4596 = vmul.f32 %v4590, %v4590
  %v4597 = vadd.f32 %v4591, %v4592
  %v4598 = vadd.f32 %v4597, %v4593
  %v4599 = vadd.f32 %v4598, %v4594
  %v4600 = vadd.f32 %v4599, %v4595
  %v4601 = vsel %vm4466, %v4596, 0.0
  %v4602 = vadd.f32 %v4600, %v4601
  %4603 = vadd.xlane.f32.xlu0 %v4602
  %v4604 = vpop.xlane.xlu0 %4603
  %v4605 = vadd.f32 %v4578, %v4604
  %v4606 = vmul.f32 %v4605, 0.00048828125
  %v4607 = vld [vmem:[%s8] sm:$0xff]
  %v4608 = vadd.f32 %v4606, 1e-05
  %v4609 = vrsqrt.pop %v4608
  %v4610 = vmul.f32 %v4607, %v4609
  %v4611 = vld [vmem:[%s9] sm:$0xff]
  %v4612 = vmul.f32 %v4498, %v4610
  %v4613 = vsub.f32 %v4611, %v4612
  %4615 = vset.pattern.permute.xlu0 0
  %4616 = vperm.xlu0 %4615, %v4610
  %v4617 = vpop.permute.xlu0 %4616
  %v4619 = vmul.f32 %v4414, %v4617
  %v4620 = vmul.f32 %v4415, %v4617
  %v4621 = vmul.f32 %v4416, %v4617
  %v4622 = vmul.f32 %v4417, %v4617
  %v4623 = vmul.f32 %v4418, %v4617
  %v4624 = vmul.f32 %v4419, %v4617
  %4626 = vset.pattern.permute.xlu0 0
  %4627 = vperm.xlu0 %4626, %v4613
  %v4628 = vpop.permute.xlu0 %4627
  %v4630 = vadd.f32 %v4619, %v4628
  %v4631 = vadd.f32 %v4620, %v4628
  %v4632 = vadd.f32 %v4621, %v4628
  %v4633 = vadd.f32 %v4622, %v4628
  %v4634 = vadd.f32 %v4623, %v4628
  %v4635 = vadd.f32 %v4624, %v4628
  %4636 = vst [vmem:[%s11] sm:$0xff] %v4630
  %4637 = vst [vmem:[%s11 + $0x8] sm:$0xff] %v4631
  %4638 = vst [vmem:[%s11 + $0x10] sm:$0xff] %v4632
  %4639 = vst [vmem:[%s11 + $0x18] sm:$0xff] %v4633
  %4640 = vst [vmem:[%s11 + $0x20] sm:$0xff] %v4634
  %4641 = vst.msk [vmem:[%s11 + $0x28] sm:$0xff] %vm4466, %v4635
  %v4642 = vmul.f32 %v4420, %v4617
  %v4643 = vmul.f32 %v4421, %v4617
  %v4644 = vmul.f32 %v4422, %v4617
  %v4645 = vmul.f32 %v4423, %v4617
  %v4646 = vmul.f32 %v4424, %v4617
  %v4647 = vmul.f32 %v4425, %v4617
  %v4648 = vadd.f32 %v4642, %v4628
  %v4649 = vadd.f32 %v4643, %v4628
  %v4650 = vadd.f32 %v4644, %v4628
  %v4651 = vadd.f32 %v4645, %v4628
  %v4652 = vadd.f32 %v4646, %v4628
  %v4653 = vadd.f32 %v4647, %v4628
  %4654 = vst [vmem:[%s11 + $0x30] sm:$0xff] %v4648
  %4655 = vst [vmem:[%s11 + $0x38] sm:$0xff] %v4649
  %4656 = vst [vmem:[%s11 + $0x40] sm:$0xff] %v4650
  %4657 = vst [vmem:[%s11 + $0x48] sm:$0xff] %v4651
  %4658 = vst [vmem:[%s11 + $0x50] sm:$0xff] %v4652
  %4659 = vst.msk [vmem:[%s11 + $0x58] sm:$0xff] %vm4466, %v4653
  %v4660 = vmul.f32 %v4426, %v4617
  %v4661 = vmul.f32 %v4427, %v4617
  %v4662 = vmul.f32 %v4428, %v4617
  %v4663 = vmul.f32 %v4429, %v4617
  %v4664 = vmul.f32 %v4430, %v4617
  %v4665 = vmul.f32 %v4431, %v4617
  %v4666 = vadd.f32 %v4660, %v4628
  %v4667 = vadd.f32 %v4661, %v4628
  %v4668 = vadd.f32 %v4662, %v4628
  %v4669 = vadd.f32 %v4663, %v4628
  %v4670 = vadd.f32 %v4664, %v4628
  %v4671 = vadd.f32 %v4665, %v4628
  %4672 = vst [vmem:[%s11 + $0x60] sm:$0xff] %v4666
  %4673 = vst [vmem:[%s11 + $0x68] sm:$0xff] %v4667
  %4674 = vst [vmem:[%s11 + $0x70] sm:$0xff] %v4668
  %4675 = vst [vmem:[%s11 + $0x78] sm:$0xff] %v4669
  %4676 = vst [vmem:[%s11 + $0x80] sm:$0xff] %v4670
  %4677 = vst.msk [vmem:[%s11 + $0x88] sm:$0xff] %vm4466, %v4671
  %v4678 = vmul.f32 %v4432, %v4617
  %v4679 = vmul.f32 %v4433, %v4617
  %v4680 = vmul.f32 %v4434, %v4617
  %v4681 = vmul.f32 %v4435, %v4617
  %v4682 = vmul.f32 %v4436, %v4617
  %v4683 = vmul.f32 %v4437, %v4617
  %v4684 = vadd.f32 %v4678, %v4628
  %v4685 = vadd.f32 %v4679, %v4628
  %v4686 = vadd.f32 %v4680, %v4628
  %v4687 = vadd.f32 %v4681, %v4628
  %v4688 = vadd.f32 %v4682, %v4628
  %v4689 = vadd.f32 %v4683, %v4628
  %4690 = vst [vmem:[%s11 + $0x90] sm:$0xff] %v4684
  %4691 = vst [vmem:[%s11 + $0x98] sm:$0xff] %v4685
  %4692 = vst [vmem:[%s11 + $0xa0] sm:$0xff] %v4686
  %4693 = vst [vmem:[%s11 + $0xa8] sm:$0xff] %v4687
  %4694 = vst [vmem:[%s11 + $0xb0] sm:$0xff] %v4688
  %4695 = vst.msk [vmem:[%s11 + $0xb8] sm:$0xff] %vm4466, %v4689
  // Predicated region
  $region46: #{_forward.1} parent=0 // pred_check
    _
  $region47: #{_forward.1} parent=0 // pred_check_branch
    %4697 = sbr.rel (0) target = $region49
  $region48: #{_forward.1} parent=0 // pred_region
    _
  $region49: #{_forward.1} parent=0 // pred_fallthru
    _
  // Predicated region
  $region50: #{_forward.1} parent=0 // pred_check
    _
  $region51: #{_forward.1} parent=0 // pred_check_branch
    %4699 = sbr.rel (0) target = $region53
  $region52: #{_forward.1} parent=0 // pred_region
    _
  $region53: #{_forward.1} parent=0 // pred_fallthru
    _

</llo_original>
